<compile_context>
chip_gen: v5e
topology: v5e:2x2
jax: 0.10.0
libtpu: 0.0.40
codegen_flags: <defaults>
</compile_context>

<pallas_src>
import functools

import jax
import jax.numpy as jnp
from jax.experimental import pallas as pl
from jax.experimental.pallas import tpu as pltpu

# Set to jnp.bfloat16 on v6e/v7x to use the bf16 MXU rate (accumulation stays
# f32).  Kept f32 by default to match the PyTorch reference numerics exactly.
MATMUL_DTYPE = jnp.float32


def _mm(a, b, dims=None):
    """MXU matmul with f32 accumulation (operands optionally cast to bf16)."""
    a = a.astype(MATMUL_DTYPE)
    b = b.astype(MATMUL_DTYPE)
    if dims is None:
        return jnp.dot(a, b, preferred_element_type=jnp.float32)
    return jax.lax.dot_general(a, b, dimension_numbers=dims,
                               preferred_element_type=jnp.float32)


# ---------------------------------------------------------------------------
# sin-cos 2D positional embedding, produced directly in token layout (L, dim)
# (token order = (h, w) row-major, matching the NHWC flatten used below).
# ---------------------------------------------------------------------------
def posemb_sincos_2d_tokens(dim, h, w, temperature=1000.0, dtype=jnp.float32):
    assert dim % 4 == 0, 'feature dimension must be multiple of 4 for sincos emb'
    y, x = jnp.meshgrid(jnp.arange(h, dtype=jnp.float32),
                        jnp.arange(w, dtype=jnp.float32), indexing='ij')
    omega = jnp.arange(dim // 4, dtype=jnp.float32) / (dim // 4 - 1)
    omega = 1.0 / (temperature ** omega)
    yv = y.reshape(-1)[:, None] * omega[None, :]
    xv = x.reshape(-1)[:, None] * omega[None, :]
    pe = jnp.concatenate([jnp.sin(xv), jnp.cos(xv), jnp.sin(yv), jnp.cos(yv)], axis=1)
    return pe.astype(dtype)  # (h*w, dim)


# ---------------------------------------------------------------------------
# Fused Pallas kernel: posemb add + projector MLPs + QKV proj + MHA + maps
# ---------------------------------------------------------------------------
def _fused_kernel(sharp_ref, hist_ref, cur_ref,
                  pe_s_ref, pe_h_ref, pe_c_ref,
                  p1w1_ref, p1b1_ref, p1w2_ref, p1b2_ref,
                  p2w1_ref, p2b1_ref, p2w2_ref, p2b2_ref,
                  wq_ref, bq_ref, wk_ref, bk_ref, wv_ref, bv_ref,
                  wo_ref, bo_ref,
                  out_ref, ac_ref,
                  *, N, H, W, nheads):
    L = H * W
    E = wo_ref.shape[0]
    hd = E // nheads
    scale = 1.0 / float(hd) ** 0.5
    f32 = jnp.float32

    cC = sharp_ref.shape[2]
    hC = hist_ref.shape[2]

    # ---- projector1 (sharp)  -> Q   (all N*L rows in one MXU pass) ----------
    x1 = (sharp_ref[...] + pe_s_ref[...]).reshape(N * L, cC)
    h1 = jnp.maximum(_mm(x1, p1w1_ref[...]) + p1b1_ref[...], 0.0)
    f1 = jnp.maximum(_mm(h1, p1w2_ref[...]) + p1b2_ref[...], 0.0)
    q = (_mm(f1, wq_ref[...]) + bq_ref[...]) * scale                  # (N*L, E)

    # ---- projector2 (history) -> K ------------------------------------------
    x2 = (hist_ref[...] + pe_h_ref[...]).reshape(N * L, hC)
    h2 = jnp.maximum(_mm(x2, p2w1_ref[...]) + p2b1_ref[...], 0.0)
    f2 = jnp.maximum(_mm(h2, p2w2_ref[...]) + p2b2_ref[...], 0.0)
    k = _mm(f2, wk_ref[...]) + bk_ref[...]                            # (N*L, E)

    # ---- value projection (current encoding) --------------------------------
    xv = (cur_ref[...] + pe_c_ref[...]).reshape(N * L, E)
    v = _mm(xv, wv_ref[...]) + bv_ref[...]                            # (N*L, E)

    # ---- multi-head attention: heads unrolled, each dot batched over N ------
    q3 = q.reshape(N, L, E)
    k3 = k.reshape(N, L, E)
    v3 = v.reshape(N, L, E)
    wo = wo_ref[...]

    amap = jnp.zeros((N, L, L), f32)
    out = jnp.zeros((N * L, E), f32) + bo_ref[...]
    for h_i in range(nheads):                      # static unroll (nheads = 4)
        sl = slice(h_i * hd, (h_i + 1) * hd)
        qh = q3[:, :, sl]                                           # (N, L, hd)
        kh = k3[:, :, sl]
        vh = v3[:, :, sl]
        # scores[b, l, m] = sum_d qh[b,l,d] * kh[b,m,d]
        scores = _mm(qh, kh, dims=(((2,), (2,)), ((0,), (0,))))     # (N, L, L)
        m = jnp.max(scores, axis=-1, keepdims=True)
        p = jnp.exp(scores - m)
        probs = p * pl.reciprocal(jnp.sum(p, axis=-1, keepdims=True), approx=True)
        amap = amap + probs
        ctx = _mm(probs, vh, dims=(((2,), (1,)), ((0,), (0,))))     # (N, L, hd)
        # accumulate output projection head-by-head (== concat(ctx) @ Wo)
        out = out + _mm(ctx.reshape(N * L, hd), wo[sl, :])
    amap = amap * (1.0 / nheads)      # nn.MultiheadAttention head-averaged map

    out_ref[...] = out.astype(out_ref.dtype)

    # ---- correlation map: softmax over query-W * softmax over query-H -------
    a4 = amap.reshape(N, H, W, L)
    ew = jnp.exp(a4 - jnp.max(a4, axis=2, keepdims=True))
    sm_w = ew * pl.reciprocal(jnp.sum(ew, axis=2, keepdims=True), approx=True)
    eh = jnp.exp(a4 - jnp.max(a4, axis=1, keepdims=True))
    sm_h = eh * pl.reciprocal(jnp.sum(eh, axis=1, keepdims=True), approx=True)
    corr = (sm_w * sm_h).reshape(N, L, L)

    # lane-dense (N, L, 2L) slab: [attn_map | correlation_map]
    ac_ref[...] = jnp.concatenate([amap, corr], axis=-1).astype(ac_ref.dtype)


def _fused_attention_call(sharp_t, hist_t, cur_t, pe_s, pe_h, pe_c, params,
                          nheads, H, W):
    N, L, cC = sharp_t.shape
    hC = hist_t.shape[2]
    E = cur_t.shape[2]

    def full(shape):
        return pl.BlockSpec(shape, lambda *_: (0,) * len(shape))

    kernel = functools.partial(_fused_kernel, N=N, H=H, W=W, nheads=nheads)

    in_specs = [
        full((N, L, cC)), full((N, L, hC)), full((N, L, E)),
        full((L, cC)), full((L, hC)), full((L, E)),
        full((cC, cC)), full((1, cC)), full((cC, E)), full((1, E)),
        full((hC, hC)), full((1, hC)), full((hC, E)), full((1, E)),
        full((E, E)), full((1, E)), full((E, E)), full((1, E)),
        full((E, E)), full((1, E)), full((E, E)), full((1, E)),
    ]
    out_specs = [full((N * L, E)), full((N, L, 2 * L))]
    out_shape = (jax.ShapeDtypeStruct((N * L, E), jnp.float32),
                 jax.ShapeDtypeStruct((N, L, 2 * L), jnp.float32))

    return pl.pallas_call(
        kernel,
        out_shape=out_shape,
        grid_spec=pltpu.PrefetchScalarGridSpec(
            num_scalar_prefetch=0,
            grid=(1,),                # single step: everything fits VMEM easily
            in_specs=in_specs,
            out_specs=out_specs),
        compiler_params=pltpu.CompilerParams(
            dimension_semantics=("arbitrary",)),
    )(sharp_t, hist_t, cur_t, pe_s, pe_h, pe_c,
      params['p1_w1t'], params['p1_b1'].reshape(1, -1),
      params['p1_w2t'], params['p1_b2'].reshape(1, -1),
      params['p2_w1t'], params['p2_b1'].reshape(1, -1),
      params['p2_w2t'], params['p2_b2'].reshape(1, -1),
      params['wq_t'], params['bq'].reshape(1, -1),
      params['wk_t'], params['bk'].reshape(1, -1),
      params['wv_t'], params['bv'].reshape(1, -1),
      params['wo_t'], params['bo'].reshape(1, -1))


# ---------------------------------------------------------------------------
# Full forward pass
# ---------------------------------------------------------------------------
def feature_forecaster_forward(params, sharp_in, history_in, current_in, nheads):
    N, cC, H, W = sharp_in.shape
    _, hC, hH, hW = history_in.shape
    _, fC, fH, fW = current_in.shape
    E = params['wo_t'].shape[0]
    assert fC == E, "current_encoding channels must equal out_channels"
    assert (H, W) == (fH, fW) == (hH, hW)
    L = fH * fW

    pe_s = posemb_sincos_2d_tokens(cC, H, W)
    pe_h = posemb_sincos_2d_tokens(hC, H, W)
    pe_c = posemb_sincos_2d_tokens(fC, fH, fW)

    def to_tokens(x):  # NCHW -> (N, H*W, C); free layout glue around the kernel
        n, c, h, w = x.shape
        return x.transpose(0, 2, 3, 1).reshape(n, h * w, c)

    out2d, ac = _fused_attention_call(
        to_tokens(sharp_in), to_tokens(history_in), to_tokens(current_in),
        pe_s, pe_h, pe_c, params, nheads, fH, fW)

    attn_features = out2d.reshape(N, L, E).transpose(0, 2, 1).reshape(N, fC, fH, fW)
    attn_map = ac[:, :, :L]
    correlation_map = ac[:, :, L:].reshape(N, fH, fW, fH, fW)

    # Mutual-max matching + coordinate construction: tiny data-dependent
    # argmax / gather, kept in plain JAX (no clean tiled Pallas equivalent).
    # TODO(synk): exact float equality mirrors the PyTorch reference; compare
    # argmax indices instead if matmul dtypes ever change.
    match12 = jnp.max(attn_map, axis=2)
    match_idx12 = jnp.argmax(attn_map, axis=2)
    match21 = jnp.max(attn_map, axis=1)
    match21_g = jnp.take_along_axis(match21, match_idx12, axis=1)
    matched = (match12 - match21_g) == 0
    coords_index = jnp.broadcast_to(
        jnp.arange(L, dtype=match_idx12.dtype), (N, L))
    coords_index = jnp.where(matched, match_idx12, coords_index)
    coords_index = coords_index.reshape(N, fH, fW)
    coords_x = coords_index % fW
    coords_y = coords_index // fW
    coords_xy = jnp.stack([coords_x, coords_y], axis=1).astype(jnp.float32)

    return attn_features, correlation_map, coords_xy


# ---------------------------------------------------------------------------
# Deterministic parameter init (synthetic; weights stored pre-transposed (in, out))
# ---------------------------------------------------------------------------
def init_params(key, history_in_channels, current_in_channels, out_channels):
    ks = jax.random.split(key, 16)
    s = 0.1
    n = jax.random.normal
    f32 = jnp.float32
    return {
        # feature_projector1 (current_in_channels -> current_in -> out_channels)
        'p1_w1t': n(ks[0], (current_in_channels, current_in_channels), f32) * s,
        'p1_b1': n(ks[1], (current_in_channels,), f32) * s,
        'p1_w2t': n(ks[2], (current_in_channels, out_channels), f32) * s,
        'p1_b2': n(ks[3], (out_channels,), f32) * s,
        # feature_projector2 (history_in_channels -> history_in -> out_channels)
        'p2_w1t': n(ks[4], (history_in_channels, history_in_channels), f32) * s,
        'p2_b1': n(ks[5], (history_in_channels,), f32) * s,
        'p2_w2t': n(ks[6], (history_in_channels, out_channels), f32) * s,
        'p2_b2': n(ks[7], (out_channels,), f32) * s,
        # MultiheadAttention in/out projections
        'wq_t': n(ks[8], (out_channels, out_channels), f32) * s,
        'bq': n(ks[9], (out_channels,), f32) * s,
        'wk_t': n(ks[10], (out_channels, out_channels), f32) * s,
        'bk': n(ks[11], (out_channels,), f32) * s,
        'wv_t': n(ks[12], (out_channels, out_channels), f32) * s,
        'bv': n(ks[13], (out_channels,), f32) * s,
        'wo_t': n(ks[14], (out_channels, out_channels), f32) * s,
        'bo': n(ks[15], (out_channels,), f32) * s,
    }


if __name__ == "__main__":
    key = jax.random.PRNGKey(0)
    N, H, W = 2, 8, 8
    history_in_channels = 24
    current_in_channels = 16
    out_channels = 32
    nheads = 4

    k1, k2, k3, kp = jax.random.split(key, 4)
    sharp_in = jax.random.normal(k1, (N, current_in_channels, H, W), jnp.float32)
    history_in = jax.random.normal(k2, (N, history_in_channels, H, W), jnp.float32)
    # current_encoding channels must equal out_channels (vdim / output reshape)
    current_in = jax.random.normal(k3, (N, out_channels, H, W), jnp.float32)

    params = init_params(kp, history_in_channels, current_in_channels, out_channels)

    fwd = jax.jit(feature_forecaster_forward, static_argnames=('nheads',))
    attn_features, correlation_map, coords_xy = fwd(
        params, sharp_in, history_in, current_in, nheads=nheads)
    jax.block_until_ready((attn_features, correlation_map, coords_xy))

    assert attn_features.shape == (N, out_channels, H, W)
    assert correlation_map.shape == (N, H, W, H, W)
    assert coords_xy.shape == (N, 2, H, W)
    print("KERNEL_OK")
</pallas_src>

<mosaic_0001>
module attributes {stable_mosaic.version = 11 : i64} {
  func.func @_fused_kernel(%arg0: i32, %arg1: memref<2x64x16xf32, #tpu.memory_space<vmem>>, %arg2: memref<2x64x24xf32, #tpu.memory_space<vmem>>, %arg3: memref<2x64x32xf32, #tpu.memory_space<vmem>>, %arg4: memref<64x16xf32, #tpu.memory_space<vmem>>, %arg5: memref<64x24xf32, #tpu.memory_space<vmem>>, %arg6: memref<64x32xf32, #tpu.memory_space<vmem>>, %arg7: memref<16x16xf32, #tpu.memory_space<vmem>>, %arg8: memref<1x16xf32, #tpu.memory_space<vmem>>, %arg9: memref<16x32xf32, #tpu.memory_space<vmem>>, %arg10: memref<1x32xf32, #tpu.memory_space<vmem>>, %arg11: memref<24x24xf32, #tpu.memory_space<vmem>>, %arg12: memref<1x24xf32, #tpu.memory_space<vmem>>, %arg13: memref<24x32xf32, #tpu.memory_space<vmem>>, %arg14: memref<1x32xf32, #tpu.memory_space<vmem>>, %arg15: memref<32x32xf32, #tpu.memory_space<vmem>>, %arg16: memref<1x32xf32, #tpu.memory_space<vmem>>, %arg17: memref<32x32xf32, #tpu.memory_space<vmem>>, %arg18: memref<1x32xf32, #tpu.memory_space<vmem>>, %arg19: memref<32x32xf32, #tpu.memory_space<vmem>>, %arg20: memref<1x32xf32, #tpu.memory_space<vmem>>, %arg21: memref<32x32xf32, #tpu.memory_space<vmem>>, %arg22: memref<1x32xf32, #tpu.memory_space<vmem>>, %arg23: memref<128x32xf32, #tpu.memory_space<vmem>>, %arg24: memref<2x64x128xf32, #tpu.memory_space<vmem>>) attributes {dimension_semantics = [#tpu.dimension_semantics<arbitrary>], iteration_bounds = array<i64: 1>, scalar_prefetch = 0 : i64, scratch_operands = 0 : i64, tpu.core_type = #tpu.core_type<tc>, window_params = [{pipeline_mode = #tpu.pipeline_mode<synchronous>, transform_indices = @transform_0, window_bounds = array<i64: 2, 64, 16>}, {pipeline_mode = #tpu.pipeline_mode<synchronous>, transform_indices = @transform_1, window_bounds = array<i64: 2, 64, 24>}, {pipeline_mode = #tpu.pipeline_mode<synchronous>, transform_indices = @transform_2, window_bounds = array<i64: 2, 64, 32>}, {pipeline_mode = #tpu.pipeline_mode<synchronous>, transform_indices = @transform_3, window_bounds = array<i64: 64, 16>}, {pipeline_mode = #tpu.pipeline_mode<synchronous>, transform_indices = @transform_4, window_bounds = array<i64: 64, 24>}, {pipeline_mode = #tpu.pipeline_mode<synchronous>, transform_indices = @transform_5, window_bounds = array<i64: 64, 32>}, {pipeline_mode = #tpu.pipeline_mode<synchronous>, transform_indices = @transform_6, window_bounds = array<i64: 16, 16>}, {pipeline_mode = #tpu.pipeline_mode<synchronous>, transform_indices = @transform_7, window_bounds = array<i64: 1, 16>}, {pipeline_mode = #tpu.pipeline_mode<synchronous>, transform_indices = @transform_8, window_bounds = array<i64: 16, 32>}, {pipeline_mode = #tpu.pipeline_mode<synchronous>, transform_indices = @transform_9, window_bounds = array<i64: 1, 32>}, {pipeline_mode = #tpu.pipeline_mode<synchronous>, transform_indices = @transform_10, window_bounds = array<i64: 24, 24>}, {pipeline_mode = #tpu.pipeline_mode<synchronous>, transform_indices = @transform_11, window_bounds = array<i64: 1, 24>}, {pipeline_mode = #tpu.pipeline_mode<synchronous>, transform_indices = @transform_12, window_bounds = array<i64: 24, 32>}, {pipeline_mode = #tpu.pipeline_mode<synchronous>, transform_indices = @transform_13, window_bounds = array<i64: 1, 32>}, {pipeline_mode = #tpu.pipeline_mode<synchronous>, transform_indices = @transform_14, window_bounds = array<i64: 32, 32>}, {pipeline_mode = #tpu.pipeline_mode<synchronous>, transform_indices = @transform_15, window_bounds = array<i64: 1, 32>}, {pipeline_mode = #tpu.pipeline_mode<synchronous>, transform_indices = @transform_16, window_bounds = array<i64: 32, 32>}, {pipeline_mode = #tpu.pipeline_mode<synchronous>, transform_indices = @transform_17, window_bounds = array<i64: 1, 32>}, {pipeline_mode = #tpu.pipeline_mode<synchronous>, transform_indices = @transform_18, window_bounds = array<i64: 32, 32>}, {pipeline_mode = #tpu.pipeline_mode<synchronous>, transform_indices = @transform_19, window_bounds = array<i64: 1, 32>}, {pipeline_mode = #tpu.pipeline_mode<synchronous>, transform_indices = @transform_20, window_bounds = array<i64: 32, 32>}, {pipeline_mode = #tpu.pipeline_mode<synchronous>, transform_indices = @transform_21, window_bounds = array<i64: 1, 32>}, {pipeline_mode = #tpu.pipeline_mode<synchronous>, transform_indices = @transform_22, window_bounds = array<i64: 128, 32>}, {pipeline_mode = #tpu.pipeline_mode<synchronous>, transform_indices = @transform_23, window_bounds = array<i64: 2, 64, 128>}]} {
    %c0 = arith.constant 0 : index
    %c0_0 = arith.constant 0 : index
    %c0_1 = arith.constant 0 : index
    %0 = vector.load %arg1[%c0, %c0_0, %c0_1] : memref<2x64x16xf32, #tpu.memory_space<vmem>>, vector<2x64x16xf32>
    %c0_2 = arith.constant 0 : index
    %c0_3 = arith.constant 0 : index
    %1 = vector.load %arg4[%c0_2, %c0_3] : memref<64x16xf32, #tpu.memory_space<vmem>>, vector<64x16xf32>
    %2 = vector.shape_cast %1 : vector<64x16xf32> to vector<1x64x16xf32>
    %3 = vector.broadcast %2 : vector<1x64x16xf32> to vector<2x64x16xf32>
    %4 = arith.addf %0, %3 : vector<2x64x16xf32>
    %5 = vector.shape_cast %4 : vector<2x64x16xf32> to vector<128x16xf32>
    %c0_4 = arith.constant 0 : index
    %c0_5 = arith.constant 0 : index
    %6 = vector.load %arg7[%c0_4, %c0_5] : memref<16x16xf32, #tpu.memory_space<vmem>>, vector<16x16xf32>
    %cst = arith.constant dense<0.000000e+00> : vector<128x16xf32>
    %7 = tpu.matmul %5, %6, %cst {dimension_numbers = #tpu.dot_dimension_numbers<[1], [0], [0], [1], [0, 0, 1, 1], [], []>} : vector<128x16xf32>, vector<16x16xf32>, vector<128x16xf32> -> vector<128x16xf32>
    %c0_6 = arith.constant 0 : index
    %c0_7 = arith.constant 0 : index
    %8 = vector.load %arg8[%c0_6, %c0_7] : memref<1x16xf32, #tpu.memory_space<vmem>>, vector<1x16xf32>
    %9 = vector.broadcast %8 : vector<1x16xf32> to vector<128x16xf32>
    %10 = arith.addf %7, %9 : vector<128x16xf32>
    %cst_8 = arith.constant 0.000000e+00 : f32
    %11 = vector.broadcast %cst_8 : f32 to vector<128x16xf32>
    %12 = arith.maximumf %10, %11 : vector<128x16xf32>
    %c0_9 = arith.constant 0 : index
    %c0_10 = arith.constant 0 : index
    %13 = vector.load %arg9[%c0_9, %c0_10] : memref<16x32xf32, #tpu.memory_space<vmem>>, vector<16x32xf32>
    %cst_11 = arith.constant dense<0.000000e+00> : vector<128x32xf32>
    %14 = tpu.matmul %12, %13, %cst_11 {dimension_numbers = #tpu.dot_dimension_numbers<[1], [0], [0], [1], [0, 0, 1, 1], [], []>} : vector<128x16xf32>, vector<16x32xf32>, vector<128x32xf32> -> vector<128x32xf32>
    %c0_12 = arith.constant 0 : index
    %c0_13 = arith.constant 0 : index
    %15 = vector.load %arg10[%c0_12, %c0_13] : memref<1x32xf32, #tpu.memory_space<vmem>>, vector<1x32xf32>
    %16 = vector.broadcast %15 : vector<1x32xf32> to vector<128x32xf32>
    %17 = arith.addf %14, %16 : vector<128x32xf32>
    %cst_14 = arith.constant 0.000000e+00 : f32
    %18 = vector.broadcast %cst_14 : f32 to vector<128x32xf32>
    %19 = arith.maximumf %17, %18 : vector<128x32xf32>
    %c0_15 = arith.constant 0 : index
    %c0_16 = arith.constant 0 : index
    %20 = vector.load %arg15[%c0_15, %c0_16] : memref<32x32xf32, #tpu.memory_space<vmem>>, vector<32x32xf32>
    %cst_17 = arith.constant dense<0.000000e+00> : vector<128x32xf32>
    %21 = tpu.matmul %19, %20, %cst_17 {dimension_numbers = #tpu.dot_dimension_numbers<[1], [0], [0], [1], [0, 0, 1, 1], [], []>} : vector<128x32xf32>, vector<32x32xf32>, vector<128x32xf32> -> vector<128x32xf32>
    %c0_18 = arith.constant 0 : index
    %c0_19 = arith.constant 0 : index
    %22 = vector.load %arg16[%c0_18, %c0_19] : memref<1x32xf32, #tpu.memory_space<vmem>>, vector<1x32xf32>
    %23 = vector.broadcast %22 : vector<1x32xf32> to vector<128x32xf32>
    %24 = arith.addf %21, %23 : vector<128x32xf32>
    %cst_20 = arith.constant 0.353553385 : f32
    %25 = vector.broadcast %cst_20 : f32 to vector<128x32xf32>
    %26 = arith.mulf %24, %25 : vector<128x32xf32>
    %c0_21 = arith.constant 0 : index
    %c0_22 = arith.constant 0 : index
    %c0_23 = arith.constant 0 : index
    %27 = vector.load %arg2[%c0_21, %c0_22, %c0_23] : memref<2x64x24xf32, #tpu.memory_space<vmem>>, vector<2x64x24xf32>
    %c0_24 = arith.constant 0 : index
    %c0_25 = arith.constant 0 : index
    %28 = vector.load %arg5[%c0_24, %c0_25] : memref<64x24xf32, #tpu.memory_space<vmem>>, vector<64x24xf32>
    %29 = vector.shape_cast %28 : vector<64x24xf32> to vector<1x64x24xf32>
    %30 = vector.broadcast %29 : vector<1x64x24xf32> to vector<2x64x24xf32>
    %31 = arith.addf %27, %30 : vector<2x64x24xf32>
    %32 = vector.shape_cast %31 : vector<2x64x24xf32> to vector<128x24xf32>
    %c0_26 = arith.constant 0 : index
    %c0_27 = arith.constant 0 : index
    %33 = vector.load %arg11[%c0_26, %c0_27] : memref<24x24xf32, #tpu.memory_space<vmem>>, vector<24x24xf32>
    %cst_28 = arith.constant dense<0.000000e+00> : vector<128x24xf32>
    %34 = tpu.matmul %32, %33, %cst_28 {dimension_numbers = #tpu.dot_dimension_numbers<[1], [0], [0], [1], [0, 0, 1, 1], [], []>} : vector<128x24xf32>, vector<24x24xf32>, vector<128x24xf32> -> vector<128x24xf32>
    %c0_29 = arith.constant 0 : index
    %c0_30 = arith.constant 0 : index
    %35 = vector.load %arg12[%c0_29, %c0_30] : memref<1x24xf32, #tpu.memory_space<vmem>>, vector<1x24xf32>
    %36 = vector.broadcast %35 : vector<1x24xf32> to vector<128x24xf32>
    %37 = arith.addf %34, %36 : vector<128x24xf32>
    %cst_31 = arith.constant 0.000000e+00 : f32
    %38 = vector.broadcast %cst_31 : f32 to vector<128x24xf32>
    %39 = arith.maximumf %37, %38 : vector<128x24xf32>
    %c0_32 = arith.constant 0 : index
    %c0_33 = arith.constant 0 : index
    %40 = vector.load %arg13[%c0_32, %c0_33] : memref<24x32xf32, #tpu.memory_space<vmem>>, vector<24x32xf32>
    %cst_34 = arith.constant dense<0.000000e+00> : vector<128x32xf32>
    %41 = tpu.matmul %39, %40, %cst_34 {dimension_numbers = #tpu.dot_dimension_numbers<[1], [0], [0], [1], [0, 0, 1, 1], [], []>} : vector<128x24xf32>, vector<24x32xf32>, vector<128x32xf32> -> vector<128x32xf32>
    %c0_35 = arith.constant 0 : index
    %c0_36 = arith.constant 0 : index
    %42 = vector.load %arg14[%c0_35, %c0_36] : memref<1x32xf32, #tpu.memory_space<vmem>>, vector<1x32xf32>
    %43 = vector.broadcast %42 : vector<1x32xf32> to vector<128x32xf32>
    %44 = arith.addf %41, %43 : vector<128x32xf32>
    %cst_37 = arith.constant 0.000000e+00 : f32
    %45 = vector.broadcast %cst_37 : f32 to vector<128x32xf32>
    %46 = arith.maximumf %44, %45 : vector<128x32xf32>
    %c0_38 = arith.constant 0 : index
    %c0_39 = arith.constant 0 : index
    %47 = vector.load %arg17[%c0_38, %c0_39] : memref<32x32xf32, #tpu.memory_space<vmem>>, vector<32x32xf32>
    %cst_40 = arith.constant dense<0.000000e+00> : vector<128x32xf32>
    %48 = tpu.matmul %46, %47, %cst_40 {dimension_numbers = #tpu.dot_dimension_numbers<[1], [0], [0], [1], [0, 0, 1, 1], [], []>} : vector<128x32xf32>, vector<32x32xf32>, vector<128x32xf32> -> vector<128x32xf32>
    %c0_41 = arith.constant 0 : index
    %c0_42 = arith.constant 0 : index
    %49 = vector.load %arg18[%c0_41, %c0_42] : memref<1x32xf32, #tpu.memory_space<vmem>>, vector<1x32xf32>
    %50 = vector.broadcast %49 : vector<1x32xf32> to vector<128x32xf32>
    %51 = arith.addf %48, %50 : vector<128x32xf32>
    %c0_43 = arith.constant 0 : index
    %c0_44 = arith.constant 0 : index
    %c0_45 = arith.constant 0 : index
    %52 = vector.load %arg3[%c0_43, %c0_44, %c0_45] : memref<2x64x32xf32, #tpu.memory_space<vmem>>, vector<2x64x32xf32>
    %c0_46 = arith.constant 0 : index
    %c0_47 = arith.constant 0 : index
    %53 = vector.load %arg6[%c0_46, %c0_47] : memref<64x32xf32, #tpu.memory_space<vmem>>, vector<64x32xf32>
    %54 = vector.shape_cast %53 : vector<64x32xf32> to vector<1x64x32xf32>
    %55 = vector.broadcast %54 : vector<1x64x32xf32> to vector<2x64x32xf32>
    %56 = arith.addf %52, %55 : vector<2x64x32xf32>
    %57 = vector.shape_cast %56 : vector<2x64x32xf32> to vector<128x32xf32>
    %c0_48 = arith.constant 0 : index
    %c0_49 = arith.constant 0 : index
    %58 = vector.load %arg19[%c0_48, %c0_49] : memref<32x32xf32, #tpu.memory_space<vmem>>, vector<32x32xf32>
    %cst_50 = arith.constant dense<0.000000e+00> : vector<128x32xf32>
    %59 = tpu.matmul %57, %58, %cst_50 {dimension_numbers = #tpu.dot_dimension_numbers<[1], [0], [0], [1], [0, 0, 1, 1], [], []>} : vector<128x32xf32>, vector<32x32xf32>, vector<128x32xf32> -> vector<128x32xf32>
    %c0_51 = arith.constant 0 : index
    %c0_52 = arith.constant 0 : index
    %60 = vector.load %arg20[%c0_51, %c0_52] : memref<1x32xf32, #tpu.memory_space<vmem>>, vector<1x32xf32>
    %61 = vector.broadcast %60 : vector<1x32xf32> to vector<128x32xf32>
    %62 = arith.addf %59, %61 : vector<128x32xf32>
    %63 = vector.shape_cast %26 : vector<128x32xf32> to vector<2x64x32xf32>
    %64 = vector.shape_cast %51 : vector<128x32xf32> to vector<2x64x32xf32>
    %65 = vector.shape_cast %62 : vector<128x32xf32> to vector<2x64x32xf32>
    %c0_53 = arith.constant 0 : index
    %c0_54 = arith.constant 0 : index
    %66 = vector.load %arg21[%c0_53, %c0_54] : memref<32x32xf32, #tpu.memory_space<vmem>>, vector<32x32xf32>
    %cst_55 = arith.constant 0.000000e+00 : f32
    %67 = vector.broadcast %cst_55 : f32 to vector<2x64x64xf32>
    %cst_56 = arith.constant 0.000000e+00 : f32
    %68 = vector.broadcast %cst_56 : f32 to vector<128x32xf32>
    %c0_57 = arith.constant 0 : index
    %c0_58 = arith.constant 0 : index
    %69 = vector.load %arg22[%c0_57, %c0_58] : memref<1x32xf32, #tpu.memory_space<vmem>>, vector<1x32xf32>
    %70 = vector.broadcast %69 : vector<1x32xf32> to vector<128x32xf32>
    %71 = arith.addf %68, %70 : vector<128x32xf32>
    %72 = vector.extract_strided_slice %63 {offsets = [0, 0, 0], sizes = [2, 64, 8], strides = [1, 1, 1]} : vector<2x64x32xf32> to vector<2x64x8xf32>
    %73 = vector.extract_strided_slice %64 {offsets = [0, 0, 0], sizes = [2, 64, 8], strides = [1, 1, 1]} : vector<2x64x32xf32> to vector<2x64x8xf32>
    %74 = vector.extract_strided_slice %65 {offsets = [0, 0, 0], sizes = [2, 64, 8], strides = [1, 1, 1]} : vector<2x64x32xf32> to vector<2x64x8xf32>
    %cst_59 = arith.constant dense<0.000000e+00> : vector<2x64x64xf32>
    %75 = tpu.matmul %72, %73, %cst_59 {dimension_numbers = #tpu.dot_dimension_numbers<[2], [2], [1], [1], [0, 0, 0, 1, 1, 1], [0], [0]>} : vector<2x64x8xf32>, vector<2x64x8xf32>, vector<2x64x64xf32> -> vector<2x64x64xf32>
    %cst_60 = arith.constant dense<0xFF800000> : vector<2x64xf32>
    %76 = vector.multi_reduction <maximumf>, %75, %cst_60 [2] : vector<2x64x64xf32> to vector<2x64xf32>
    %77 = vector.shape_cast %76 : vector<2x64xf32> to vector<2x64x1xf32>
    %78 = vector.broadcast %77 : vector<2x64x1xf32> to vector<2x64x64xf32>
    %79 = arith.subf %75, %78 : vector<2x64x64xf32>
    %80 = math.exp %79 : vector<2x64x64xf32>
    %cst_61 = arith.constant dense<0.000000e+00> : vector<2x64xf32>
    %81 = vector.multi_reduction <add>, %80, %cst_61 [2] : vector<2x64x64xf32> to vector<2x64xf32>
    %82 = vector.shape_cast %81 : vector<2x64xf32> to vector<2x64x1xf32>
    %83 = tpu.reciprocal %82 {approx = true} : vector<2x64x1xf32> -> vector<2x64x1xf32>
    %84 = vector.broadcast %83 : vector<2x64x1xf32> to vector<2x64x64xf32>
    %85 = arith.mulf %80, %84 : vector<2x64x64xf32>
    %86 = arith.addf %67, %85 : vector<2x64x64xf32>
    %cst_62 = arith.constant dense<0.000000e+00> : vector<2x64x8xf32>
    %87 = tpu.matmul %85, %74, %cst_62 {dimension_numbers = #tpu.dot_dimension_numbers<[2], [1], [1], [2], [0, 0, 0, 1, 1, 2], [0], [0]>} : vector<2x64x64xf32>, vector<2x64x8xf32>, vector<2x64x8xf32> -> vector<2x64x8xf32>
    %88 = vector.shape_cast %87 : vector<2x64x8xf32> to vector<128x8xf32>
    %89 = vector.extract_strided_slice %66 {offsets = [0, 0], sizes = [8, 32], strides = [1, 1]} : vector<32x32xf32> to vector<8x32xf32>
    %cst_63 = arith.constant dense<0.000000e+00> : vector<128x32xf32>
    %90 = tpu.matmul %88, %89, %cst_63 {dimension_numbers = #tpu.dot_dimension_numbers<[1], [0], [0], [1], [0, 0, 1, 1], [], []>} : vector<128x8xf32>, vector<8x32xf32>, vector<128x32xf32> -> vector<128x32xf32>
    %91 = arith.addf %71, %90 : vector<128x32xf32>
    %92 = vector.extract_strided_slice %63 {offsets = [0, 0, 8], sizes = [2, 64, 8], strides = [1, 1, 1]} : vector<2x64x32xf32> to vector<2x64x8xf32>
    %93 = vector.extract_strided_slice %64 {offsets = [0, 0, 8], sizes = [2, 64, 8], strides = [1, 1, 1]} : vector<2x64x32xf32> to vector<2x64x8xf32>
    %94 = vector.extract_strided_slice %65 {offsets = [0, 0, 8], sizes = [2, 64, 8], strides = [1, 1, 1]} : vector<2x64x32xf32> to vector<2x64x8xf32>
    %cst_64 = arith.constant dense<0.000000e+00> : vector<2x64x64xf32>
    %95 = tpu.matmul %92, %93, %cst_64 {dimension_numbers = #tpu.dot_dimension_numbers<[2], [2], [1], [1], [0, 0, 0, 1, 1, 1], [0], [0]>} : vector<2x64x8xf32>, vector<2x64x8xf32>, vector<2x64x64xf32> -> vector<2x64x64xf32>
    %cst_65 = arith.constant dense<0xFF800000> : vector<2x64xf32>
    %96 = vector.multi_reduction <maximumf>, %95, %cst_65 [2] : vector<2x64x64xf32> to vector<2x64xf32>
    %97 = vector.shape_cast %96 : vector<2x64xf32> to vector<2x64x1xf32>
    %98 = vector.broadcast %97 : vector<2x64x1xf32> to vector<2x64x64xf32>
    %99 = arith.subf %95, %98 : vector<2x64x64xf32>
    %100 = math.exp %99 : vector<2x64x64xf32>
    %cst_66 = arith.constant dense<0.000000e+00> : vector<2x64xf32>
    %101 = vector.multi_reduction <add>, %100, %cst_66 [2] : vector<2x64x64xf32> to vector<2x64xf32>
    %102 = vector.shape_cast %101 : vector<2x64xf32> to vector<2x64x1xf32>
    %103 = tpu.reciprocal %102 {approx = true} : vector<2x64x1xf32> -> vector<2x64x1xf32>
    %104 = vector.broadcast %103 : vector<2x64x1xf32> to vector<2x64x64xf32>
    %105 = arith.mulf %100, %104 : vector<2x64x64xf32>
    %106 = arith.addf %86, %105 : vector<2x64x64xf32>
    %cst_67 = arith.constant dense<0.000000e+00> : vector<2x64x8xf32>
    %107 = tpu.matmul %105, %94, %cst_67 {dimension_numbers = #tpu.dot_dimension_numbers<[2], [1], [1], [2], [0, 0, 0, 1, 1, 2], [0], [0]>} : vector<2x64x64xf32>, vector<2x64x8xf32>, vector<2x64x8xf32> -> vector<2x64x8xf32>
    %108 = vector.shape_cast %107 : vector<2x64x8xf32> to vector<128x8xf32>
    %109 = vector.extract_strided_slice %66 {offsets = [8, 0], sizes = [8, 32], strides = [1, 1]} : vector<32x32xf32> to vector<8x32xf32>
    %cst_68 = arith.constant dense<0.000000e+00> : vector<128x32xf32>
    %110 = tpu.matmul %108, %109, %cst_68 {dimension_numbers = #tpu.dot_dimension_numbers<[1], [0], [0], [1], [0, 0, 1, 1], [], []>} : vector<128x8xf32>, vector<8x32xf32>, vector<128x32xf32> -> vector<128x32xf32>
    %111 = arith.addf %91, %110 : vector<128x32xf32>
    %112 = vector.extract_strided_slice %63 {offsets = [0, 0, 16], sizes = [2, 64, 8], strides = [1, 1, 1]} : vector<2x64x32xf32> to vector<2x64x8xf32>
    %113 = vector.extract_strided_slice %64 {offsets = [0, 0, 16], sizes = [2, 64, 8], strides = [1, 1, 1]} : vector<2x64x32xf32> to vector<2x64x8xf32>
    %114 = vector.extract_strided_slice %65 {offsets = [0, 0, 16], sizes = [2, 64, 8], strides = [1, 1, 1]} : vector<2x64x32xf32> to vector<2x64x8xf32>
    %cst_69 = arith.constant dense<0.000000e+00> : vector<2x64x64xf32>
    %115 = tpu.matmul %112, %113, %cst_69 {dimension_numbers = #tpu.dot_dimension_numbers<[2], [2], [1], [1], [0, 0, 0, 1, 1, 1], [0], [0]>} : vector<2x64x8xf32>, vector<2x64x8xf32>, vector<2x64x64xf32> -> vector<2x64x64xf32>
    %cst_70 = arith.constant dense<0xFF800000> : vector<2x64xf32>
    %116 = vector.multi_reduction <maximumf>, %115, %cst_70 [2] : vector<2x64x64xf32> to vector<2x64xf32>
    %117 = vector.shape_cast %116 : vector<2x64xf32> to vector<2x64x1xf32>
    %118 = vector.broadcast %117 : vector<2x64x1xf32> to vector<2x64x64xf32>
    %119 = arith.subf %115, %118 : vector<2x64x64xf32>
    %120 = math.exp %119 : vector<2x64x64xf32>
    %cst_71 = arith.constant dense<0.000000e+00> : vector<2x64xf32>
    %121 = vector.multi_reduction <add>, %120, %cst_71 [2] : vector<2x64x64xf32> to vector<2x64xf32>
    %122 = vector.shape_cast %121 : vector<2x64xf32> to vector<2x64x1xf32>
    %123 = tpu.reciprocal %122 {approx = true} : vector<2x64x1xf32> -> vector<2x64x1xf32>
    %124 = vector.broadcast %123 : vector<2x64x1xf32> to vector<2x64x64xf32>
    %125 = arith.mulf %120, %124 : vector<2x64x64xf32>
    %126 = arith.addf %106, %125 : vector<2x64x64xf32>
    %cst_72 = arith.constant dense<0.000000e+00> : vector<2x64x8xf32>
    %127 = tpu.matmul %125, %114, %cst_72 {dimension_numbers = #tpu.dot_dimension_numbers<[2], [1], [1], [2], [0, 0, 0, 1, 1, 2], [0], [0]>} : vector<2x64x64xf32>, vector<2x64x8xf32>, vector<2x64x8xf32> -> vector<2x64x8xf32>
    %128 = vector.shape_cast %127 : vector<2x64x8xf32> to vector<128x8xf32>
    %129 = vector.extract_strided_slice %66 {offsets = [16, 0], sizes = [8, 32], strides = [1, 1]} : vector<32x32xf32> to vector<8x32xf32>
    %cst_73 = arith.constant dense<0.000000e+00> : vector<128x32xf32>
    %130 = tpu.matmul %128, %129, %cst_73 {dimension_numbers = #tpu.dot_dimension_numbers<[1], [0], [0], [1], [0, 0, 1, 1], [], []>} : vector<128x8xf32>, vector<8x32xf32>, vector<128x32xf32> -> vector<128x32xf32>
    %131 = arith.addf %111, %130 : vector<128x32xf32>
    %132 = vector.extract_strided_slice %63 {offsets = [0, 0, 24], sizes = [2, 64, 8], strides = [1, 1, 1]} : vector<2x64x32xf32> to vector<2x64x8xf32>
    %133 = vector.extract_strided_slice %64 {offsets = [0, 0, 24], sizes = [2, 64, 8], strides = [1, 1, 1]} : vector<2x64x32xf32> to vector<2x64x8xf32>
    %134 = vector.extract_strided_slice %65 {offsets = [0, 0, 24], sizes = [2, 64, 8], strides = [1, 1, 1]} : vector<2x64x32xf32> to vector<2x64x8xf32>
    %cst_74 = arith.constant dense<0.000000e+00> : vector<2x64x64xf32>
    %135 = tpu.matmul %132, %133, %cst_74 {dimension_numbers = #tpu.dot_dimension_numbers<[2], [2], [1], [1], [0, 0, 0, 1, 1, 1], [0], [0]>} : vector<2x64x8xf32>, vector<2x64x8xf32>, vector<2x64x64xf32> -> vector<2x64x64xf32>
    %cst_75 = arith.constant dense<0xFF800000> : vector<2x64xf32>
    %136 = vector.multi_reduction <maximumf>, %135, %cst_75 [2] : vector<2x64x64xf32> to vector<2x64xf32>
    %137 = vector.shape_cast %136 : vector<2x64xf32> to vector<2x64x1xf32>
    %138 = vector.broadcast %137 : vector<2x64x1xf32> to vector<2x64x64xf32>
    %139 = arith.subf %135, %138 : vector<2x64x64xf32>
    %140 = math.exp %139 : vector<2x64x64xf32>
    %cst_76 = arith.constant dense<0.000000e+00> : vector<2x64xf32>
    %141 = vector.multi_reduction <add>, %140, %cst_76 [2] : vector<2x64x64xf32> to vector<2x64xf32>
    %142 = vector.shape_cast %141 : vector<2x64xf32> to vector<2x64x1xf32>
    %143 = tpu.reciprocal %142 {approx = true} : vector<2x64x1xf32> -> vector<2x64x1xf32>
    %144 = vector.broadcast %143 : vector<2x64x1xf32> to vector<2x64x64xf32>
    %145 = arith.mulf %140, %144 : vector<2x64x64xf32>
    %146 = arith.addf %126, %145 : vector<2x64x64xf32>
    %cst_77 = arith.constant dense<0.000000e+00> : vector<2x64x8xf32>
    %147 = tpu.matmul %145, %134, %cst_77 {dimension_numbers = #tpu.dot_dimension_numbers<[2], [1], [1], [2], [0, 0, 0, 1, 1, 2], [0], [0]>} : vector<2x64x64xf32>, vector<2x64x8xf32>, vector<2x64x8xf32> -> vector<2x64x8xf32>
    %148 = vector.shape_cast %147 : vector<2x64x8xf32> to vector<128x8xf32>
    %149 = vector.extract_strided_slice %66 {offsets = [24, 0], sizes = [8, 32], strides = [1, 1]} : vector<32x32xf32> to vector<8x32xf32>
    %cst_78 = arith.constant dense<0.000000e+00> : vector<128x32xf32>
    %150 = tpu.matmul %148, %149, %cst_78 {dimension_numbers = #tpu.dot_dimension_numbers<[1], [0], [0], [1], [0, 0, 1, 1], [], []>} : vector<128x8xf32>, vector<8x32xf32>, vector<128x32xf32> -> vector<128x32xf32>
    %151 = arith.addf %131, %150 : vector<128x32xf32>
    %cst_79 = arith.constant 2.500000e-01 : f32
    %152 = vector.broadcast %cst_79 : f32 to vector<2x64x64xf32>
    %153 = arith.mulf %146, %152 : vector<2x64x64xf32>
    %c0_80 = arith.constant 0 : index
    %c0_81 = arith.constant 0 : index
    %154 = vector.load %arg23[%c0_80, %c0_81] : memref<128x32xf32, #tpu.memory_space<vmem>>, vector<128x32xf32>
    tpu.vector_store %arg23[%c0_80, %c0_81], %151 {strides = array<i32>} : memref<128x32xf32, #tpu.memory_space<vmem>>, vector<128x32xf32>,
    %155 = vector.shape_cast %153 : vector<2x64x64xf32> to vector<2x8x8x64xf32>
    %cst_82 = arith.constant dense<0xFF800000> : vector<2x8x64xf32>
    %156 = vector.multi_reduction <maximumf>, %155, %cst_82 [2] : vector<2x8x8x64xf32> to vector<2x8x64xf32>
    %157 = vector.shape_cast %156 : vector<2x8x64xf32> to vector<2x8x1x64xf32>
    %158 = vector.broadcast %157 : vector<2x8x1x64xf32> to vector<2x8x8x64xf32>
    %159 = arith.subf %155, %158 : vector<2x8x8x64xf32>
    %160 = math.exp %159 : vector<2x8x8x64xf32>
    %cst_83 = arith.constant dense<0.000000e+00> : vector<2x8x64xf32>
    %161 = vector.multi_reduction <add>, %160, %cst_83 [2] : vector<2x8x8x64xf32> to vector<2x8x64xf32>
    %162 = vector.shape_cast %161 : vector<2x8x64xf32> to vector<2x8x1x64xf32>
    %163 = tpu.reciprocal %162 {approx = true} : vector<2x8x1x64xf32> -> vector<2x8x1x64xf32>
    %164 = vector.broadcast %163 : vector<2x8x1x64xf32> to vector<2x8x8x64xf32>
    %165 = arith.mulf %160, %164 : vector<2x8x8x64xf32>
    %cst_84 = arith.constant dense<0xFF800000> : vector<2x8x64xf32>
    %166 = vector.multi_reduction <maximumf>, %155, %cst_84 [1] : vector<2x8x8x64xf32> to vector<2x8x64xf32>
    %167 = vector.shape_cast %166 : vector<2x8x64xf32> to vector<2x1x8x64xf32>
    %168 = vector.broadcast %167 : vector<2x1x8x64xf32> to vector<2x8x8x64xf32>
    %169 = arith.subf %155, %168 : vector<2x8x8x64xf32>
    %170 = math.exp %169 : vector<2x8x8x64xf32>
    %cst_85 = arith.constant dense<0.000000e+00> : vector<2x8x64xf32>
    %171 = vector.multi_reduction <add>, %170, %cst_85 [1] : vector<2x8x8x64xf32> to vector<2x8x64xf32>
    %172 = vector.shape_cast %171 : vector<2x8x64xf32> to vector<2x1x8x64xf32>
    %173 = tpu.reciprocal %172 {approx = true} : vector<2x1x8x64xf32> -> vector<2x1x8x64xf32>
    %174 = vector.broadcast %173 : vector<2x1x8x64xf32> to vector<2x8x8x64xf32>
    %175 = arith.mulf %170, %174 : vector<2x8x8x64xf32>
    %176 = arith.mulf %165, %175 : vector<2x8x8x64xf32>
    %177 = vector.shape_cast %176 : vector<2x8x8x64xf32> to vector<2x64x64xf32>
    %178 = tpu.concatenate %153, %177 in 2 : vector<2x64x64xf32>, vector<2x64x64xf32> -> vector<2x64x128xf32>
    %c0_86 = arith.constant 0 : index
    %c0_87 = arith.constant 0 : index
    %c0_88 = arith.constant 0 : index
    %179 = vector.load %arg24[%c0_86, %c0_87, %c0_88] : memref<2x64x128xf32, #tpu.memory_space<vmem>>, vector<2x64x128xf32>
    tpu.vector_store %arg24[%c0_86, %c0_87, %c0_88], %178 {strides = array<i32>} : memref<2x64x128xf32, #tpu.memory_space<vmem>>, vector<2x64x128xf32>,
    return
  }
  func.func @transform_0(%arg0: i32) -> (i32, i32, i32) {
    %c0_i32 = arith.constant 0 : i32
    %c0_i32_0 = arith.constant 0 : i32
    %c0_i32_1 = arith.constant 0 : i32
    %c0_i32_2 = arith.constant 0 : i32
    return %c0_i32, %c0_i32_0, %c0_i32_1 : i32, i32, i32
  }
  func.func @transform_1(%arg0: i32) -> (i32, i32, i32) {
    %c0_i32 = arith.constant 0 : i32
    %c0_i32_0 = arith.constant 0 : i32
    %c0_i32_1 = arith.constant 0 : i32
    %c0_i32_2 = arith.constant 0 : i32
    return %c0_i32, %c0_i32_0, %c0_i32_1 : i32, i32, i32
  }
  func.func @transform_2(%arg0: i32) -> (i32, i32, i32) {
    %c0_i32 = arith.constant 0 : i32
    %c0_i32_0 = arith.constant 0 : i32
    %c0_i32_1 = arith.constant 0 : i32
    %c0_i32_2 = arith.constant 0 : i32
    return %c0_i32, %c0_i32_0, %c0_i32_1 : i32, i32, i32
  }
  func.func @transform_3(%arg0: i32) -> (i32, i32) {
    %c0_i32 = arith.constant 0 : i32
    %c0_i32_0 = arith.constant 0 : i32
    %c0_i32_1 = arith.constant 0 : i32
    return %c0_i32, %c0_i32_0 : i32, i32
  }
  func.func @transform_4(%arg0: i32) -> (i32, i32) {
    %c0_i32 = arith.constant 0 : i32
    %c0_i32_0 = arith.constant 0 : i32
    %c0_i32_1 = arith.constant 0 : i32
    return %c0_i32, %c0_i32_0 : i32, i32
  }
  func.func @transform_5(%arg0: i32) -> (i32, i32) {
    %c0_i32 = arith.constant 0 : i32
    %c0_i32_0 = arith.constant 0 : i32
    %c0_i32_1 = arith.constant 0 : i32
    return %c0_i32, %c0_i32_0 : i32, i32
  }
  func.func @transform_6(%arg0: i32) -> (i32, i32) {
    %c0_i32 = arith.constant 0 : i32
    %c0_i32_0 = arith.constant 0 : i32
    %c0_i32_1 = arith.constant 0 : i32
    return %c0_i32, %c0_i32_0 : i32, i32
  }
  func.func @transform_7(%arg0: i32) -> (i32, i32) {
    %c0_i32 = arith.constant 0 : i32
    %c0_i32_0 = arith.constant 0 : i32
    %c0_i32_1 = arith.constant 0 : i32
    return %c0_i32, %c0_i32_0 : i32, i32
  }
  func.func @transform_8(%arg0: i32) -> (i32, i32) {
    %c0_i32 = arith.constant 0 : i32
    %c0_i32_0 = arith.constant 0 : i32
    %c0_i32_1 = arith.constant 0 : i32
    return %c0_i32, %c0_i32_0 : i32, i32
  }
  func.func @transform_9(%arg0: i32) -> (i32, i32) {
    %c0_i32 = arith.constant 0 : i32
    %c0_i32_0 = arith.constant 0 : i32
    %c0_i32_1 = arith.constant 0 : i32
    return %c0_i32, %c0_i32_0 : i32, i32
  }
  func.func @transform_10(%arg0: i32) -> (i32, i32) {
    %c0_i32 = arith.constant 0 : i32
    %c0_i32_0 = arith.constant 0 : i32
    %c0_i32_1 = arith.constant 0 : i32
    return %c0_i32, %c0_i32_0 : i32, i32
  }
  func.func @transform_11(%arg0: i32) -> (i32, i32) {
    %c0_i32 = arith.constant 0 : i32
    %c0_i32_0 = arith.constant 0 : i32
    %c0_i32_1 = arith.constant 0 : i32
    return %c0_i32, %c0_i32_0 : i32, i32
  }
  func.func @transform_12(%arg0: i32) -> (i32, i32) {
    %c0_i32 = arith.constant 0 : i32
    %c0_i32_0 = arith.constant 0 : i32
    %c0_i32_1 = arith.constant 0 : i32
    return %c0_i32, %c0_i32_0 : i32, i32
  }
  func.func @transform_13(%arg0: i32) -> (i32, i32) {
    %c0_i32 = arith.constant 0 : i32
    %c0_i32_0 = arith.constant 0 : i32
    %c0_i32_1 = arith.constant 0 : i32
    return %c0_i32, %c0_i32_0 : i32, i32
  }
  func.func @transform_14(%arg0: i32) -> (i32, i32) {
    %c0_i32 = arith.constant 0 : i32
    %c0_i32_0 = arith.constant 0 : i32
    %c0_i32_1 = arith.constant 0 : i32
    return %c0_i32, %c0_i32_0 : i32, i32
  }
  func.func @transform_15(%arg0: i32) -> (i32, i32) {
    %c0_i32 = arith.constant 0 : i32
    %c0_i32_0 = arith.constant 0 : i32
    %c0_i32_1 = arith.constant 0 : i32
    return %c0_i32, %c0_i32_0 : i32, i32
  }
  func.func @transform_16(%arg0: i32) -> (i32, i32) {
    %c0_i32 = arith.constant 0 : i32
    %c0_i32_0 = arith.constant 0 : i32
    %c0_i32_1 = arith.constant 0 : i32
    return %c0_i32, %c0_i32_0 : i32, i32
  }
  func.func @transform_17(%arg0: i32) -> (i32, i32) {
    %c0_i32 = arith.constant 0 : i32
    %c0_i32_0 = arith.constant 0 : i32
    %c0_i32_1 = arith.constant 0 : i32
    return %c0_i32, %c0_i32_0 : i32, i32
  }
  func.func @transform_18(%arg0: i32) -> (i32, i32) {
    %c0_i32 = arith.constant 0 : i32
    %c0_i32_0 = arith.constant 0 : i32
    %c0_i32_1 = arith.constant 0 : i32
    return %c0_i32, %c0_i32_0 : i32, i32
  }
  func.func @transform_19(%arg0: i32) -> (i32, i32) {
    %c0_i32 = arith.constant 0 : i32
    %c0_i32_0 = arith.constant 0 : i32
    %c0_i32_1 = arith.constant 0 : i32
    return %c0_i32, %c0_i32_0 : i32, i32
  }
  func.func @transform_20(%arg0: i32) -> (i32, i32) {
    %c0_i32 = arith.constant 0 : i32
    %c0_i32_0 = arith.constant 0 : i32
    %c0_i32_1 = arith.constant 0 : i32
    return %c0_i32, %c0_i32_0 : i32, i32
  }
  func.func @transform_21(%arg0: i32) -> (i32, i32) {
    %c0_i32 = arith.constant 0 : i32
    %c0_i32_0 = arith.constant 0 : i32
    %c0_i32_1 = arith.constant 0 : i32
    return %c0_i32, %c0_i32_0 : i32, i32
  }
  func.func @transform_22(%arg0: i32) -> (i32, i32) {
    %c0_i32 = arith.constant 0 : i32
    %c0_i32_0 = arith.constant 0 : i32
    %c0_i32_1 = arith.constant 0 : i32
    return %c0_i32, %c0_i32_0 : i32, i32
  }
  func.func @transform_23(%arg0: i32) -> (i32, i32, i32) {
    %c0_i32 = arith.constant 0 : i32
    %c0_i32_0 = arith.constant 0 : i32
    %c0_i32_1 = arith.constant 0 : i32
    %c0_i32_2 = arith.constant 0 : i32
    return %c0_i32, %c0_i32_0, %c0_i32_1 : i32, i32, i32
  }
}

</mosaic_0001>

<llo_original>
// kernel: mul.43
$region0: #{mul.43}
  %s0 = inlined_call_operand.vmem [shape: f32[8,8], index: 0, kind: input, shape index: {}]
  %s1 = inlined_call_operand.vmem [shape: f32[64], index: 1, kind: output, shape index: {}]
  $region1: #{mul.43} parent=0
    #allocation0 [shape = 'u8[4096]{0}', space=vmem, size = 0x1000, scoped, tag = 'scoped mem for output reshape']
    %v2 = vld [vmem:[%s0] sm:$0x1]
    %vm3 = vcmask 64512
    %4 = vst.msk [vmem:[#allocation0] sm:$0x1] %vm3, %v2
    %s5 = scalar_lea.vmem %s0, 7
    %v6 = vld [vmem:[%s5] sm:$0x1]
    %7 = vrot.lane.b32.xlu0 %v6, 56
    %v8 = vpop.permute.xlu0 %7
    %vm9 = vcmask 523712
    %10 = vst.msk [vmem:[#allocation0] sm:$0x1] %vm9, %v8
    %s11 = scalar_lea.vmem %s0, 6
    %v12 = vld [vmem:[%s11] sm:$0x1]
    %13 = vrot.lane.b32.xlu0 %v12, 48
    %v14 = vpop.permute.xlu0 %13
    %vm15 = vcmask 458112
    %16 = vst.msk [vmem:[#allocation0] sm:$0x1] %vm15, %v14
    %s17 = scalar_lea.vmem %s0, 5
    %v18 = vld [vmem:[%s17] sm:$0x1]
    %19 = vrot.lane.b32.xlu0 %v18, 40
    %v20 = vpop.permute.xlu0 %19
    %vm21 = vcmask 392512
    %22 = vst.msk [vmem:[#allocation0] sm:$0x1] %vm21, %v20
    %s23 = scalar_lea.vmem %s0, 4
    %v24 = vld [vmem:[%s23] sm:$0x1]
    %25 = vrot.lane.b32.xlu0 %v24, 32
    %v26 = vpop.permute.xlu0 %25
    %vm27 = vcmask 326912
    %28 = vst.msk [vmem:[#allocation0] sm:$0x1] %vm27, %v26
    %s29 = scalar_lea.vmem %s0, 3
    %v30 = vld [vmem:[%s29] sm:$0x1]
    %31 = vrot.lane.b32.xlu0 %v30, 24
    %v32 = vpop.permute.xlu0 %31
    %vm33 = vcmask 261312
    %34 = vst.msk [vmem:[#allocation0] sm:$0x1] %vm33, %v32
    %s35 = scalar_lea.vmem %s0, 2
    %v36 = vld [vmem:[%s35] sm:$0x1]
    %37 = vrot.lane.b32.xlu0 %v36, 16
    %v38 = vpop.permute.xlu0 %37
    %vm39 = vcmask 195712
    %40 = vst.msk [vmem:[#allocation0] sm:$0x1] %vm39, %v38
    %s41 = scalar_lea.vmem %s0, 1
    %v42 = vld [vmem:[%s41] sm:$0x1]
    %43 = vrot.lane.b32.xlu0 %v42, 8
    %v44 = vpop.permute.xlu0 %43
    %vm45 = vcmask 130112
    %46 = vst.msk [vmem:[#allocation0] sm:$0x1] %vm45, %v44
    %s48 = ssub.s32 2, 1
    %v49 = vld [vmem:[#allocation0] sm:%s48]
    %s51 = ssub.s32 2, 1
    %52 = vst [vmem:[%s1] sm:%s51] %v49

// kernel: feature_forecaster_forward.1
$region0: #{feature_forecaster_forward.1}
  #allocation0 [shape = 'u32[]', space=smem, size = 0x4, offset = 0x4, fixed_abs, tag = 'smem constant byte address 0x4 - core index']
  #allocation1 [shape = 'u32[72,128]{1,0:T(1,128)}', space=vmem, size = 0x9000, scoped, tag = 'internal scratch']
  %s0 = inlined_call_operand.vmem [shape: f32[2,64,16], index: 0, kind: input, shape index: {}]
  %s1 = inlined_call_operand.vmem [shape: f32[2,64,24], index: 1, kind: input, shape index: {}]
  %s2 = inlined_call_operand.vmem [shape: f32[2,64,32], index: 2, kind: input, shape index: {}]
  %s3 = inlined_call_operand.vmem [shape: f32[64,16], index: 3, kind: input, shape index: {}]
  %s4 = inlined_call_operand.vmem [shape: f32[64,24], index: 4, kind: input, shape index: {}]
  %s5 = inlined_call_operand.vmem [shape: f32[64,32], index: 5, kind: input, shape index: {}]
  %s6 = inlined_call_operand.vmem [shape: f32[16,16], index: 6, kind: input, shape index: {}]
  %s7 = inlined_call_operand.vmem [shape: f32[1,16], index: 7, kind: input, shape index: {}]
  %s8 = inlined_call_operand.vmem [shape: f32[16,32], index: 8, kind: input, shape index: {}]
  %s9 = inlined_call_operand.vmem [shape: f32[1,32], index: 9, kind: input, shape index: {}]
  %s10 = inlined_call_operand.vmem [shape: f32[24,24], index: 10, kind: input, shape index: {}]
  %s11 = inlined_call_operand.vmem [shape: f32[1,24], index: 11, kind: input, shape index: {}]
  %s12 = inlined_call_operand.vmem [shape: f32[24,32], index: 12, kind: input, shape index: {}]
  %s13 = inlined_call_operand.vmem [shape: f32[1,32], index: 13, kind: input, shape index: {}]
  %s14 = inlined_call_operand.vmem [shape: f32[32,32], index: 14, kind: input, shape index: {}]
  %s15 = inlined_call_operand.vmem [shape: f32[1,32], index: 15, kind: input, shape index: {}]
  %s16 = inlined_call_operand.vmem [shape: f32[32,32], index: 16, kind: input, shape index: {}]
  %s17 = inlined_call_operand.vmem [shape: f32[1,32], index: 17, kind: input, shape index: {}]
  %s18 = inlined_call_operand.vmem [shape: f32[32,32], index: 18, kind: input, shape index: {}]
  %s19 = inlined_call_operand.vmem [shape: f32[1,32], index: 19, kind: input, shape index: {}]
  %s20 = inlined_call_operand.vmem [shape: f32[32,32], index: 20, kind: input, shape index: {}]
  %s21 = inlined_call_operand.vmem [shape: f32[1,32], index: 21, kind: input, shape index: {}]
  %s22 = inlined_call_operand.hbm [shape: f32[128,32], index: 22, kind: output, shape index: {0}]
  %s23 = inlined_call_operand.vmem [shape: f32[2,64,128], index: 23, kind: output, shape index: {1}]
  %24 = xla_tuple %s22, %s23
  %s25 = sld [smem:[#allocation0]]
  $region106: #{feature_forecaster_forward.1} parent=0
    _
  %s27 = ssub.s32 1, %s25
  %s28 = scalar_select 0, %s27, %s25
  $region1: #{feature_forecaster_forward.1} parent=0
    #allocation2 [shape = 'u8[65536]{0}', space=vmem, size = 0x10000, scoped, tag = 'output window, operand 0, single buffered']
    #allocation3 [shape = 's32[1]{0}', space=sflag, size = 0x4, scoped, tag = 'scoped memory for feature_forecaster_forward.1']
    %29 = vsyncpa [#allocation3], 0
    // Predicated region
    $region2: #{feature_forecaster_forward.1} parent=1 // pred_check
      _
    $region3: #{feature_forecaster_forward.1} parent=1 // pred_check_branch
      %31 = sbr.rel (0) target = $region5
    $region4: #{feature_forecaster_forward.1} parent=1 // pred_region
      _
    $region5: #{feature_forecaster_forward.1} parent=1 // pred_fallthru
      _
    // Predicated region
    $region6: #{feature_forecaster_forward.1} parent=1 // pred_check
      _
    $region7: #{feature_forecaster_forward.1} parent=1 // pred_check_branch
      %33 = sbr.rel (0) target = $region9
    $region8: #{feature_forecaster_forward.1} parent=1 // pred_region
      _
    $region9: #{feature_forecaster_forward.1} parent=1 // pred_fallthru
      _
    // Predicated region
    $region10: #{feature_forecaster_forward.1} parent=1 // pred_check
      _
    $region11: #{feature_forecaster_forward.1} parent=1 // pred_check_branch
      %35 = sbr.rel (0) target = $region13
    $region12: #{feature_forecaster_forward.1} parent=1 // pred_region
      _
    $region13: #{feature_forecaster_forward.1} parent=1 // pred_fallthru
      _
    // Predicated region
    $region14: #{feature_forecaster_forward.1} parent=1 // pred_check
      _
    $region15: #{feature_forecaster_forward.1} parent=1 // pred_check_branch
      %37 = sbr.rel (0) target = $region17
    $region16: #{feature_forecaster_forward.1} parent=1 // pred_region
      _
    $region17: #{feature_forecaster_forward.1} parent=1 // pred_fallthru
      _
    // Predicated region
    $region18: #{feature_forecaster_forward.1} parent=1 // pred_check
      _
    $region19: #{feature_forecaster_forward.1} parent=1 // pred_check_branch
      %39 = sbr.rel (0) target = $region21
    $region20: #{feature_forecaster_forward.1} parent=1 // pred_region
      _
    $region21: #{feature_forecaster_forward.1} parent=1 // pred_fallthru
      _
    // Predicated region
    $region22: #{feature_forecaster_forward.1} parent=1 // pred_check
      _
    $region23: #{feature_forecaster_forward.1} parent=1 // pred_check_branch
      %41 = sbr.rel (0) target = $region25
    $region24: #{feature_forecaster_forward.1} parent=1 // pred_region
      _
    $region25: #{feature_forecaster_forward.1} parent=1 // pred_fallthru
      _
    // Predicated region
    $region26: #{feature_forecaster_forward.1} parent=1 // pred_check
      _
    $region27: #{feature_forecaster_forward.1} parent=1 // pred_check_branch
      %43 = sbr.rel (0) target = $region29
    $region28: #{feature_forecaster_forward.1} parent=1 // pred_region
      _
    $region29: #{feature_forecaster_forward.1} parent=1 // pred_fallthru
      _
    // Predicated region
    $region30: #{feature_forecaster_forward.1} parent=1 // pred_check
      _
    $region31: #{feature_forecaster_forward.1} parent=1 // pred_check_branch
      %45 = sbr.rel (0) target = $region33
    $region32: #{feature_forecaster_forward.1} parent=1 // pred_region
      _
    $region33: #{feature_forecaster_forward.1} parent=1 // pred_fallthru
      _
    // Predicated region
    $region34: #{feature_forecaster_forward.1} parent=1 // pred_check
      _
    $region35: #{feature_forecaster_forward.1} parent=1 // pred_check_branch
      %47 = sbr.rel (0) target = $region37
    $region36: #{feature_forecaster_forward.1} parent=1 // pred_region
      _
    $region37: #{feature_forecaster_forward.1} parent=1 // pred_fallthru
      _
    // Predicated region
    $region38: #{feature_forecaster_forward.1} parent=1 // pred_check
      _
    $region39: #{feature_forecaster_forward.1} parent=1 // pred_check_branch
      %49 = sbr.rel (0) target = $region41
    $region40: #{feature_forecaster_forward.1} parent=1 // pred_region
      _
    $region41: #{feature_forecaster_forward.1} parent=1 // pred_fallthru
      _
    // Predicated region
    $region42: #{feature_forecaster_forward.1} parent=1 // pred_check
      _
    $region43: #{feature_forecaster_forward.1} parent=1 // pred_check_branch
      %51 = sbr.rel (0) target = $region45
    $region44: #{feature_forecaster_forward.1} parent=1 // pred_region
      _
    $region45: #{feature_forecaster_forward.1} parent=1 // pred_fallthru
      _
    // Predicated region
    $region46: #{feature_forecaster_forward.1} parent=1 // pred_check
      _
    $region47: #{feature_forecaster_forward.1} parent=1 // pred_check_branch
      %53 = sbr.rel (0) target = $region49
    $region48: #{feature_forecaster_forward.1} parent=1 // pred_region
      _
    $region49: #{feature_forecaster_forward.1} parent=1 // pred_fallthru
      _
    // Predicated region
    $region50: #{feature_forecaster_forward.1} parent=1 // pred_check
      _
    $region51: #{feature_forecaster_forward.1} parent=1 // pred_check_branch
      %55 = sbr.rel (0) target = $region53
    $region52: #{feature_forecaster_forward.1} parent=1 // pred_region
      _
    $region53: #{feature_forecaster_forward.1} parent=1 // pred_fallthru
      _
    // Predicated region
    $region54: #{feature_forecaster_forward.1} parent=1 // pred_check
      _
    $region55: #{feature_forecaster_forward.1} parent=1 // pred_check_branch
      %57 = sbr.rel (0) target = $region57
    $region56: #{feature_forecaster_forward.1} parent=1 // pred_region
      _
    $region57: #{feature_forecaster_forward.1} parent=1 // pred_fallthru
      _
    // Predicated region
    $region58: #{feature_forecaster_forward.1} parent=1 // pred_check
      _
    $region59: #{feature_forecaster_forward.1} parent=1 // pred_check_branch
      %59 = sbr.rel (0) target = $region61
    $region60: #{feature_forecaster_forward.1} parent=1 // pred_region
      _
    $region61: #{feature_forecaster_forward.1} parent=1 // pred_fallthru
      _
    // Predicated region
    $region62: #{feature_forecaster_forward.1} parent=1 // pred_check
      _
    $region63: #{feature_forecaster_forward.1} parent=1 // pred_check_branch
      %61 = sbr.rel (0) target = $region65
    $region64: #{feature_forecaster_forward.1} parent=1 // pred_region
      _
    $region65: #{feature_forecaster_forward.1} parent=1 // pred_fallthru
      _
    // Predicated region
    $region66: #{feature_forecaster_forward.1} parent=1 // pred_check
      _
    $region67: #{feature_forecaster_forward.1} parent=1 // pred_check_branch
      %63 = sbr.rel (0) target = $region69
    $region68: #{feature_forecaster_forward.1} parent=1 // pred_region
      _
    $region69: #{feature_forecaster_forward.1} parent=1 // pred_fallthru
      _
    // Predicated region
    $region70: #{feature_forecaster_forward.1} parent=1 // pred_check
      _
    $region71: #{feature_forecaster_forward.1} parent=1 // pred_check_branch
      %65 = sbr.rel (0) target = $region73
    $region72: #{feature_forecaster_forward.1} parent=1 // pred_region
      _
    $region73: #{feature_forecaster_forward.1} parent=1 // pred_fallthru
      _
    // Predicated region
    $region74: #{feature_forecaster_forward.1} parent=1 // pred_check
      _
    $region75: #{feature_forecaster_forward.1} parent=1 // pred_check_branch
      %67 = sbr.rel (0) target = $region77
    $region76: #{feature_forecaster_forward.1} parent=1 // pred_region
      _
    $region77: #{feature_forecaster_forward.1} parent=1 // pred_fallthru
      _
    // Predicated region
    $region78: #{feature_forecaster_forward.1} parent=1 // pred_check
      _
    $region79: #{feature_forecaster_forward.1} parent=1 // pred_check_branch
      %69 = sbr.rel (0) target = $region81
    $region80: #{feature_forecaster_forward.1} parent=1 // pred_region
      _
    $region81: #{feature_forecaster_forward.1} parent=1 // pred_fallthru
      _
    // Predicated region
    $region82: #{feature_forecaster_forward.1} parent=1 // pred_check
      _
    $region83: #{feature_forecaster_forward.1} parent=1 // pred_check_branch
      %71 = sbr.rel (0) target = $region85
    $region84: #{feature_forecaster_forward.1} parent=1 // pred_region
      _
    $region85: #{feature_forecaster_forward.1} parent=1 // pred_fallthru
      _
    // Predicated region
    $region86: #{feature_forecaster_forward.1} parent=1 // pred_check
      _
    $region87: #{feature_forecaster_forward.1} parent=1 // pred_check_branch
      %73 = sbr.rel (0) target = $region89
    $region88: #{feature_forecaster_forward.1} parent=1 // pred_region
      _
    $region89: #{feature_forecaster_forward.1} parent=1 // pred_fallthru
      _
    %v74 = vld [vmem:[%s0] sm:$0xff]
    %v75 = vld [vmem:[%s0 + $0x8] sm:$0xff]
    %v76 = vld [vmem:[%s0 + $0x10] sm:$0xff]
    %v77 = vld [vmem:[%s0 + $0x18] sm:$0xff]
    %v78 = vld [vmem:[%s0 + $0x20] sm:$0xff]
    %v79 = vld [vmem:[%s0 + $0x28] sm:$0xff]
    %v80 = vld [vmem:[%s0 + $0x30] sm:$0xff]
    %v81 = vld [vmem:[%s0 + $0x38] sm:$0xff]
    %v82 = vld [vmem:[%s0 + $0x40] sm:$0xff]
    %v83 = vld [vmem:[%s0 + $0x48] sm:$0xff]
    %v84 = vld [vmem:[%s0 + $0x50] sm:$0xff]
    %v85 = vld [vmem:[%s0 + $0x58] sm:$0xff]
    %v86 = vld [vmem:[%s0 + $0x60] sm:$0xff]
    %v87 = vld [vmem:[%s0 + $0x68] sm:$0xff]
    %v88 = vld [vmem:[%s0 + $0x70] sm:$0xff]
    %v89 = vld [vmem:[%s0 + $0x78] sm:$0xff]
    %v90 = vld [vmem:[%s3] sm:$0xff]
    %v91 = vld [vmem:[%s3 + $0x8] sm:$0xff]
    %v92 = vld [vmem:[%s3 + $0x10] sm:$0xff]
    %v93 = vld [vmem:[%s3 + $0x18] sm:$0xff]
    %v94 = vld [vmem:[%s3 + $0x20] sm:$0xff]
    %v95 = vld [vmem:[%s3 + $0x28] sm:$0xff]
    %v96 = vld [vmem:[%s3 + $0x30] sm:$0xff]
    %v97 = vld [vmem:[%s3 + $0x38] sm:$0xff]
    %v98 = vadd.f32 %v74, %v90
    %v99 = vadd.f32 %v75, %v91
    %v100 = vadd.f32 %v76, %v92
    %v101 = vadd.f32 %v77, %v93
    %v102 = vadd.f32 %v78, %v94
    %v103 = vadd.f32 %v79, %v95
    %v104 = vadd.f32 %v80, %v96
    %v105 = vadd.f32 %v81, %v97
    %v106 = vadd.f32 %v82, %v90
    %v107 = vadd.f32 %v83, %v91
    %v108 = vadd.f32 %v84, %v92
    %v109 = vadd.f32 %v85, %v93
    %v110 = vadd.f32 %v86, %v94
    %v111 = vadd.f32 %v87, %v95
    %v112 = vadd.f32 %v88, %v96
    %v113 = vadd.f32 %v89, %v97
    %v114 = vld [vmem:[%s6] sm:$0xff]
    %v115 = vld [vmem:[%s6 + $0x8] sm:$0xff]
    %v116 = vld [vmem:[%s7] sm:$0x1]
    %v118 = vperm.slane %v116, 0
    %vm120 = vcmask 130048
    %v122 = vsel %vm120, %v98, 0
    %v125 = vsel %vm120, %v99, 0
    %v128 = vsel %vm120, %v100, 0
    %v131 = vsel %vm120, %v101, 0
    %v134 = vsel %vm120, %v102, 0
    %v137 = vsel %vm120, %v103, 0
    %v140 = vsel %vm120, %v104, 0
    %v143 = vsel %vm120, %v105, 0
    %v146 = vsel %vm120, %v106, 0
    %v149 = vsel %vm120, %v107, 0
    %v152 = vsel %vm120, %v108, 0
    %v155 = vsel %vm120, %v109, 0
    %v158 = vsel %vm120, %v110, 0
    %v161 = vsel %vm120, %v111, 0
    %v164 = vsel %vm120, %v112, 0
    %v167 = vsel %vm120, %v113, 0
    %169 = vmatpush.msra.mxu0 0.0
    %170 = vmatpush.msra.mxu0 0.0
    %171 = vmatpush.msra.mxu0 0.0
    %172 = vmatpush.msra.mxu0 0.0
    %173 = vmatpush.msra.mxu0 0.0
    %174 = vmatpush.msra.mxu0 0.0
    %175 = vmatpush.msra.mxu0 0.0
    %176 = vmatpush.msra.mxu0 0.0
    %177 = vmatpush.msra.mxu0 0.0
    %178 = vmatpush.msra.mxu0 0.0
    %179 = vmatpush.msra.mxu0 0.0
    %180 = vmatpush.msra.mxu0 0.0
    %181 = vmatpush.msra.mxu0 0.0
    %182 = vmatpush.msra.mxu0 0.0
    %183 = vmatpush.msra.mxu0 %v115
    %184 = vmatpush.msra.mxu0 %v114
    %185 = vmatmul.f32.gmra.mxu0 %v122
    %v186 = vpop.f32.mrf.mxu0
    %v187 = vadd.f32 %v118, %v186
    %188 = vmatmul.f32.gmra.mxu0 %v125
    %v189 = vpop.f32.mrf.mxu0
    %v190 = vadd.f32 %v118, %v189
    %191 = vmatmul.f32.gmra.mxu0 %v128
    %v192 = vpop.f32.mrf.mxu0
    %v193 = vadd.f32 %v118, %v192
    %194 = vmatmul.f32.gmra.mxu0 %v131
    %v195 = vpop.f32.mrf.mxu0
    %v196 = vadd.f32 %v118, %v195
    %197 = vmatmul.f32.gmra.mxu0 %v134
    %v198 = vpop.f32.mrf.mxu0
    %v199 = vadd.f32 %v118, %v198
    %200 = vmatmul.f32.gmra.mxu0 %v137
    %v201 = vpop.f32.mrf.mxu0
    %v202 = vadd.f32 %v118, %v201
    %203 = vmatmul.f32.gmra.mxu0 %v140
    %v204 = vpop.f32.mrf.mxu0
    %v205 = vadd.f32 %v118, %v204
    %206 = vmatmul.f32.gmra.mxu0 %v143
    %v207 = vpop.f32.mrf.mxu0
    %v208 = vadd.f32 %v118, %v207
    %209 = vmatmul.f32.gmra.mxu0 %v146
    %v210 = vpop.f32.mrf.mxu0
    %v211 = vadd.f32 %v118, %v210
    %212 = vmatmul.f32.gmra.mxu0 %v149
    %v213 = vpop.f32.mrf.mxu0
    %v214 = vadd.f32 %v118, %v213
    %215 = vmatmul.f32.gmra.mxu0 %v152
    %v216 = vpop.f32.mrf.mxu0
    %v217 = vadd.f32 %v118, %v216
    %218 = vmatmul.f32.gmra.mxu0 %v155
    %v219 = vpop.f32.mrf.mxu0
    %v220 = vadd.f32 %v118, %v219
    %221 = vmatmul.f32.gmra.mxu0 %v158
    %v222 = vpop.f32.mrf.mxu0
    %v223 = vadd.f32 %v118, %v222
    %224 = vmatmul.f32.gmra.mxu0 %v161
    %v225 = vpop.f32.mrf.mxu0
    %v226 = vadd.f32 %v118, %v225
    %227 = vmatmul.f32.gmra.mxu0 %v164
    %v228 = vpop.f32.mrf.mxu0
    %v229 = vadd.f32 %v118, %v228
    %230 = vmatmul.f32.gmra.mxu0 %v167
    %v231 = vpop.f32.mrf.mxu0
    %v232 = vadd.f32 %v118, %v231
    %233 = vdwg.mxu0
    %v234 = vmax.f32 %v187, 0.0
    %v235 = vmax.f32 %v190, 0.0
    %v236 = vmax.f32 %v193, 0.0
    %v237 = vmax.f32 %v196, 0.0
    %v238 = vmax.f32 %v199, 0.0
    %v239 = vmax.f32 %v202, 0.0
    %v240 = vmax.f32 %v205, 0.0
    %v241 = vmax.f32 %v208, 0.0
    %v242 = vmax.f32 %v211, 0.0
    %v243 = vmax.f32 %v214, 0.0
    %v244 = vmax.f32 %v217, 0.0
    %v245 = vmax.f32 %v220, 0.0
    %v246 = vmax.f32 %v223, 0.0
    %v247 = vmax.f32 %v226, 0.0
    %v248 = vmax.f32 %v229, 0.0
    %v249 = vmax.f32 %v232, 0.0
    %v250 = vld [vmem:[%s8] sm:$0xff]
    %v251 = vld [vmem:[%s8 + $0x8] sm:$0xff]
    %v252 = vld [vmem:[%s9] sm:$0x1]
    %v254 = vperm.slane %v252, 0
    %v257 = vsel %vm120, %v234, 0
    %v260 = vsel %vm120, %v235, 0
    %v263 = vsel %vm120, %v236, 0
    %v266 = vsel %vm120, %v237, 0
    %v269 = vsel %vm120, %v238, 0
    %v272 = vsel %vm120, %v239, 0
    %v275 = vsel %vm120, %v240, 0
    %v278 = vsel %vm120, %v241, 0
    %v281 = vsel %vm120, %v242, 0
    %v284 = vsel %vm120, %v243, 0
    %v287 = vsel %vm120, %v244, 0
    %v290 = vsel %vm120, %v245, 0
    %v293 = vsel %vm120, %v246, 0
    %v296 = vsel %vm120, %v247, 0
    %v299 = vsel %vm120, %v248, 0
    %v302 = vsel %vm120, %v249, 0
    %304 = vmatpush.msra.mxu0 0.0
    %305 = vmatpush.msra.mxu0 0.0
    %306 = vmatpush.msra.mxu0 0.0
    %307 = vmatpush.msra.mxu0 0.0
    %308 = vmatpush.msra.mxu0 0.0
    %309 = vmatpush.msra.mxu0 0.0
    %310 = vmatpush.msra.mxu0 0.0
    %311 = vmatpush.msra.mxu0 0.0
    %312 = vmatpush.msra.mxu0 0.0
    %313 = vmatpush.msra.mxu0 0.0
    %314 = vmatpush.msra.mxu0 0.0
    %315 = vmatpush.msra.mxu0 0.0
    %316 = vmatpush.msra.mxu0 0.0
    %317 = vmatpush.msra.mxu0 0.0
    %318 = vmatpush.msra.mxu0 %v251
    %319 = vmatpush.msra.mxu0 %v250
    %320 = vmatmul.f32.gmra.mxu0 %v257
    %v321 = vpop.f32.mrf.mxu0
    %v322 = vadd.f32 %v254, %v321
    %323 = vmatmul.f32.gmra.mxu0 %v260
    %v324 = vpop.f32.mrf.mxu0
    %v325 = vadd.f32 %v254, %v324
    %326 = vmatmul.f32.gmra.mxu0 %v263
    %v327 = vpop.f32.mrf.mxu0
    %v328 = vadd.f32 %v254, %v327
    %329 = vmatmul.f32.gmra.mxu0 %v266
    %v330 = vpop.f32.mrf.mxu0
    %v331 = vadd.f32 %v254, %v330
    %332 = vmatmul.f32.gmra.mxu0 %v269
    %v333 = vpop.f32.mrf.mxu0
    %v334 = vadd.f32 %v254, %v333
    %335 = vmatmul.f32.gmra.mxu0 %v272
    %v336 = vpop.f32.mrf.mxu0
    %v337 = vadd.f32 %v254, %v336
    %338 = vmatmul.f32.gmra.mxu0 %v275
    %v339 = vpop.f32.mrf.mxu0
    %v340 = vadd.f32 %v254, %v339
    %341 = vmatmul.f32.gmra.mxu0 %v278
    %v342 = vpop.f32.mrf.mxu0
    %v343 = vadd.f32 %v254, %v342
    %344 = vmatmul.f32.gmra.mxu0 %v281
    %v345 = vpop.f32.mrf.mxu0
    %v346 = vadd.f32 %v254, %v345
    %347 = vmatmul.f32.gmra.mxu0 %v284
    %v348 = vpop.f32.mrf.mxu0
    %v349 = vadd.f32 %v254, %v348
    %350 = vmatmul.f32.gmra.mxu0 %v287
    %v351 = vpop.f32.mrf.mxu0
    %v352 = vadd.f32 %v254, %v351
    %353 = vmatmul.f32.gmra.mxu0 %v290
    %v354 = vpop.f32.mrf.mxu0
    %v355 = vadd.f32 %v254, %v354
    %356 = vmatmul.f32.gmra.mxu0 %v293
    %v357 = vpop.f32.mrf.mxu0
    %v358 = vadd.f32 %v254, %v357
    %359 = vmatmul.f32.gmra.mxu0 %v296
    %v360 = vpop.f32.mrf.mxu0
    %v361 = vadd.f32 %v254, %v360
    %362 = vmatmul.f32.gmra.mxu0 %v299
    %v363 = vpop.f32.mrf.mxu0
    %v364 = vadd.f32 %v254, %v363
    %365 = vmatmul.f32.gmra.mxu0 %v302
    %v366 = vpop.f32.mrf.mxu0
    %v367 = vadd.f32 %v254, %v366
    %368 = vdwg.mxu0
    %v369 = vmax.f32 %v322, 0.0
    %v370 = vmax.f32 %v325, 0.0
    %v371 = vmax.f32 %v328, 0.0
    %v372 = vmax.f32 %v331, 0.0
    %v373 = vmax.f32 %v334, 0.0
    %v374 = vmax.f32 %v337, 0.0
    %v375 = vmax.f32 %v340, 0.0
    %v376 = vmax.f32 %v343, 0.0
    %v377 = vmax.f32 %v346, 0.0
    %v378 = vmax.f32 %v349, 0.0
    %v379 = vmax.f32 %v352, 0.0
    %v380 = vmax.f32 %v355, 0.0
    %v381 = vmax.f32 %v358, 0.0
    %v382 = vmax.f32 %v361, 0.0
    %v383 = vmax.f32 %v364, 0.0
    %v384 = vmax.f32 %v367, 0.0
    %v385 = vld [vmem:[%s14] sm:$0xff]
    %v386 = vld [vmem:[%s14 + $0x8] sm:$0xff]
    %v387 = vld [vmem:[%s14 + $0x10] sm:$0xff]
    %v388 = vld [vmem:[%s14 + $0x18] sm:$0xff]
    %v389 = vld [vmem:[%s15] sm:$0x1]
    %v391 = vperm.slane %v389, 0
    %vm393 = vcmask 261120
    %v395 = vsel %vm393, %v369, 0
    %v398 = vsel %vm393, %v370, 0
    %v401 = vsel %vm393, %v371, 0
    %v404 = vsel %vm393, %v372, 0
    %v407 = vsel %vm393, %v373, 0
    %v410 = vsel %vm393, %v374, 0
    %v413 = vsel %vm393, %v375, 0
    %v416 = vsel %vm393, %v376, 0
    %v419 = vsel %vm393, %v377, 0
    %v422 = vsel %vm393, %v378, 0
    %v425 = vsel %vm393, %v379, 0
    %v428 = vsel %vm393, %v380, 0
    %v431 = vsel %vm393, %v381, 0
    %v434 = vsel %vm393, %v382, 0
    %v437 = vsel %vm393, %v383, 0
    %v440 = vsel %vm393, %v384, 0
    %442 = vmatpush.msra.mxu0 0.0
    %443 = vmatpush.msra.mxu0 0.0
    %444 = vmatpush.msra.mxu0 0.0
    %445 = vmatpush.msra.mxu0 0.0
    %446 = vmatpush.msra.mxu0 0.0
    %447 = vmatpush.msra.mxu0 0.0
    %448 = vmatpush.msra.mxu0 0.0
    %449 = vmatpush.msra.mxu0 0.0
    %450 = vmatpush.msra.mxu0 0.0
    %451 = vmatpush.msra.mxu0 0.0
    %452 = vmatpush.msra.mxu0 0.0
    %453 = vmatpush.msra.mxu0 0.0
    %454 = vmatpush.msra.mxu0 %v388
    %455 = vmatpush.msra.mxu0 %v387
    %456 = vmatpush.msra.mxu0 %v386
    %457 = vmatpush.msra.mxu0 %v385
    %458 = vmatmul.f32.gmra.mxu0 %v395
    %v459 = vpop.f32.mrf.mxu0
    %v460 = vadd.f32 %v391, %v459
    %461 = vmatmul.f32.gmra.mxu0 %v398
    %v462 = vpop.f32.mrf.mxu0
    %v463 = vadd.f32 %v391, %v462
    %464 = vmatmul.f32.gmra.mxu0 %v401
    %v465 = vpop.f32.mrf.mxu0
    %v466 = vadd.f32 %v391, %v465
    %467 = vmatmul.f32.gmra.mxu0 %v404
    %v468 = vpop.f32.mrf.mxu0
    %v469 = vadd.f32 %v391, %v468
    %470 = vmatmul.f32.gmra.mxu0 %v407
    %v471 = vpop.f32.mrf.mxu0
    %v472 = vadd.f32 %v391, %v471
    %473 = vmatmul.f32.gmra.mxu0 %v410
    %v474 = vpop.f32.mrf.mxu0
    %v475 = vadd.f32 %v391, %v474
    %476 = vmatmul.f32.gmra.mxu0 %v413
    %v477 = vpop.f32.mrf.mxu0
    %v478 = vadd.f32 %v391, %v477
    %479 = vmatmul.f32.gmra.mxu0 %v416
    %v480 = vpop.f32.mrf.mxu0
    %v481 = vadd.f32 %v391, %v480
    %482 = vmatmul.f32.gmra.mxu0 %v419
    %v483 = vpop.f32.mrf.mxu0
    %v484 = vadd.f32 %v391, %v483
    %485 = vmatmul.f32.gmra.mxu0 %v422
    %v486 = vpop.f32.mrf.mxu0
    %v487 = vadd.f32 %v391, %v486
    %488 = vmatmul.f32.gmra.mxu0 %v425
    %v489 = vpop.f32.mrf.mxu0
    %v490 = vadd.f32 %v391, %v489
    %491 = vmatmul.f32.gmra.mxu0 %v428
    %v492 = vpop.f32.mrf.mxu0
    %v493 = vadd.f32 %v391, %v492
    %494 = vmatmul.f32.gmra.mxu0 %v431
    %v495 = vpop.f32.mrf.mxu0
    %v496 = vadd.f32 %v391, %v495
    %497 = vmatmul.f32.gmra.mxu0 %v434
    %v498 = vpop.f32.mrf.mxu0
    %v499 = vadd.f32 %v391, %v498
    %500 = vmatmul.f32.gmra.mxu0 %v437
    %v501 = vpop.f32.mrf.mxu0
    %v502 = vadd.f32 %v391, %v501
    %503 = vmatmul.f32.gmra.mxu0 %v440
    %v504 = vpop.f32.mrf.mxu0
    %v505 = vadd.f32 %v391, %v504
    %506 = vdwg.mxu0
    %v507 = vmul.f32 %v460, 0.35355338
    %v508 = vmul.f32 %v463, 0.35355338
    %v509 = vmul.f32 %v466, 0.35355338
    %v510 = vmul.f32 %v469, 0.35355338
    %v511 = vmul.f32 %v472, 0.35355338
    %v512 = vmul.f32 %v475, 0.35355338
    %v513 = vmul.f32 %v478, 0.35355338
    %v514 = vmul.f32 %v481, 0.35355338
    %v515 = vmul.f32 %v484, 0.35355338
    %v516 = vmul.f32 %v487, 0.35355338
    %v517 = vmul.f32 %v490, 0.35355338
    %v518 = vmul.f32 %v493, 0.35355338
    %v519 = vmul.f32 %v496, 0.35355338
    %v520 = vmul.f32 %v499, 0.35355338
    %v521 = vmul.f32 %v502, 0.35355338
    %v522 = vmul.f32 %v505, 0.35355338
    %v523 = vld [vmem:[%s1] sm:$0xff]
    %v524 = vld [vmem:[%s1 + $0x8] sm:$0xff]
    %v525 = vld [vmem:[%s1 + $0x10] sm:$0xff]
    %v526 = vld [vmem:[%s1 + $0x18] sm:$0xff]
    %v527 = vld [vmem:[%s1 + $0x20] sm:$0xff]
    %v528 = vld [vmem:[%s1 + $0x28] sm:$0xff]
    %v529 = vld [vmem:[%s1 + $0x30] sm:$0xff]
    %v530 = vld [vmem:[%s1 + $0x38] sm:$0xff]
    %v531 = vld [vmem:[%s1 + $0x40] sm:$0xff]
    %v532 = vld [vmem:[%s1 + $0x48] sm:$0xff]
    %v533 = vld [vmem:[%s1 + $0x50] sm:$0xff]
    %v534 = vld [vmem:[%s1 + $0x58] sm:$0xff]
    %v535 = vld [vmem:[%s1 + $0x60] sm:$0xff]
    %v536 = vld [vmem:[%s1 + $0x68] sm:$0xff]
    %v537 = vld [vmem:[%s1 + $0x70] sm:$0xff]
    %v538 = vld [vmem:[%s1 + $0x78] sm:$0xff]
    %v539 = vld [vmem:[%s4] sm:$0xff]
    %v540 = vld [vmem:[%s4 + $0x8] sm:$0xff]
    %v541 = vld [vmem:[%s4 + $0x10] sm:$0xff]
    %v542 = vld [vmem:[%s4 + $0x18] sm:$0xff]
    %v543 = vld [vmem:[%s4 + $0x20] sm:$0xff]
    %v544 = vld [vmem:[%s4 + $0x28] sm:$0xff]
    %v545 = vld [vmem:[%s4 + $0x30] sm:$0xff]
    %v546 = vld [vmem:[%s4 + $0x38] sm:$0xff]
    %v547 = vadd.f32 %v523, %v539
    %v548 = vadd.f32 %v524, %v540
    %v549 = vadd.f32 %v525, %v541
    %v550 = vadd.f32 %v526, %v542
    %v551 = vadd.f32 %v527, %v543
    %v552 = vadd.f32 %v528, %v544
    %v553 = vadd.f32 %v529, %v545
    %v554 = vadd.f32 %v530, %v546
    %v555 = vadd.f32 %v531, %v539
    %v556 = vadd.f32 %v532, %v540
    %v557 = vadd.f32 %v533, %v541
    %v558 = vadd.f32 %v534, %v542
    %v559 = vadd.f32 %v535, %v543
    %v560 = vadd.f32 %v536, %v544
    %v561 = vadd.f32 %v537, %v545
    %v562 = vadd.f32 %v538, %v546
    %v563 = vld [vmem:[%s10] sm:$0xff]
    %v564 = vld [vmem:[%s10 + $0x8] sm:$0xff]
    %v565 = vld [vmem:[%s10 + $0x10] sm:$0xff]
    %v566 = vld [vmem:[%s11] sm:$0x1]
    %v568 = vperm.slane %v566, 0
    %vm570 = vcmask 195584
    %v572 = vsel %vm570, %v547, 0
    %v575 = vsel %vm570, %v548, 0
    %v578 = vsel %vm570, %v549, 0
    %v581 = vsel %vm570, %v550, 0
    %v584 = vsel %vm570, %v551, 0
    %v587 = vsel %vm570, %v552, 0
    %v590 = vsel %vm570, %v553, 0
    %v593 = vsel %vm570, %v554, 0
    %v596 = vsel %vm570, %v555, 0
    %v599 = vsel %vm570, %v556, 0
    %v602 = vsel %vm570, %v557, 0
    %v605 = vsel %vm570, %v558, 0
    %v608 = vsel %vm570, %v559, 0
    %v611 = vsel %vm570, %v560, 0
    %v614 = vsel %vm570, %v561, 0
    %v617 = vsel %vm570, %v562, 0
    %619 = vmatpush.msra.mxu0 0.0
    %620 = vmatpush.msra.mxu0 0.0
    %621 = vmatpush.msra.mxu0 0.0
    %622 = vmatpush.msra.mxu0 0.0
    %623 = vmatpush.msra.mxu0 0.0
    %624 = vmatpush.msra.mxu0 0.0
    %625 = vmatpush.msra.mxu0 0.0
    %626 = vmatpush.msra.mxu0 0.0
    %627 = vmatpush.msra.mxu0 0.0
    %628 = vmatpush.msra.mxu0 0.0
    %629 = vmatpush.msra.mxu0 0.0
    %630 = vmatpush.msra.mxu0 0.0
    %631 = vmatpush.msra.mxu0 0.0
    %632 = vmatpush.msra.mxu0 %v565
    %633 = vmatpush.msra.mxu0 %v564
    %634 = vmatpush.msra.mxu0 %v563
    %635 = vmatmul.f32.gmra.mxu0 %v572
    %v636 = vpop.f32.mrf.mxu0
    %v637 = vadd.f32 %v568, %v636
    %638 = vmatmul.f32.gmra.mxu0 %v575
    %v639 = vpop.f32.mrf.mxu0
    %v640 = vadd.f32 %v568, %v639
    %641 = vmatmul.f32.gmra.mxu0 %v578
    %v642 = vpop.f32.mrf.mxu0
    %v643 = vadd.f32 %v568, %v642
    %644 = vmatmul.f32.gmra.mxu0 %v581
    %v645 = vpop.f32.mrf.mxu0
    %v646 = vadd.f32 %v568, %v645
    %647 = vmatmul.f32.gmra.mxu0 %v584
    %v648 = vpop.f32.mrf.mxu0
    %v649 = vadd.f32 %v568, %v648
    %650 = vmatmul.f32.gmra.mxu0 %v587
    %v651 = vpop.f32.mrf.mxu0
    %v652 = vadd.f32 %v568, %v651
    %653 = vmatmul.f32.gmra.mxu0 %v590
    %v654 = vpop.f32.mrf.mxu0
    %v655 = vadd.f32 %v568, %v654
    %656 = vmatmul.f32.gmra.mxu0 %v593
    %v657 = vpop.f32.mrf.mxu0
    %v658 = vadd.f32 %v568, %v657
    %659 = vmatmul.f32.gmra.mxu0 %v596
    %v660 = vpop.f32.mrf.mxu0
    %v661 = vadd.f32 %v568, %v660
    %662 = vmatmul.f32.gmra.mxu0 %v599
    %v663 = vpop.f32.mrf.mxu0
    %v664 = vadd.f32 %v568, %v663
    %665 = vmatmul.f32.gmra.mxu0 %v602
    %v666 = vpop.f32.mrf.mxu0
    %v667 = vadd.f32 %v568, %v666
    %668 = vmatmul.f32.gmra.mxu0 %v605
    %v669 = vpop.f32.mrf.mxu0
    %v670 = vadd.f32 %v568, %v669
    %671 = vmatmul.f32.gmra.mxu0 %v608
    %v672 = vpop.f32.mrf.mxu0
    %v673 = vadd.f32 %v568, %v672
    %674 = vmatmul.f32.gmra.mxu0 %v611
    %v675 = vpop.f32.mrf.mxu0
    %v676 = vadd.f32 %v568, %v675
    %677 = vmatmul.f32.gmra.mxu0 %v614
    %v678 = vpop.f32.mrf.mxu0
    %v679 = vadd.f32 %v568, %v678
    %680 = vmatmul.f32.gmra.mxu0 %v617
    %v681 = vpop.f32.mrf.mxu0
    %v682 = vadd.f32 %v568, %v681
    %683 = vdwg.mxu0
    %v684 = vmax.f32 %v637, 0.0
    %v685 = vmax.f32 %v640, 0.0
    %v686 = vmax.f32 %v643, 0.0
    %v687 = vmax.f32 %v646, 0.0
    %v688 = vmax.f32 %v649, 0.0
    %v689 = vmax.f32 %v652, 0.0
    %v690 = vmax.f32 %v655, 0.0
    %v691 = vmax.f32 %v658, 0.0
    %v692 = vmax.f32 %v661, 0.0
    %v693 = vmax.f32 %v664, 0.0
    %v694 = vmax.f32 %v667, 0.0
    %v695 = vmax.f32 %v670, 0.0
    %v696 = vmax.f32 %v673, 0.0
    %v697 = vmax.f32 %v676, 0.0
    %v698 = vmax.f32 %v679, 0.0
    %v699 = vmax.f32 %v682, 0.0
    %v700 = vld [vmem:[%s12] sm:$0xff]
    %v701 = vld [vmem:[%s12 + $0x8] sm:$0xff]
    %v702 = vld [vmem:[%s12 + $0x10] sm:$0xff]
    %v703 = vld [vmem:[%s13] sm:$0x1]
    %v705 = vperm.slane %v703, 0
    %v708 = vsel %vm570, %v684, 0
    %v711 = vsel %vm570, %v685, 0
    %v714 = vsel %vm570, %v686, 0
    %v717 = vsel %vm570, %v687, 0
    %v720 = vsel %vm570, %v688, 0
    %v723 = vsel %vm570, %v689, 0
    %v726 = vsel %vm570, %v690, 0
    %v729 = vsel %vm570, %v691, 0
    %v732 = vsel %vm570, %v692, 0
    %v735 = vsel %vm570, %v693, 0
    %v738 = vsel %vm570, %v694, 0
    %v741 = vsel %vm570, %v695, 0
    %v744 = vsel %vm570, %v696, 0
    %v747 = vsel %vm570, %v697, 0
    %v750 = vsel %vm570, %v698, 0
    %v753 = vsel %vm570, %v699, 0
    %755 = vmatpush.msra.mxu0 0.0
    %756 = vmatpush.msra.mxu0 0.0
    %757 = vmatpush.msra.mxu0 0.0
    %758 = vmatpush.msra.mxu0 0.0
    %759 = vmatpush.msra.mxu0 0.0
    %760 = vmatpush.msra.mxu0 0.0
    %761 = vmatpush.msra.mxu0 0.0
    %762 = vmatpush.msra.mxu0 0.0
    %763 = vmatpush.msra.mxu0 0.0
    %764 = vmatpush.msra.mxu0 0.0
    %765 = vmatpush.msra.mxu0 0.0
    %766 = vmatpush.msra.mxu0 0.0
    %767 = vmatpush.msra.mxu0 0.0
    %768 = vmatpush.msra.mxu0 %v702
    %769 = vmatpush.msra.mxu0 %v701
    %770 = vmatpush.msra.mxu0 %v700
    %771 = vmatmul.f32.gmra.mxu0 %v708
    %v772 = vpop.f32.mrf.mxu0
    %v773 = vadd.f32 %v705, %v772
    %774 = vmatmul.f32.gmra.mxu0 %v711
    %v775 = vpop.f32.mrf.mxu0
    %v776 = vadd.f32 %v705, %v775
    %777 = vmatmul.f32.gmra.mxu0 %v714
    %v778 = vpop.f32.mrf.mxu0
    %v779 = vadd.f32 %v705, %v778
    %780 = vmatmul.f32.gmra.mxu0 %v717
    %v781 = vpop.f32.mrf.mxu0
    %v782 = vadd.f32 %v705, %v781
    %783 = vmatmul.f32.gmra.mxu0 %v720
    %v784 = vpop.f32.mrf.mxu0
    %v785 = vadd.f32 %v705, %v784
    %786 = vmatmul.f32.gmra.mxu0 %v723
    %v787 = vpop.f32.mrf.mxu0
    %v788 = vadd.f32 %v705, %v787
    %789 = vmatmul.f32.gmra.mxu0 %v726
    %v790 = vpop.f32.mrf.mxu0
    %v791 = vadd.f32 %v705, %v790
    %792 = vmatmul.f32.gmra.mxu0 %v729
    %v793 = vpop.f32.mrf.mxu0
    %v794 = vadd.f32 %v705, %v793
    %795 = vmatmul.f32.gmra.mxu0 %v732
    %v796 = vpop.f32.mrf.mxu0
    %v797 = vadd.f32 %v705, %v796
    %798 = vmatmul.f32.gmra.mxu0 %v735
    %v799 = vpop.f32.mrf.mxu0
    %v800 = vadd.f32 %v705, %v799
    %801 = vmatmul.f32.gmra.mxu0 %v738
    %v802 = vpop.f32.mrf.mxu0
    %v803 = vadd.f32 %v705, %v802
    %804 = vmatmul.f32.gmra.mxu0 %v741
    %v805 = vpop.f32.mrf.mxu0
    %v806 = vadd.f32 %v705, %v805
    %807 = vmatmul.f32.gmra.mxu0 %v744
    %v808 = vpop.f32.mrf.mxu0
    %v809 = vadd.f32 %v705, %v808
    %810 = vmatmul.f32.gmra.mxu0 %v747
    %v811 = vpop.f32.mrf.mxu0
    %v812 = vadd.f32 %v705, %v811
    %813 = vmatmul.f32.gmra.mxu0 %v750
    %v814 = vpop.f32.mrf.mxu0
    %v815 = vadd.f32 %v705, %v814
    %816 = vmatmul.f32.gmra.mxu0 %v753
    %v817 = vpop.f32.mrf.mxu0
    %v818 = vadd.f32 %v705, %v817
    %819 = vdwg.mxu0
    %v820 = vmax.f32 %v773, 0.0
    %v821 = vmax.f32 %v776, 0.0
    %v822 = vmax.f32 %v779, 0.0
    %v823 = vmax.f32 %v782, 0.0
    %v824 = vmax.f32 %v785, 0.0
    %v825 = vmax.f32 %v788, 0.0
    %v826 = vmax.f32 %v791, 0.0
    %v827 = vmax.f32 %v794, 0.0
    %v828 = vmax.f32 %v797, 0.0
    %v829 = vmax.f32 %v800, 0.0
    %v830 = vmax.f32 %v803, 0.0
    %v831 = vmax.f32 %v806, 0.0
    %v832 = vmax.f32 %v809, 0.0
    %v833 = vmax.f32 %v812, 0.0
    %v834 = vmax.f32 %v815, 0.0
    %v835 = vmax.f32 %v818, 0.0
    %v836 = vld [vmem:[%s16] sm:$0xff]
    %v837 = vld [vmem:[%s16 + $0x8] sm:$0xff]
    %v838 = vld [vmem:[%s16 + $0x10] sm:$0xff]
    %v839 = vld [vmem:[%s16 + $0x18] sm:$0xff]
    %v840 = vld [vmem:[%s17] sm:$0x1]
    %v842 = vperm.slane %v840, 0
    %v845 = vsel %vm393, %v820, 0
    %v848 = vsel %vm393, %v821, 0
    %v851 = vsel %vm393, %v822, 0
    %v854 = vsel %vm393, %v823, 0
    %v857 = vsel %vm393, %v824, 0
    %v860 = vsel %vm393, %v825, 0
    %v863 = vsel %vm393, %v826, 0
    %v866 = vsel %vm393, %v827, 0
    %v869 = vsel %vm393, %v828, 0
    %v872 = vsel %vm393, %v829, 0
    %v875 = vsel %vm393, %v830, 0
    %v878 = vsel %vm393, %v831, 0
    %v881 = vsel %vm393, %v832, 0
    %v884 = vsel %vm393, %v833, 0
    %v887 = vsel %vm393, %v834, 0
    %v890 = vsel %vm393, %v835, 0
    %892 = vmatpush.msra.mxu0 0.0
    %893 = vmatpush.msra.mxu0 0.0
    %894 = vmatpush.msra.mxu0 0.0
    %895 = vmatpush.msra.mxu0 0.0
    %896 = vmatpush.msra.mxu0 0.0
    %897 = vmatpush.msra.mxu0 0.0
    %898 = vmatpush.msra.mxu0 0.0
    %899 = vmatpush.msra.mxu0 0.0
    %900 = vmatpush.msra.mxu0 0.0
    %901 = vmatpush.msra.mxu0 0.0
    %902 = vmatpush.msra.mxu0 0.0
    %903 = vmatpush.msra.mxu0 0.0
    %904 = vmatpush.msra.mxu0 %v839
    %905 = vmatpush.msra.mxu0 %v838
    %906 = vmatpush.msra.mxu0 %v837
    %907 = vmatpush.msra.mxu0 %v836
    %908 = vmatmul.f32.gmra.mxu0 %v845
    %v909 = vpop.f32.mrf.mxu0
    %v910 = vadd.f32 %v842, %v909
    %911 = vmatmul.f32.gmra.mxu0 %v848
    %v912 = vpop.f32.mrf.mxu0
    %v913 = vadd.f32 %v842, %v912
    %914 = vmatmul.f32.gmra.mxu0 %v851
    %v915 = vpop.f32.mrf.mxu0
    %v916 = vadd.f32 %v842, %v915
    %917 = vmatmul.f32.gmra.mxu0 %v854
    %v918 = vpop.f32.mrf.mxu0
    %v919 = vadd.f32 %v842, %v918
    %920 = vmatmul.f32.gmra.mxu0 %v857
    %v921 = vpop.f32.mrf.mxu0
    %v922 = vadd.f32 %v842, %v921
    %923 = vmatmul.f32.gmra.mxu0 %v860
    %v924 = vpop.f32.mrf.mxu0
    %v925 = vadd.f32 %v842, %v924
    %926 = vmatmul.f32.gmra.mxu0 %v863
    %v927 = vpop.f32.mrf.mxu0
    %v928 = vadd.f32 %v842, %v927
    %929 = vmatmul.f32.gmra.mxu0 %v866
    %v930 = vpop.f32.mrf.mxu0
    %v931 = vadd.f32 %v842, %v930
    %932 = vmatmul.f32.gmra.mxu0 %v869
    %v933 = vpop.f32.mrf.mxu0
    %v934 = vadd.f32 %v842, %v933
    %935 = vmatmul.f32.gmra.mxu0 %v872
    %v936 = vpop.f32.mrf.mxu0
    %v937 = vadd.f32 %v842, %v936
    %938 = vmatmul.f32.gmra.mxu0 %v875
    %v939 = vpop.f32.mrf.mxu0
    %v940 = vadd.f32 %v842, %v939
    %941 = vmatmul.f32.gmra.mxu0 %v878
    %v942 = vpop.f32.mrf.mxu0
    %v943 = vadd.f32 %v842, %v942
    %944 = vmatmul.f32.gmra.mxu0 %v881
    %v945 = vpop.f32.mrf.mxu0
    %v946 = vadd.f32 %v842, %v945
    %947 = vmatmul.f32.gmra.mxu0 %v884
    %v948 = vpop.f32.mrf.mxu0
    %v949 = vadd.f32 %v842, %v948
    %950 = vmatmul.f32.gmra.mxu0 %v887
    %v951 = vpop.f32.mrf.mxu0
    %v952 = vadd.f32 %v842, %v951
    %953 = vmatmul.f32.gmra.mxu0 %v890
    %v954 = vpop.f32.mrf.mxu0
    %v955 = vadd.f32 %v842, %v954
    %956 = vdwg.mxu0
    %v957 = vld [vmem:[%s2] sm:$0xff]
    %v958 = vld [vmem:[%s2 + $0x8] sm:$0xff]
    %v959 = vld [vmem:[%s2 + $0x10] sm:$0xff]
    %v960 = vld [vmem:[%s2 + $0x18] sm:$0xff]
    %v961 = vld [vmem:[%s2 + $0x20] sm:$0xff]
    %v962 = vld [vmem:[%s2 + $0x28] sm:$0xff]
    %v963 = vld [vmem:[%s2 + $0x30] sm:$0xff]
    %v964 = vld [vmem:[%s2 + $0x38] sm:$0xff]
    %v965 = vld [vmem:[%s2 + $0x40] sm:$0xff]
    %v966 = vld [vmem:[%s2 + $0x48] sm:$0xff]
    %v967 = vld [vmem:[%s2 + $0x50] sm:$0xff]
    %v968 = vld [vmem:[%s2 + $0x58] sm:$0xff]
    %v969 = vld [vmem:[%s2 + $0x60] sm:$0xff]
    %v970 = vld [vmem:[%s2 + $0x68] sm:$0xff]
    %v971 = vld [vmem:[%s2 + $0x70] sm:$0xff]
    %v972 = vld [vmem:[%s2 + $0x78] sm:$0xff]
    %v973 = vld [vmem:[%s5] sm:$0xff]
    %v974 = vld [vmem:[%s5 + $0x8] sm:$0xff]
    %v975 = vld [vmem:[%s5 + $0x10] sm:$0xff]
    %v976 = vld [vmem:[%s5 + $0x18] sm:$0xff]
    %v977 = vld [vmem:[%s5 + $0x20] sm:$0xff]
    %v978 = vld [vmem:[%s5 + $0x28] sm:$0xff]
    %v979 = vld [vmem:[%s5 + $0x30] sm:$0xff]
    %v980 = vld [vmem:[%s5 + $0x38] sm:$0xff]
    %v981 = vadd.f32 %v957, %v973
    %v982 = vadd.f32 %v958, %v974
    %v983 = vadd.f32 %v959, %v975
    %v984 = vadd.f32 %v960, %v976
    %v985 = vadd.f32 %v961, %v977
    %v986 = vadd.f32 %v962, %v978
    %v987 = vadd.f32 %v963, %v979
    %v988 = vadd.f32 %v964, %v980
    %v989 = vadd.f32 %v965, %v973
    %v990 = vadd.f32 %v966, %v974
    %v991 = vadd.f32 %v967, %v975
    %v992 = vadd.f32 %v968, %v976
    %v993 = vadd.f32 %v969, %v977
    %v994 = vadd.f32 %v970, %v978
    %v995 = vadd.f32 %v971, %v979
    %v996 = vadd.f32 %v972, %v980
    %v997 = vld [vmem:[%s18] sm:$0xff]
    %v998 = vld [vmem:[%s18 + $0x8] sm:$0xff]
    %v999 = vld [vmem:[%s18 + $0x10] sm:$0xff]
    %v1000 = vld [vmem:[%s18 + $0x18] sm:$0xff]
    %v1001 = vld [vmem:[%s19] sm:$0x1]
    %v1003 = vperm.slane %v1001, 0
    %v1006 = vsel %vm393, %v981, 0
    %v1009 = vsel %vm393, %v982, 0
    %v1012 = vsel %vm393, %v983, 0
    %v1015 = vsel %vm393, %v984, 0
    %v1018 = vsel %vm393, %v985, 0
    %v1021 = vsel %vm393, %v986, 0
    %v1024 = vsel %vm393, %v987, 0
    %v1027 = vsel %vm393, %v988, 0
    %v1030 = vsel %vm393, %v989, 0
    %v1033 = vsel %vm393, %v990, 0
    %v1036 = vsel %vm393, %v991, 0
    %v1039 = vsel %vm393, %v992, 0
    %v1042 = vsel %vm393, %v993, 0
    %v1045 = vsel %vm393, %v994, 0
    %v1048 = vsel %vm393, %v995, 0
    %v1051 = vsel %vm393, %v996, 0
    %1053 = vmatpush.msra.mxu0 0.0
    %1054 = vmatpush.msra.mxu0 0.0
    %1055 = vmatpush.msra.mxu0 0.0
    %1056 = vmatpush.msra.mxu0 0.0
    %1057 = vmatpush.msra.mxu0 0.0
    %1058 = vmatpush.msra.mxu0 0.0
    %1059 = vmatpush.msra.mxu0 0.0
    %1060 = vmatpush.msra.mxu0 0.0
    %1061 = vmatpush.msra.mxu0 0.0
    %1062 = vmatpush.msra.mxu0 0.0
    %1063 = vmatpush.msra.mxu0 0.0
    %1064 = vmatpush.msra.mxu0 0.0
    %1065 = vmatpush.msra.mxu0 %v1000
    %1066 = vmatpush.msra.mxu0 %v999
    %1067 = vmatpush.msra.mxu0 %v998
    %1068 = vmatpush.msra.mxu0 %v997
    %1069 = vmatmul.f32.gmra.mxu0 %v1006
    %v1070 = vpop.f32.mrf.mxu0
    %v1071 = vadd.f32 %v1003, %v1070
    %1072 = vmatmul.f32.gmra.mxu0 %v1009
    %v1073 = vpop.f32.mrf.mxu0
    %v1074 = vadd.f32 %v1003, %v1073
    %1075 = vmatmul.f32.gmra.mxu0 %v1012
    %v1076 = vpop.f32.mrf.mxu0
    %v1077 = vadd.f32 %v1003, %v1076
    %1078 = vmatmul.f32.gmra.mxu0 %v1015
    %v1079 = vpop.f32.mrf.mxu0
    %v1080 = vadd.f32 %v1003, %v1079
    %1081 = vmatmul.f32.gmra.mxu0 %v1018
    %v1082 = vpop.f32.mrf.mxu0
    %v1083 = vadd.f32 %v1003, %v1082
    %1084 = vmatmul.f32.gmra.mxu0 %v1021
    %v1085 = vpop.f32.mrf.mxu0
    %v1086 = vadd.f32 %v1003, %v1085
    %1087 = vmatmul.f32.gmra.mxu0 %v1024
    %v1088 = vpop.f32.mrf.mxu0
    %v1089 = vadd.f32 %v1003, %v1088
    %1090 = vmatmul.f32.gmra.mxu0 %v1027
    %v1091 = vpop.f32.mrf.mxu0
    %v1092 = vadd.f32 %v1003, %v1091
    %1093 = vmatmul.f32.gmra.mxu0 %v1030
    %v1094 = vpop.f32.mrf.mxu0
    %v1095 = vadd.f32 %v1003, %v1094
    %1096 = vmatmul.f32.gmra.mxu0 %v1033
    %v1097 = vpop.f32.mrf.mxu0
    %v1098 = vadd.f32 %v1003, %v1097
    %1099 = vmatmul.f32.gmra.mxu0 %v1036
    %v1100 = vpop.f32.mrf.mxu0
    %v1101 = vadd.f32 %v1003, %v1100
    %1102 = vmatmul.f32.gmra.mxu0 %v1039
    %v1103 = vpop.f32.mrf.mxu0
    %v1104 = vadd.f32 %v1003, %v1103
    %1105 = vmatmul.f32.gmra.mxu0 %v1042
    %v1106 = vpop.f32.mrf.mxu0
    %v1107 = vadd.f32 %v1003, %v1106
    %1108 = vmatmul.f32.gmra.mxu0 %v1045
    %v1109 = vpop.f32.mrf.mxu0
    %v1110 = vadd.f32 %v1003, %v1109
    %1111 = vmatmul.f32.gmra.mxu0 %v1048
    %v1112 = vpop.f32.mrf.mxu0
    %v1113 = vadd.f32 %v1003, %v1112
    %1114 = vmatmul.f32.gmra.mxu0 %v1051
    %v1115 = vpop.f32.mrf.mxu0
    %v1116 = vadd.f32 %v1003, %v1115
    %1117 = vdwg.mxu0
    %v1118 = vld [vmem:[%s20] sm:$0xff]
    %v1119 = vld [vmem:[%s20 + $0x8] sm:$0xff]
    %v1120 = vld [vmem:[%s20 + $0x10] sm:$0xff]
    %v1121 = vld [vmem:[%s20 + $0x18] sm:$0xff]
    %v1122 = vld [vmem:[%s21] sm:$0x1]
    %v1124 = vperm.slane %v1122, 0
    %v1126 = vadd.f32 %v1124, 0.0
    %vm1127 = vcmask 64512
    %v1129 = vsel %vm1127, %v507, 0
    %v1132 = vsel %vm1127, %v508, 0
    %v1135 = vsel %vm1127, %v509, 0
    %v1138 = vsel %vm1127, %v510, 0
    %v1141 = vsel %vm1127, %v511, 0
    %v1144 = vsel %vm1127, %v512, 0
    %v1147 = vsel %vm1127, %v513, 0
    %v1150 = vsel %vm1127, %v514, 0
    %v1153 = vsel %vm1127, %v910, 0
    %v1156 = vsel %vm1127, %v913, 0
    %v1159 = vsel %vm1127, %v916, 0
    %v1162 = vsel %vm1127, %v919, 0
    %v1165 = vsel %vm1127, %v922, 0
    %v1168 = vsel %vm1127, %v925, 0
    %v1171 = vsel %vm1127, %v928, 0
    %v1174 = vsel %vm1127, %v931, 0
    %1176 = vmatpush.xpose.msra.mxu0 0.0
    %1177 = vmatpush.xpose.msra.mxu0 0.0
    %1178 = vmatpush.xpose.msra.mxu0 0.0
    %1179 = vmatpush.xpose.msra.mxu0 0.0
    %1180 = vmatpush.xpose.msra.mxu0 0.0
    %1181 = vmatpush.xpose.msra.mxu0 0.0
    %1182 = vmatpush.xpose.msra.mxu0 0.0
    %1183 = vmatpush.xpose.msra.mxu0 0.0
    %1184 = vmatpush.xpose.msra.mxu0 %v1174
    %1185 = vmatpush.xpose.msra.mxu0 %v1171
    %1186 = vmatpush.xpose.msra.mxu0 %v1168
    %1187 = vmatpush.xpose.msra.mxu0 %v1165
    %1188 = vmatpush.xpose.msra.mxu0 %v1162
    %1189 = vmatpush.xpose.msra.mxu0 %v1159
    %1190 = vmatpush.xpose.msra.mxu0 %v1156
    %1191 = vmatpush.xpose.msra.mxu0 %v1153
    %1192 = vmatmul.f32.gmra.mxu0 %v1129
    %v1193 = vpop.f32.mrf.mxu0
    %v1194 = vadd.f32 0.0, %v1193
    %1195 = vmatmul.f32.gmra.mxu0 %v1132
    %v1196 = vpop.f32.mrf.mxu0
    %v1197 = vadd.f32 0.0, %v1196
    %1198 = vmatmul.f32.gmra.mxu0 %v1135
    %v1199 = vpop.f32.mrf.mxu0
    %v1200 = vadd.f32 0.0, %v1199
    %1201 = vmatmul.f32.gmra.mxu0 %v1138
    %v1202 = vpop.f32.mrf.mxu0
    %v1203 = vadd.f32 0.0, %v1202
    %1204 = vmatmul.f32.gmra.mxu0 %v1141
    %v1205 = vpop.f32.mrf.mxu0
    %v1206 = vadd.f32 0.0, %v1205
    %1207 = vmatmul.f32.gmra.mxu0 %v1144
    %v1208 = vpop.f32.mrf.mxu0
    %v1209 = vadd.f32 0.0, %v1208
    %1210 = vmatmul.f32.gmra.mxu0 %v1147
    %v1211 = vpop.f32.mrf.mxu0
    %v1212 = vadd.f32 0.0, %v1211
    %1213 = vmatmul.f32.gmra.mxu0 %v1150
    %v1214 = vpop.f32.mrf.mxu0
    %v1215 = vadd.f32 0.0, %v1214
    %1216 = vdwg.mxu0
    %v1218 = vsel %vm1127, %v515, 0
    %v1221 = vsel %vm1127, %v516, 0
    %v1224 = vsel %vm1127, %v517, 0
    %v1227 = vsel %vm1127, %v518, 0
    %v1230 = vsel %vm1127, %v519, 0
    %v1233 = vsel %vm1127, %v520, 0
    %v1236 = vsel %vm1127, %v521, 0
    %v1239 = vsel %vm1127, %v522, 0
    %v1242 = vsel %vm1127, %v934, 0
    %v1245 = vsel %vm1127, %v937, 0
    %v1248 = vsel %vm1127, %v940, 0
    %v1251 = vsel %vm1127, %v943, 0
    %v1254 = vsel %vm1127, %v946, 0
    %v1257 = vsel %vm1127, %v949, 0
    %v1260 = vsel %vm1127, %v952, 0
    %v1263 = vsel %vm1127, %v955, 0
    %1265 = vmatpush.xpose.msra.mxu0 0.0
    %1266 = vmatpush.xpose.msra.mxu0 0.0
    %1267 = vmatpush.xpose.msra.mxu0 0.0
    %1268 = vmatpush.xpose.msra.mxu0 0.0
    %1269 = vmatpush.xpose.msra.mxu0 0.0
    %1270 = vmatpush.xpose.msra.mxu0 0.0
    %1271 = vmatpush.xpose.msra.mxu0 0.0
    %1272 = vmatpush.xpose.msra.mxu0 0.0
    %1273 = vmatpush.xpose.msra.mxu0 %v1263
    %1274 = vmatpush.xpose.msra.mxu0 %v1260
    %1275 = vmatpush.xpose.msra.mxu0 %v1257
    %1276 = vmatpush.xpose.msra.mxu0 %v1254
    %1277 = vmatpush.xpose.msra.mxu0 %v1251
    %1278 = vmatpush.xpose.msra.mxu0 %v1248
    %1279 = vmatpush.xpose.msra.mxu0 %v1245
    %1280 = vmatpush.xpose.msra.mxu0 %v1242
    %1281 = vmatmul.f32.gmra.mxu0 %v1218
    %v1282 = vpop.f32.mrf.mxu0
    %v1283 = vadd.f32 0.0, %v1282
    %1284 = vmatmul.f32.gmra.mxu0 %v1221
    %v1285 = vpop.f32.mrf.mxu0
    %v1286 = vadd.f32 0.0, %v1285
    %1287 = vmatmul.f32.gmra.mxu0 %v1224
    %v1288 = vpop.f32.mrf.mxu0
    %v1289 = vadd.f32 0.0, %v1288
    %1290 = vmatmul.f32.gmra.mxu0 %v1227
    %v1291 = vpop.f32.mrf.mxu0
    %v1292 = vadd.f32 0.0, %v1291
    %1293 = vmatmul.f32.gmra.mxu0 %v1230
    %v1294 = vpop.f32.mrf.mxu0
    %v1295 = vadd.f32 0.0, %v1294
    %1296 = vmatmul.f32.gmra.mxu0 %v1233
    %v1297 = vpop.f32.mrf.mxu0
    %v1298 = vadd.f32 0.0, %v1297
    %1299 = vmatmul.f32.gmra.mxu0 %v1236
    %v1300 = vpop.f32.mrf.mxu0
    %v1301 = vadd.f32 0.0, %v1300
    %1302 = vmatmul.f32.gmra.mxu0 %v1239
    %v1303 = vpop.f32.mrf.mxu0
    %v1304 = vadd.f32 0.0, %v1303
    %1305 = vdwg.mxu0
    %vm1306 = vcmask 523264
    %v1307 = vsel %vm1306, %v1194, -inf
    %1308 = vmax.xlane.f32.xlu0 %v1307
    %v1309 = vpop.xlane.xlu0 %1308
    %v1310 = vsel %vm1306, %v1197, -inf
    %1311 = vmax.xlane.f32.xlu0 %v1310
    %v1312 = vpop.xlane.xlu0 %1311
    %v1313 = vsel %vm1306, %v1200, -inf
    %1314 = vmax.xlane.f32.xlu0 %v1313
    %v1315 = vpop.xlane.xlu0 %1314
    %v1316 = vsel %vm1306, %v1203, -inf
    %1317 = vmax.xlane.f32.xlu0 %v1316
    %v1318 = vpop.xlane.xlu0 %1317
    %v1319 = vsel %vm1306, %v1206, -inf
    %1320 = vmax.xlane.f32.xlu0 %v1319
    %v1321 = vpop.xlane.xlu0 %1320
    %v1322 = vsel %vm1306, %v1209, -inf
    %1323 = vmax.xlane.f32.xlu0 %v1322
    %v1324 = vpop.xlane.xlu0 %1323
    %v1325 = vsel %vm1306, %v1212, -inf
    %1326 = vmax.xlane.f32.xlu0 %v1325
    %v1327 = vpop.xlane.xlu0 %1326
    %v1328 = vsel %vm1306, %v1215, -inf
    %1329 = vmax.xlane.f32.xlu0 %v1328
    %v1330 = vpop.xlane.xlu0 %1329
    %v1331 = vsel %vm1306, %v1283, -inf
    %1332 = vmax.xlane.f32.xlu0 %v1331
    %v1333 = vpop.xlane.xlu0 %1332
    %v1334 = vsel %vm1306, %v1286, -inf
    %1335 = vmax.xlane.f32.xlu0 %v1334
    %v1336 = vpop.xlane.xlu0 %1335
    %v1337 = vsel %vm1306, %v1289, -inf
    %1338 = vmax.xlane.f32.xlu0 %v1337
    %v1339 = vpop.xlane.xlu0 %1338
    %v1340 = vsel %vm1306, %v1292, -inf
    %1341 = vmax.xlane.f32.xlu0 %v1340
    %v1342 = vpop.xlane.xlu0 %1341
    %v1343 = vsel %vm1306, %v1295, -inf
    %1344 = vmax.xlane.f32.xlu0 %v1343
    %v1345 = vpop.xlane.xlu0 %1344
    %v1346 = vsel %vm1306, %v1298, -inf
    %1347 = vmax.xlane.f32.xlu0 %v1346
    %v1348 = vpop.xlane.xlu0 %1347
    %v1349 = vsel %vm1306, %v1301, -inf
    %1350 = vmax.xlane.f32.xlu0 %v1349
    %v1351 = vpop.xlane.xlu0 %1350
    %v1352 = vsel %vm1306, %v1304, -inf
    %1353 = vmax.xlane.f32.xlu0 %v1352
    %v1354 = vpop.xlane.xlu0 %1353
    %v1355 = vsub.f32 %v1194, %v1309
    %v1356 = vsub.f32 %v1197, %v1312
    %v1357 = vsub.f32 %v1200, %v1315
    %v1358 = vsub.f32 %v1203, %v1318
    %v1359 = vsub.f32 %v1206, %v1321
    %v1360 = vsub.f32 %v1209, %v1324
    %v1361 = vsub.f32 %v1212, %v1327
    %v1362 = vsub.f32 %v1215, %v1330
    %v1363 = vsub.f32 %v1283, %v1333
    %v1364 = vsub.f32 %v1286, %v1336
    %v1365 = vsub.f32 %v1289, %v1339
    %v1366 = vsub.f32 %v1292, %v1342
    %v1367 = vsub.f32 %v1295, %v1345
    %v1368 = vsub.f32 %v1298, %v1348
    %v1369 = vsub.f32 %v1301, %v1351
    %v1370 = vsub.f32 %v1304, %v1354
    %v1371 = vmul.f32 %v1355, 1.442695
    %v1372 = vpow.pop %v1371
    %v1373 = vmul.f32 %v1356, 1.442695
    %v1374 = vpow.pop %v1373
    %v1375 = vmul.f32 %v1357, 1.442695
    %v1376 = vpow.pop %v1375
    %v1377 = vmul.f32 %v1358, 1.442695
    %v1378 = vpow.pop %v1377
    %v1379 = vmul.f32 %v1359, 1.442695
    %v1380 = vpow.pop %v1379
    %v1381 = vmul.f32 %v1360, 1.442695
    %v1382 = vpow.pop %v1381
    %v1383 = vmul.f32 %v1361, 1.442695
    %v1384 = vpow.pop %v1383
    %v1385 = vmul.f32 %v1362, 1.442695
    %v1386 = vpow.pop %v1385
    %v1387 = vmul.f32 %v1363, 1.442695
    %v1388 = vpow.pop %v1387
    %v1389 = vmul.f32 %v1364, 1.442695
    %v1390 = vpow.pop %v1389
    %v1391 = vmul.f32 %v1365, 1.442695
    %v1392 = vpow.pop %v1391
    %v1393 = vmul.f32 %v1366, 1.442695
    %v1394 = vpow.pop %v1393
    %v1395 = vmul.f32 %v1367, 1.442695
    %v1396 = vpow.pop %v1395
    %v1397 = vmul.f32 %v1368, 1.442695
    %v1398 = vpow.pop %v1397
    %v1399 = vmul.f32 %v1369, 1.442695
    %v1400 = vpow.pop %v1399
    %v1401 = vmul.f32 %v1370, 1.442695
    %v1402 = vpow.pop %v1401
    %v1403 = vsel %vm1306, %v1372, 0.0
    %1404 = vadd.xlane.f32.xlu0 %v1403
    %v1405 = vpop.xlane.xlu0 %1404
    %v1406 = vsel %vm1306, %v1374, 0.0
    %1407 = vadd.xlane.f32.xlu0 %v1406
    %v1408 = vpop.xlane.xlu0 %1407
    %v1409 = vsel %vm1306, %v1376, 0.0
    %1410 = vadd.xlane.f32.xlu0 %v1409
    %v1411 = vpop.xlane.xlu0 %1410
    %v1412 = vsel %vm1306, %v1378, 0.0
    %1413 = vadd.xlane.f32.xlu0 %v1412
    %v1414 = vpop.xlane.xlu0 %1413
    %v1415 = vsel %vm1306, %v1380, 0.0
    %1416 = vadd.xlane.f32.xlu0 %v1415
    %v1417 = vpop.xlane.xlu0 %1416
    %v1418 = vsel %vm1306, %v1382, 0.0
    %1419 = vadd.xlane.f32.xlu0 %v1418
    %v1420 = vpop.xlane.xlu0 %1419
    %v1421 = vsel %vm1306, %v1384, 0.0
    %1422 = vadd.xlane.f32.xlu0 %v1421
    %v1423 = vpop.xlane.xlu0 %1422
    %v1424 = vsel %vm1306, %v1386, 0.0
    %1425 = vadd.xlane.f32.xlu0 %v1424
    %v1426 = vpop.xlane.xlu0 %1425
    %v1427 = vsel %vm1306, %v1388, 0.0
    %1428 = vadd.xlane.f32.xlu0 %v1427
    %v1429 = vpop.xlane.xlu0 %1428
    %v1430 = vsel %vm1306, %v1390, 0.0
    %1431 = vadd.xlane.f32.xlu0 %v1430
    %v1432 = vpop.xlane.xlu0 %1431
    %v1433 = vsel %vm1306, %v1392, 0.0
    %1434 = vadd.xlane.f32.xlu0 %v1433
    %v1435 = vpop.xlane.xlu0 %1434
    %v1436 = vsel %vm1306, %v1394, 0.0
    %1437 = vadd.xlane.f32.xlu0 %v1436
    %v1438 = vpop.xlane.xlu0 %1437
    %v1439 = vsel %vm1306, %v1396, 0.0
    %1440 = vadd.xlane.f32.xlu0 %v1439
    %v1441 = vpop.xlane.xlu0 %1440
    %v1442 = vsel %vm1306, %v1398, 0.0
    %1443 = vadd.xlane.f32.xlu0 %v1442
    %v1444 = vpop.xlane.xlu0 %1443
    %v1445 = vsel %vm1306, %v1400, 0.0
    %1446 = vadd.xlane.f32.xlu0 %v1445
    %v1447 = vpop.xlane.xlu0 %1446
    %v1448 = vsel %vm1306, %v1402, 0.0
    %1449 = vadd.xlane.f32.xlu0 %v1448
    %v1450 = vpop.xlane.xlu0 %1449
    %v1451 = vrcp.pop %v1405
    %v1452 = vrcp.pop %v1408
    %v1453 = vrcp.pop %v1411
    %v1454 = vrcp.pop %v1414
    %v1455 = vrcp.pop %v1417
    %v1456 = vrcp.pop %v1420
    %v1457 = vrcp.pop %v1423
    %v1458 = vrcp.pop %v1426
    %v1459 = vrcp.pop %v1429
    %v1460 = vrcp.pop %v1432
    %v1461 = vrcp.pop %v1435
    %v1462 = vrcp.pop %v1438
    %v1463 = vrcp.pop %v1441
    %v1464 = vrcp.pop %v1444
    %v1465 = vrcp.pop %v1447
    %v1466 = vrcp.pop %v1450
    %v1467 = vmul.f32 %v1372, %v1451
    %v1468 = vmul.f32 %v1374, %v1452
    %v1469 = vmul.f32 %v1376, %v1453
    %v1470 = vmul.f32 %v1378, %v1454
    %v1471 = vmul.f32 %v1380, %v1455
    %v1472 = vmul.f32 %v1382, %v1456
    %v1473 = vmul.f32 %v1384, %v1457
    %v1474 = vmul.f32 %v1386, %v1458
    %v1475 = vmul.f32 %v1388, %v1459
    %v1476 = vmul.f32 %v1390, %v1460
    %v1477 = vmul.f32 %v1392, %v1461
    %v1478 = vmul.f32 %v1394, %v1462
    %v1479 = vmul.f32 %v1396, %v1463
    %v1480 = vmul.f32 %v1398, %v1464
    %v1481 = vmul.f32 %v1400, %v1465
    %v1482 = vmul.f32 %v1402, %v1466
    %v1483 = vadd.f32 %v1467, 0.0
    %v1484 = vadd.f32 %v1468, 0.0
    %v1485 = vadd.f32 %v1469, 0.0
    %v1486 = vadd.f32 %v1470, 0.0
    %v1487 = vadd.f32 %v1471, 0.0
    %v1488 = vadd.f32 %v1472, 0.0
    %v1489 = vadd.f32 %v1473, 0.0
    %v1490 = vadd.f32 %v1474, 0.0
    %v1491 = vadd.f32 %v1475, 0.0
    %v1492 = vadd.f32 %v1476, 0.0
    %v1493 = vadd.f32 %v1477, 0.0
    %v1494 = vadd.f32 %v1478, 0.0
    %v1495 = vadd.f32 %v1479, 0.0
    %v1496 = vadd.f32 %v1480, 0.0
    %v1497 = vadd.f32 %v1481, 0.0
    %v1498 = vadd.f32 %v1482, 0.0
    %v1500 = vsel %vm1306, %v1467, 0
    %v1503 = vsel %vm1306, %v1468, 0
    %v1506 = vsel %vm1306, %v1469, 0
    %v1509 = vsel %vm1306, %v1470, 0
    %v1512 = vsel %vm1306, %v1471, 0
    %v1515 = vsel %vm1306, %v1472, 0
    %v1518 = vsel %vm1306, %v1473, 0
    %v1521 = vsel %vm1306, %v1474, 0
    %1523 = vmatpush.msra.mxu0 0.0
    %1524 = vmatpush.msra.mxu0 0.0
    %1525 = vmatpush.msra.mxu0 0.0
    %1526 = vmatpush.msra.mxu0 0.0
    %1527 = vmatpush.msra.mxu0 0.0
    %1528 = vmatpush.msra.mxu0 0.0
    %1529 = vmatpush.msra.mxu0 0.0
    %1530 = vmatpush.msra.mxu0 0.0
    %1531 = vmatpush.msra.mxu0 %v1092
    %1532 = vmatpush.msra.mxu0 %v1089
    %1533 = vmatpush.msra.mxu0 %v1086
    %1534 = vmatpush.msra.mxu0 %v1083
    %1535 = vmatpush.msra.mxu0 %v1080
    %1536 = vmatpush.msra.mxu0 %v1077
    %1537 = vmatpush.msra.mxu0 %v1074
    %1538 = vmatpush.msra.mxu0 %v1071
    %1539 = vmatmul.f32.gmra.mxu0 %v1500
    %v1540 = vpop.f32.mrf.mxu0
    %v1541 = vadd.f32 0.0, %v1540
    %1542 = vmatmul.f32.gmra.mxu0 %v1503
    %v1543 = vpop.f32.mrf.mxu0
    %v1544 = vadd.f32 0.0, %v1543
    %1545 = vmatmul.f32.gmra.mxu0 %v1506
    %v1546 = vpop.f32.mrf.mxu0
    %v1547 = vadd.f32 0.0, %v1546
    %1548 = vmatmul.f32.gmra.mxu0 %v1509
    %v1549 = vpop.f32.mrf.mxu0
    %v1550 = vadd.f32 0.0, %v1549
    %1551 = vmatmul.f32.gmra.mxu0 %v1512
    %v1552 = vpop.f32.mrf.mxu0
    %v1553 = vadd.f32 0.0, %v1552
    %1554 = vmatmul.f32.gmra.mxu0 %v1515
    %v1555 = vpop.f32.mrf.mxu0
    %v1556 = vadd.f32 0.0, %v1555
    %1557 = vmatmul.f32.gmra.mxu0 %v1518
    %v1558 = vpop.f32.mrf.mxu0
    %v1559 = vadd.f32 0.0, %v1558
    %1560 = vmatmul.f32.gmra.mxu0 %v1521
    %v1561 = vpop.f32.mrf.mxu0
    %v1562 = vadd.f32 0.0, %v1561
    %1563 = vdwg.mxu0
    %v1565 = vsel %vm1306, %v1475, 0
    %v1568 = vsel %vm1306, %v1476, 0
    %v1571 = vsel %vm1306, %v1477, 0
    %v1574 = vsel %vm1306, %v1478, 0
    %v1577 = vsel %vm1306, %v1479, 0
    %v1580 = vsel %vm1306, %v1480, 0
    %v1583 = vsel %vm1306, %v1481, 0
    %v1586 = vsel %vm1306, %v1482, 0
    %1588 = vmatpush.msra.mxu0 0.0
    %1589 = vmatpush.msra.mxu0 0.0
    %1590 = vmatpush.msra.mxu0 0.0
    %1591 = vmatpush.msra.mxu0 0.0
    %1592 = vmatpush.msra.mxu0 0.0
    %1593 = vmatpush.msra.mxu0 0.0
    %1594 = vmatpush.msra.mxu0 0.0
    %1595 = vmatpush.msra.mxu0 0.0
    %1596 = vmatpush.msra.mxu0 %v1116
    %1597 = vmatpush.msra.mxu0 %v1113
    %1598 = vmatpush.msra.mxu0 %v1110
    %1599 = vmatpush.msra.mxu0 %v1107
    %1600 = vmatpush.msra.mxu0 %v1104
    %1601 = vmatpush.msra.mxu0 %v1101
    %1602 = vmatpush.msra.mxu0 %v1098
    %1603 = vmatpush.msra.mxu0 %v1095
    %1604 = vmatmul.f32.gmra.mxu0 %v1565
    %v1605 = vpop.f32.mrf.mxu0
    %v1606 = vadd.f32 0.0, %v1605
    %1607 = vmatmul.f32.gmra.mxu0 %v1568
    %v1608 = vpop.f32.mrf.mxu0
    %v1609 = vadd.f32 0.0, %v1608
    %1610 = vmatmul.f32.gmra.mxu0 %v1571
    %v1611 = vpop.f32.mrf.mxu0
    %v1612 = vadd.f32 0.0, %v1611
    %1613 = vmatmul.f32.gmra.mxu0 %v1574
    %v1614 = vpop.f32.mrf.mxu0
    %v1615 = vadd.f32 0.0, %v1614
    %1616 = vmatmul.f32.gmra.mxu0 %v1577
    %v1617 = vpop.f32.mrf.mxu0
    %v1618 = vadd.f32 0.0, %v1617
    %1619 = vmatmul.f32.gmra.mxu0 %v1580
    %v1620 = vpop.f32.mrf.mxu0
    %v1621 = vadd.f32 0.0, %v1620
    %1622 = vmatmul.f32.gmra.mxu0 %v1583
    %v1623 = vpop.f32.mrf.mxu0
    %v1624 = vadd.f32 0.0, %v1623
    %1625 = vmatmul.f32.gmra.mxu0 %v1586
    %v1626 = vpop.f32.mrf.mxu0
    %v1627 = vadd.f32 0.0, %v1626
    %1628 = vdwg.mxu0
    %v1630 = vsel %vm1127, %v1541, 0
    %v1633 = vsel %vm1127, %v1544, 0
    %v1636 = vsel %vm1127, %v1547, 0
    %v1639 = vsel %vm1127, %v1550, 0
    %v1642 = vsel %vm1127, %v1553, 0
    %v1645 = vsel %vm1127, %v1556, 0
    %v1648 = vsel %vm1127, %v1559, 0
    %v1651 = vsel %vm1127, %v1562, 0
    %v1654 = vsel %vm1127, %v1606, 0
    %v1657 = vsel %vm1127, %v1609, 0
    %v1660 = vsel %vm1127, %v1612, 0
    %v1663 = vsel %vm1127, %v1615, 0
    %v1666 = vsel %vm1127, %v1618, 0
    %v1669 = vsel %vm1127, %v1621, 0
    %v1672 = vsel %vm1127, %v1624, 0
    %v1675 = vsel %vm1127, %v1627, 0
    %1677 = vmatpush.msra.mxu0 0.0
    %1678 = vmatpush.msra.mxu0 0.0
    %1679 = vmatpush.msra.mxu0 0.0
    %1680 = vmatpush.msra.mxu0 0.0
    %1681 = vmatpush.msra.mxu0 0.0
    %1682 = vmatpush.msra.mxu0 0.0
    %1683 = vmatpush.msra.mxu0 0.0
    %1684 = vmatpush.msra.mxu0 0.0
    %1685 = vmatpush.msra.mxu0 0.0
    %1686 = vmatpush.msra.mxu0 0.0
    %1687 = vmatpush.msra.mxu0 0.0
    %1688 = vmatpush.msra.mxu0 0.0
    %1689 = vmatpush.msra.mxu0 0.0
    %1690 = vmatpush.msra.mxu0 0.0
    %1691 = vmatpush.msra.mxu0 0.0
    %1692 = vmatpush.msra.mxu0 %v1118
    %1693 = vmatmul.f32.gmra.mxu0 %v1630
    %v1694 = vpop.f32.mrf.mxu0
    %v1695 = vadd.f32 0.0, %v1694
    %1696 = vmatmul.f32.gmra.mxu0 %v1633
    %v1697 = vpop.f32.mrf.mxu0
    %v1698 = vadd.f32 0.0, %v1697
    %1699 = vmatmul.f32.gmra.mxu0 %v1636
    %v1700 = vpop.f32.mrf.mxu0
    %v1701 = vadd.f32 0.0, %v1700
    %1702 = vmatmul.f32.gmra.mxu0 %v1639
    %v1703 = vpop.f32.mrf.mxu0
    %v1704 = vadd.f32 0.0, %v1703
    %1705 = vmatmul.f32.gmra.mxu0 %v1642
    %v1706 = vpop.f32.mrf.mxu0
    %v1707 = vadd.f32 0.0, %v1706
    %1708 = vmatmul.f32.gmra.mxu0 %v1645
    %v1709 = vpop.f32.mrf.mxu0
    %v1710 = vadd.f32 0.0, %v1709
    %1711 = vmatmul.f32.gmra.mxu0 %v1648
    %v1712 = vpop.f32.mrf.mxu0
    %v1713 = vadd.f32 0.0, %v1712
    %1714 = vmatmul.f32.gmra.mxu0 %v1651
    %v1715 = vpop.f32.mrf.mxu0
    %v1716 = vadd.f32 0.0, %v1715
    %1717 = vmatmul.f32.gmra.mxu0 %v1654
    %v1718 = vpop.f32.mrf.mxu0
    %v1719 = vadd.f32 0.0, %v1718
    %1720 = vmatmul.f32.gmra.mxu0 %v1657
    %v1721 = vpop.f32.mrf.mxu0
    %v1722 = vadd.f32 0.0, %v1721
    %1723 = vmatmul.f32.gmra.mxu0 %v1660
    %v1724 = vpop.f32.mrf.mxu0
    %v1725 = vadd.f32 0.0, %v1724
    %1726 = vmatmul.f32.gmra.mxu0 %v1663
    %v1727 = vpop.f32.mrf.mxu0
    %v1728 = vadd.f32 0.0, %v1727
    %1729 = vmatmul.f32.gmra.mxu0 %v1666
    %v1730 = vpop.f32.mrf.mxu0
    %v1731 = vadd.f32 0.0, %v1730
    %1732 = vmatmul.f32.gmra.mxu0 %v1669
    %v1733 = vpop.f32.mrf.mxu0
    %v1734 = vadd.f32 0.0, %v1733
    %1735 = vmatmul.f32.gmra.mxu0 %v1672
    %v1736 = vpop.f32.mrf.mxu0
    %v1737 = vadd.f32 0.0, %v1736
    %1738 = vmatmul.f32.gmra.mxu0 %v1675
    %v1739 = vpop.f32.mrf.mxu0
    %v1740 = vadd.f32 0.0, %v1739
    %1741 = vdwg.mxu0
    %v1742 = vadd.f32 %v1126, %v1695
    %v1743 = vadd.f32 %v1126, %v1698
    %v1744 = vadd.f32 %v1126, %v1701
    %v1745 = vadd.f32 %v1126, %v1704
    %v1746 = vadd.f32 %v1126, %v1707
    %v1747 = vadd.f32 %v1126, %v1710
    %v1748 = vadd.f32 %v1126, %v1713
    %v1749 = vadd.f32 %v1126, %v1716
    %v1750 = vadd.f32 %v1126, %v1719
    %v1751 = vadd.f32 %v1126, %v1722
    %v1752 = vadd.f32 %v1126, %v1725
    %v1753 = vadd.f32 %v1126, %v1728
    %v1754 = vadd.f32 %v1126, %v1731
    %v1755 = vadd.f32 %v1126, %v1734
    %v1756 = vadd.f32 %v1126, %v1737
    %v1757 = vadd.f32 %v1126, %v1740
    %1758 = vrot.lane.b32.xlu0 %v507, 120
    %v1759 = vpop.permute.xlu0 %1758
    %1760 = vrot.lane.b32.xlu0 %v508, 120
    %v1761 = vpop.permute.xlu0 %1760
    %1762 = vrot.lane.b32.xlu0 %v509, 120
    %v1763 = vpop.permute.xlu0 %1762
    %1764 = vrot.lane.b32.xlu0 %v510, 120
    %v1765 = vpop.permute.xlu0 %1764
    %1766 = vrot.lane.b32.xlu0 %v511, 120
    %v1767 = vpop.permute.xlu0 %1766
    %1768 = vrot.lane.b32.xlu0 %v512, 120
    %v1769 = vpop.permute.xlu0 %1768
    %1770 = vrot.lane.b32.xlu0 %v513, 120
    %v1771 = vpop.permute.xlu0 %1770
    %1772 = vrot.lane.b32.xlu0 %v514, 120
    %v1773 = vpop.permute.xlu0 %1772
    %1774 = vrot.lane.b32.xlu0 %v910, 120
    %v1775 = vpop.permute.xlu0 %1774
    %1776 = vrot.lane.b32.xlu0 %v913, 120
    %v1777 = vpop.permute.xlu0 %1776
    %1778 = vrot.lane.b32.xlu0 %v916, 120
    %v1779 = vpop.permute.xlu0 %1778
    %1780 = vrot.lane.b32.xlu0 %v919, 120
    %v1781 = vpop.permute.xlu0 %1780
    %1782 = vrot.lane.b32.xlu0 %v922, 120
    %v1783 = vpop.permute.xlu0 %1782
    %1784 = vrot.lane.b32.xlu0 %v925, 120
    %v1785 = vpop.permute.xlu0 %1784
    %1786 = vrot.lane.b32.xlu0 %v928, 120
    %v1787 = vpop.permute.xlu0 %1786
    %1788 = vrot.lane.b32.xlu0 %v931, 120
    %v1789 = vpop.permute.xlu0 %1788
    %v1790 = vsel %vm1127, %v1759, 0
    %v1792 = vsel %vm1127, %v1761, 0
    %v1794 = vsel %vm1127, %v1763, 0
    %v1796 = vsel %vm1127, %v1765, 0
    %v1798 = vsel %vm1127, %v1767, 0
    %v1800 = vsel %vm1127, %v1769, 0
    %v1802 = vsel %vm1127, %v1771, 0
    %v1804 = vsel %vm1127, %v1773, 0
    %v1806 = vsel %vm1127, %v1775, 0
    %v1808 = vsel %vm1127, %v1777, 0
    %v1810 = vsel %vm1127, %v1779, 0
    %v1812 = vsel %vm1127, %v1781, 0
    %v1814 = vsel %vm1127, %v1783, 0
    %v1816 = vsel %vm1127, %v1785, 0
    %v1818 = vsel %vm1127, %v1787, 0
    %v1820 = vsel %vm1127, %v1789, 0
    %1822 = vmatpush.xpose.msra.mxu0 0.0
    %1823 = vmatpush.xpose.msra.mxu0 0.0
    %1824 = vmatpush.xpose.msra.mxu0 0.0
    %1825 = vmatpush.xpose.msra.mxu0 0.0
    %1826 = vmatpush.xpose.msra.mxu0 0.0
    %1827 = vmatpush.xpose.msra.mxu0 0.0
    %1828 = vmatpush.xpose.msra.mxu0 0.0
    %1829 = vmatpush.xpose.msra.mxu0 0.0
    %1830 = vmatpush.xpose.msra.mxu0 %v1820
    %1831 = vmatpush.xpose.msra.mxu0 %v1818
    %1832 = vmatpush.xpose.msra.mxu0 %v1816
    %1833 = vmatpush.xpose.msra.mxu0 %v1814
    %1834 = vmatpush.xpose.msra.mxu0 %v1812
    %1835 = vmatpush.xpose.msra.mxu0 %v1810
    %1836 = vmatpush.xpose.msra.mxu0 %v1808
    %1837 = vmatpush.xpose.msra.mxu0 %v1806
    %1838 = vmatmul.f32.gmra.mxu0 %v1790
    %v1839 = vpop.f32.mrf.mxu0
    %v1840 = vadd.f32 0.0, %v1839
    %1841 = vmatmul.f32.gmra.mxu0 %v1792
    %v1842 = vpop.f32.mrf.mxu0
    %v1843 = vadd.f32 0.0, %v1842
    %1844 = vmatmul.f32.gmra.mxu0 %v1794
    %v1845 = vpop.f32.mrf.mxu0
    %v1846 = vadd.f32 0.0, %v1845
    %1847 = vmatmul.f32.gmra.mxu0 %v1796
    %v1848 = vpop.f32.mrf.mxu0
    %v1849 = vadd.f32 0.0, %v1848
    %1850 = vmatmul.f32.gmra.mxu0 %v1798
    %v1851 = vpop.f32.mrf.mxu0
    %v1852 = vadd.f32 0.0, %v1851
    %1853 = vmatmul.f32.gmra.mxu0 %v1800
    %v1854 = vpop.f32.mrf.mxu0
    %v1855 = vadd.f32 0.0, %v1854
    %1856 = vmatmul.f32.gmra.mxu0 %v1802
    %v1857 = vpop.f32.mrf.mxu0
    %v1858 = vadd.f32 0.0, %v1857
    %1859 = vmatmul.f32.gmra.mxu0 %v1804
    %v1860 = vpop.f32.mrf.mxu0
    %v1861 = vadd.f32 0.0, %v1860
    %1862 = vdwg.mxu0
    %1863 = vrot.lane.b32.xlu0 %v515, 120
    %v1864 = vpop.permute.xlu0 %1863
    %1865 = vrot.lane.b32.xlu0 %v516, 120
    %v1866 = vpop.permute.xlu0 %1865
    %1867 = vrot.lane.b32.xlu0 %v517, 120
    %v1868 = vpop.permute.xlu0 %1867
    %1869 = vrot.lane.b32.xlu0 %v518, 120
    %v1870 = vpop.permute.xlu0 %1869
    %1871 = vrot.lane.b32.xlu0 %v519, 120
    %v1872 = vpop.permute.xlu0 %1871
    %1873 = vrot.lane.b32.xlu0 %v520, 120
    %v1874 = vpop.permute.xlu0 %1873
    %1875 = vrot.lane.b32.xlu0 %v521, 120
    %v1876 = vpop.permute.xlu0 %1875
    %1877 = vrot.lane.b32.xlu0 %v522, 120
    %v1878 = vpop.permute.xlu0 %1877
    %1879 = vrot.lane.b32.xlu0 %v934, 120
    %v1880 = vpop.permute.xlu0 %1879
    %1881 = vrot.lane.b32.xlu0 %v937, 120
    %v1882 = vpop.permute.xlu0 %1881
    %1883 = vrot.lane.b32.xlu0 %v940, 120
    %v1884 = vpop.permute.xlu0 %1883
    %1885 = vrot.lane.b32.xlu0 %v943, 120
    %v1886 = vpop.permute.xlu0 %1885
    %1887 = vrot.lane.b32.xlu0 %v946, 120
    %v1888 = vpop.permute.xlu0 %1887
    %1889 = vrot.lane.b32.xlu0 %v949, 120
    %v1890 = vpop.permute.xlu0 %1889
    %1891 = vrot.lane.b32.xlu0 %v952, 120
    %v1892 = vpop.permute.xlu0 %1891
    %1893 = vrot.lane.b32.xlu0 %v955, 120
    %v1894 = vpop.permute.xlu0 %1893
    %v1895 = vsel %vm1127, %v1864, 0
    %v1897 = vsel %vm1127, %v1866, 0
    %v1899 = vsel %vm1127, %v1868, 0
    %v1901 = vsel %vm1127, %v1870, 0
    %v1903 = vsel %vm1127, %v1872, 0
    %v1905 = vsel %vm1127, %v1874, 0
    %v1907 = vsel %vm1127, %v1876, 0
    %v1909 = vsel %vm1127, %v1878, 0
    %v1911 = vsel %vm1127, %v1880, 0
    %v1913 = vsel %vm1127, %v1882, 0
    %v1915 = vsel %vm1127, %v1884, 0
    %v1917 = vsel %vm1127, %v1886, 0
    %v1919 = vsel %vm1127, %v1888, 0
    %v1921 = vsel %vm1127, %v1890, 0
    %v1923 = vsel %vm1127, %v1892, 0
    %v1925 = vsel %vm1127, %v1894, 0
    %1927 = vmatpush.xpose.msra.mxu0 0.0
    %1928 = vmatpush.xpose.msra.mxu0 0.0
    %1929 = vmatpush.xpose.msra.mxu0 0.0
    %1930 = vmatpush.xpose.msra.mxu0 0.0
    %1931 = vmatpush.xpose.msra.mxu0 0.0
    %1932 = vmatpush.xpose.msra.mxu0 0.0
    %1933 = vmatpush.xpose.msra.mxu0 0.0
    %1934 = vmatpush.xpose.msra.mxu0 0.0
    %1935 = vmatpush.xpose.msra.mxu0 %v1925
    %1936 = vmatpush.xpose.msra.mxu0 %v1923
    %1937 = vmatpush.xpose.msra.mxu0 %v1921
    %1938 = vmatpush.xpose.msra.mxu0 %v1919
    %1939 = vmatpush.xpose.msra.mxu0 %v1917
    %1940 = vmatpush.xpose.msra.mxu0 %v1915
    %1941 = vmatpush.xpose.msra.mxu0 %v1913
    %1942 = vmatpush.xpose.msra.mxu0 %v1911
    %1943 = vmatmul.f32.gmra.mxu0 %v1895
    %v1944 = vpop.f32.mrf.mxu0
    %v1945 = vadd.f32 0.0, %v1944
    %1946 = vmatmul.f32.gmra.mxu0 %v1897
    %v1947 = vpop.f32.mrf.mxu0
    %v1948 = vadd.f32 0.0, %v1947
    %1949 = vmatmul.f32.gmra.mxu0 %v1899
    %v1950 = vpop.f32.mrf.mxu0
    %v1951 = vadd.f32 0.0, %v1950
    %1952 = vmatmul.f32.gmra.mxu0 %v1901
    %v1953 = vpop.f32.mrf.mxu0
    %v1954 = vadd.f32 0.0, %v1953
    %1955 = vmatmul.f32.gmra.mxu0 %v1903
    %v1956 = vpop.f32.mrf.mxu0
    %v1957 = vadd.f32 0.0, %v1956
    %1958 = vmatmul.f32.gmra.mxu0 %v1905
    %v1959 = vpop.f32.mrf.mxu0
    %v1960 = vadd.f32 0.0, %v1959
    %1961 = vmatmul.f32.gmra.mxu0 %v1907
    %v1962 = vpop.f32.mrf.mxu0
    %v1963 = vadd.f32 0.0, %v1962
    %1964 = vmatmul.f32.gmra.mxu0 %v1909
    %v1965 = vpop.f32.mrf.mxu0
    %v1966 = vadd.f32 0.0, %v1965
    %1967 = vdwg.mxu0
    %v1968 = vsel %vm1306, %v1840, -inf
    %1969 = vmax.xlane.f32.xlu0 %v1968
    %v1970 = vpop.xlane.xlu0 %1969
    %v1971 = vsel %vm1306, %v1843, -inf
    %1972 = vmax.xlane.f32.xlu0 %v1971
    %v1973 = vpop.xlane.xlu0 %1972
    %v1974 = vsel %vm1306, %v1846, -inf
    %1975 = vmax.xlane.f32.xlu0 %v1974
    %v1976 = vpop.xlane.xlu0 %1975
    %v1977 = vsel %vm1306, %v1849, -inf
    %1978 = vmax.xlane.f32.xlu0 %v1977
    %v1979 = vpop.xlane.xlu0 %1978
    %v1980 = vsel %vm1306, %v1852, -inf
    %1981 = vmax.xlane.f32.xlu0 %v1980
    %v1982 = vpop.xlane.xlu0 %1981
    %v1983 = vsel %vm1306, %v1855, -inf
    %1984 = vmax.xlane.f32.xlu0 %v1983
    %v1985 = vpop.xlane.xlu0 %1984
    %v1986 = vsel %vm1306, %v1858, -inf
    %1987 = vmax.xlane.f32.xlu0 %v1986
    %v1988 = vpop.xlane.xlu0 %1987
    %v1989 = vsel %vm1306, %v1861, -inf
    %1990 = vmax.xlane.f32.xlu0 %v1989
    %v1991 = vpop.xlane.xlu0 %1990
    %v1992 = vsel %vm1306, %v1945, -inf
    %1993 = vmax.xlane.f32.xlu0 %v1992
    %v1994 = vpop.xlane.xlu0 %1993
    %v1995 = vsel %vm1306, %v1948, -inf
    %1996 = vmax.xlane.f32.xlu0 %v1995
    %v1997 = vpop.xlane.xlu0 %1996
    %v1998 = vsel %vm1306, %v1951, -inf
    %1999 = vmax.xlane.f32.xlu0 %v1998
    %v2000 = vpop.xlane.xlu0 %1999
    %v2001 = vsel %vm1306, %v1954, -inf
    %2002 = vmax.xlane.f32.xlu0 %v2001
    %v2003 = vpop.xlane.xlu0 %2002
    %v2004 = vsel %vm1306, %v1957, -inf
    %2005 = vmax.xlane.f32.xlu0 %v2004
    %v2006 = vpop.xlane.xlu0 %2005
    %v2007 = vsel %vm1306, %v1960, -inf
    %2008 = vmax.xlane.f32.xlu0 %v2007
    %v2009 = vpop.xlane.xlu0 %2008
    %v2010 = vsel %vm1306, %v1963, -inf
    %2011 = vmax.xlane.f32.xlu0 %v2010
    %v2012 = vpop.xlane.xlu0 %2011
    %v2013 = vsel %vm1306, %v1966, -inf
    %2014 = vmax.xlane.f32.xlu0 %v2013
    %v2015 = vpop.xlane.xlu0 %2014
    %v2016 = vsub.f32 %v1840, %v1970
    %v2017 = vsub.f32 %v1843, %v1973
    %v2018 = vsub.f32 %v1846, %v1976
    %v2019 = vsub.f32 %v1849, %v1979
    %v2020 = vsub.f32 %v1852, %v1982
    %v2021 = vsub.f32 %v1855, %v1985
    %v2022 = vsub.f32 %v1858, %v1988
    %v2023 = vsub.f32 %v1861, %v1991
    %v2024 = vsub.f32 %v1945, %v1994
    %v2025 = vsub.f32 %v1948, %v1997
    %v2026 = vsub.f32 %v1951, %v2000
    %v2027 = vsub.f32 %v1954, %v2003
    %v2028 = vsub.f32 %v1957, %v2006
    %v2029 = vsub.f32 %v1960, %v2009
    %v2030 = vsub.f32 %v1963, %v2012
    %v2031 = vsub.f32 %v1966, %v2015
    %v2032 = vmul.f32 %v2016, 1.442695
    %v2033 = vpow.pop %v2032
    %v2034 = vmul.f32 %v2017, 1.442695
    %v2035 = vpow.pop %v2034
    %v2036 = vmul.f32 %v2018, 1.442695
    %v2037 = vpow.pop %v2036
    %v2038 = vmul.f32 %v2019, 1.442695
    %v2039 = vpow.pop %v2038
    %v2040 = vmul.f32 %v2020, 1.442695
    %v2041 = vpow.pop %v2040
    %v2042 = vmul.f32 %v2021, 1.442695
    %v2043 = vpow.pop %v2042
    %v2044 = vmul.f32 %v2022, 1.442695
    %v2045 = vpow.pop %v2044
    %v2046 = vmul.f32 %v2023, 1.442695
    %v2047 = vpow.pop %v2046
    %v2048 = vmul.f32 %v2024, 1.442695
    %v2049 = vpow.pop %v2048
    %v2050 = vmul.f32 %v2025, 1.442695
    %v2051 = vpow.pop %v2050
    %v2052 = vmul.f32 %v2026, 1.442695
    %v2053 = vpow.pop %v2052
    %v2054 = vmul.f32 %v2027, 1.442695
    %v2055 = vpow.pop %v2054
    %v2056 = vmul.f32 %v2028, 1.442695
    %v2057 = vpow.pop %v2056
    %v2058 = vmul.f32 %v2029, 1.442695
    %v2059 = vpow.pop %v2058
    %v2060 = vmul.f32 %v2030, 1.442695
    %v2061 = vpow.pop %v2060
    %v2062 = vmul.f32 %v2031, 1.442695
    %v2063 = vpow.pop %v2062
    %v2064 = vsel %vm1306, %v2033, 0.0
    %2065 = vadd.xlane.f32.xlu0 %v2064
    %v2066 = vpop.xlane.xlu0 %2065
    %v2067 = vsel %vm1306, %v2035, 0.0
    %2068 = vadd.xlane.f32.xlu0 %v2067
    %v2069 = vpop.xlane.xlu0 %2068
    %v2070 = vsel %vm1306, %v2037, 0.0
    %2071 = vadd.xlane.f32.xlu0 %v2070
    %v2072 = vpop.xlane.xlu0 %2071
    %v2073 = vsel %vm1306, %v2039, 0.0
    %2074 = vadd.xlane.f32.xlu0 %v2073
    %v2075 = vpop.xlane.xlu0 %2074
    %v2076 = vsel %vm1306, %v2041, 0.0
    %2077 = vadd.xlane.f32.xlu0 %v2076
    %v2078 = vpop.xlane.xlu0 %2077
    %v2079 = vsel %vm1306, %v2043, 0.0
    %2080 = vadd.xlane.f32.xlu0 %v2079
    %v2081 = vpop.xlane.xlu0 %2080
    %v2082 = vsel %vm1306, %v2045, 0.0
    %2083 = vadd.xlane.f32.xlu0 %v2082
    %v2084 = vpop.xlane.xlu0 %2083
    %v2085 = vsel %vm1306, %v2047, 0.0
    %2086 = vadd.xlane.f32.xlu0 %v2085
    %v2087 = vpop.xlane.xlu0 %2086
    %v2088 = vsel %vm1306, %v2049, 0.0
    %2089 = vadd.xlane.f32.xlu0 %v2088
    %v2090 = vpop.xlane.xlu0 %2089
    %v2091 = vsel %vm1306, %v2051, 0.0
    %2092 = vadd.xlane.f32.xlu0 %v2091
    %v2093 = vpop.xlane.xlu0 %2092
    %v2094 = vsel %vm1306, %v2053, 0.0
    %2095 = vadd.xlane.f32.xlu0 %v2094
    %v2096 = vpop.xlane.xlu0 %2095
    %v2097 = vsel %vm1306, %v2055, 0.0
    %2098 = vadd.xlane.f32.xlu0 %v2097
    %v2099 = vpop.xlane.xlu0 %2098
    %v2100 = vsel %vm1306, %v2057, 0.0
    %2101 = vadd.xlane.f32.xlu0 %v2100
    %v2102 = vpop.xlane.xlu0 %2101
    %v2103 = vsel %vm1306, %v2059, 0.0
    %2104 = vadd.xlane.f32.xlu0 %v2103
    %v2105 = vpop.xlane.xlu0 %2104
    %v2106 = vsel %vm1306, %v2061, 0.0
    %2107 = vadd.xlane.f32.xlu0 %v2106
    %v2108 = vpop.xlane.xlu0 %2107
    %v2109 = vsel %vm1306, %v2063, 0.0
    %2110 = vadd.xlane.f32.xlu0 %v2109
    %v2111 = vpop.xlane.xlu0 %2110
    %v2112 = vrcp.pop %v2066
    %v2113 = vrcp.pop %v2069
    %v2114 = vrcp.pop %v2072
    %v2115 = vrcp.pop %v2075
    %v2116 = vrcp.pop %v2078
    %v2117 = vrcp.pop %v2081
    %v2118 = vrcp.pop %v2084
    %v2119 = vrcp.pop %v2087
    %v2120 = vrcp.pop %v2090
    %v2121 = vrcp.pop %v2093
    %v2122 = vrcp.pop %v2096
    %v2123 = vrcp.pop %v2099
    %v2124 = vrcp.pop %v2102
    %v2125 = vrcp.pop %v2105
    %v2126 = vrcp.pop %v2108
    %v2127 = vrcp.pop %v2111
    %v2128 = vmul.f32 %v2033, %v2112
    %v2129 = vmul.f32 %v2035, %v2113
    %v2130 = vmul.f32 %v2037, %v2114
    %v2131 = vmul.f32 %v2039, %v2115
    %v2132 = vmul.f32 %v2041, %v2116
    %v2133 = vmul.f32 %v2043, %v2117
    %v2134 = vmul.f32 %v2045, %v2118
    %v2135 = vmul.f32 %v2047, %v2119
    %v2136 = vmul.f32 %v2049, %v2120
    %v2137 = vmul.f32 %v2051, %v2121
    %v2138 = vmul.f32 %v2053, %v2122
    %v2139 = vmul.f32 %v2055, %v2123
    %v2140 = vmul.f32 %v2057, %v2124
    %v2141 = vmul.f32 %v2059, %v2125
    %v2142 = vmul.f32 %v2061, %v2126
    %v2143 = vmul.f32 %v2063, %v2127
    %v2144 = vadd.f32 %v1483, %v2128
    %v2145 = vadd.f32 %v1484, %v2129
    %v2146 = vadd.f32 %v1485, %v2130
    %v2147 = vadd.f32 %v1486, %v2131
    %v2148 = vadd.f32 %v1487, %v2132
    %v2149 = vadd.f32 %v1488, %v2133
    %v2150 = vadd.f32 %v1489, %v2134
    %v2151 = vadd.f32 %v1490, %v2135
    %v2152 = vadd.f32 %v1491, %v2136
    %v2153 = vadd.f32 %v1492, %v2137
    %v2154 = vadd.f32 %v1493, %v2138
    %v2155 = vadd.f32 %v1494, %v2139
    %v2156 = vadd.f32 %v1495, %v2140
    %v2157 = vadd.f32 %v1496, %v2141
    %v2158 = vadd.f32 %v1497, %v2142
    %v2159 = vadd.f32 %v1498, %v2143
    %2168 = vrot.lane.b32.xlu0 %v1071, 120
    %v2169 = vpop.permute.xlu0 %2168
    %2170 = vrot.lane.b32.xlu0 %v1074, 120
    %v2171 = vpop.permute.xlu0 %2170
    %2172 = vrot.lane.b32.xlu0 %v1077, 120
    %v2173 = vpop.permute.xlu0 %2172
    %2174 = vrot.lane.b32.xlu0 %v1080, 120
    %v2175 = vpop.permute.xlu0 %2174
    %2176 = vrot.lane.b32.xlu0 %v1083, 120
    %v2177 = vpop.permute.xlu0 %2176
    %2178 = vrot.lane.b32.xlu0 %v1086, 120
    %v2179 = vpop.permute.xlu0 %2178
    %2180 = vrot.lane.b32.xlu0 %v1089, 120
    %v2181 = vpop.permute.xlu0 %2180
    %2182 = vrot.lane.b32.xlu0 %v1092, 120
    %v2183 = vpop.permute.xlu0 %2182
    %v2193 = vsel %vm1306, %v2128, 0
    %v2196 = vsel %vm1306, %v2129, 0
    %v2199 = vsel %vm1306, %v2130, 0
    %v2202 = vsel %vm1306, %v2131, 0
    %v2205 = vsel %vm1306, %v2132, 0
    %v2208 = vsel %vm1306, %v2133, 0
    %v2211 = vsel %vm1306, %v2134, 0
    %v2214 = vsel %vm1306, %v2135, 0
    %2216 = vmatpush.msra.mxu0 0.0
    %2217 = vmatpush.msra.mxu0 0.0
    %2218 = vmatpush.msra.mxu0 0.0
    %2219 = vmatpush.msra.mxu0 0.0
    %2220 = vmatpush.msra.mxu0 0.0
    %2221 = vmatpush.msra.mxu0 0.0
    %2222 = vmatpush.msra.mxu0 0.0
    %2223 = vmatpush.msra.mxu0 0.0
    %2224 = vmatpush.msra.mxu0 %v2183
    %2225 = vmatpush.msra.mxu0 %v2181
    %2226 = vmatpush.msra.mxu0 %v2179
    %2227 = vmatpush.msra.mxu0 %v2177
    %2228 = vmatpush.msra.mxu0 %v2175
    %2229 = vmatpush.msra.mxu0 %v2173
    %2230 = vmatpush.msra.mxu0 %v2171
    %2231 = vmatpush.msra.mxu0 %v2169
    %2232 = vmatmul.f32.gmra.mxu0 %v2193
    %v2233 = vpop.f32.mrf.mxu0
    %v2234 = vadd.f32 0.0, %v2233
    %2235 = vmatmul.f32.gmra.mxu0 %v2196
    %v2236 = vpop.f32.mrf.mxu0
    %v2237 = vadd.f32 0.0, %v2236
    %2238 = vmatmul.f32.gmra.mxu0 %v2199
    %v2239 = vpop.f32.mrf.mxu0
    %v2240 = vadd.f32 0.0, %v2239
    %2241 = vmatmul.f32.gmra.mxu0 %v2202
    %v2242 = vpop.f32.mrf.mxu0
    %v2243 = vadd.f32 0.0, %v2242
    %2244 = vmatmul.f32.gmra.mxu0 %v2205
    %v2245 = vpop.f32.mrf.mxu0
    %v2246 = vadd.f32 0.0, %v2245
    %2247 = vmatmul.f32.gmra.mxu0 %v2208
    %v2248 = vpop.f32.mrf.mxu0
    %v2249 = vadd.f32 0.0, %v2248
    %2250 = vmatmul.f32.gmra.mxu0 %v2211
    %v2251 = vpop.f32.mrf.mxu0
    %v2252 = vadd.f32 0.0, %v2251
    %2253 = vmatmul.f32.gmra.mxu0 %v2214
    %v2254 = vpop.f32.mrf.mxu0
    %v2255 = vadd.f32 0.0, %v2254
    %2256 = vdwg.mxu0
    %2265 = vrot.lane.b32.xlu0 %v1095, 120
    %v2266 = vpop.permute.xlu0 %2265
    %2267 = vrot.lane.b32.xlu0 %v1098, 120
    %v2268 = vpop.permute.xlu0 %2267
    %2269 = vrot.lane.b32.xlu0 %v1101, 120
    %v2270 = vpop.permute.xlu0 %2269
    %2271 = vrot.lane.b32.xlu0 %v1104, 120
    %v2272 = vpop.permute.xlu0 %2271
    %2273 = vrot.lane.b32.xlu0 %v1107, 120
    %v2274 = vpop.permute.xlu0 %2273
    %2275 = vrot.lane.b32.xlu0 %v1110, 120
    %v2276 = vpop.permute.xlu0 %2275
    %2277 = vrot.lane.b32.xlu0 %v1113, 120
    %v2278 = vpop.permute.xlu0 %2277
    %2279 = vrot.lane.b32.xlu0 %v1116, 120
    %v2280 = vpop.permute.xlu0 %2279
    %v2290 = vsel %vm1306, %v2136, 0
    %v2293 = vsel %vm1306, %v2137, 0
    %v2296 = vsel %vm1306, %v2138, 0
    %v2299 = vsel %vm1306, %v2139, 0
    %v2302 = vsel %vm1306, %v2140, 0
    %v2305 = vsel %vm1306, %v2141, 0
    %v2308 = vsel %vm1306, %v2142, 0
    %v2311 = vsel %vm1306, %v2143, 0
    %2313 = vmatpush.msra.mxu0 0.0
    %2314 = vmatpush.msra.mxu0 0.0
    %2315 = vmatpush.msra.mxu0 0.0
    %2316 = vmatpush.msra.mxu0 0.0
    %2317 = vmatpush.msra.mxu0 0.0
    %2318 = vmatpush.msra.mxu0 0.0
    %2319 = vmatpush.msra.mxu0 0.0
    %2320 = vmatpush.msra.mxu0 0.0
    %2321 = vmatpush.msra.mxu0 %v2280
    %2322 = vmatpush.msra.mxu0 %v2278
    %2323 = vmatpush.msra.mxu0 %v2276
    %2324 = vmatpush.msra.mxu0 %v2274
    %2325 = vmatpush.msra.mxu0 %v2272
    %2326 = vmatpush.msra.mxu0 %v2270
    %2327 = vmatpush.msra.mxu0 %v2268
    %2328 = vmatpush.msra.mxu0 %v2266
    %2329 = vmatmul.f32.gmra.mxu0 %v2290
    %v2330 = vpop.f32.mrf.mxu0
    %v2331 = vadd.f32 0.0, %v2330
    %2332 = vmatmul.f32.gmra.mxu0 %v2293
    %v2333 = vpop.f32.mrf.mxu0
    %v2334 = vadd.f32 0.0, %v2333
    %2335 = vmatmul.f32.gmra.mxu0 %v2296
    %v2336 = vpop.f32.mrf.mxu0
    %v2337 = vadd.f32 0.0, %v2336
    %2338 = vmatmul.f32.gmra.mxu0 %v2299
    %v2339 = vpop.f32.mrf.mxu0
    %v2340 = vadd.f32 0.0, %v2339
    %2341 = vmatmul.f32.gmra.mxu0 %v2302
    %v2342 = vpop.f32.mrf.mxu0
    %v2343 = vadd.f32 0.0, %v2342
    %2344 = vmatmul.f32.gmra.mxu0 %v2305
    %v2345 = vpop.f32.mrf.mxu0
    %v2346 = vadd.f32 0.0, %v2345
    %2347 = vmatmul.f32.gmra.mxu0 %v2308
    %v2348 = vpop.f32.mrf.mxu0
    %v2349 = vadd.f32 0.0, %v2348
    %2350 = vmatmul.f32.gmra.mxu0 %v2311
    %v2351 = vpop.f32.mrf.mxu0
    %v2352 = vadd.f32 0.0, %v2351
    %2353 = vdwg.mxu0
    %v2355 = vsel %vm1127, %v2234, 0
    %v2358 = vsel %vm1127, %v2237, 0
    %v2361 = vsel %vm1127, %v2240, 0
    %v2364 = vsel %vm1127, %v2243, 0
    %v2367 = vsel %vm1127, %v2246, 0
    %v2370 = vsel %vm1127, %v2249, 0
    %v2373 = vsel %vm1127, %v2252, 0
    %v2376 = vsel %vm1127, %v2255, 0
    %v2379 = vsel %vm1127, %v2331, 0
    %v2382 = vsel %vm1127, %v2334, 0
    %v2385 = vsel %vm1127, %v2337, 0
    %v2388 = vsel %vm1127, %v2340, 0
    %v2391 = vsel %vm1127, %v2343, 0
    %v2394 = vsel %vm1127, %v2346, 0
    %v2397 = vsel %vm1127, %v2349, 0
    %v2400 = vsel %vm1127, %v2352, 0
    %2402 = vmatpush.msra.mxu0 0.0
    %2403 = vmatpush.msra.mxu0 0.0
    %2404 = vmatpush.msra.mxu0 0.0
    %2405 = vmatpush.msra.mxu0 0.0
    %2406 = vmatpush.msra.mxu0 0.0
    %2407 = vmatpush.msra.mxu0 0.0
    %2408 = vmatpush.msra.mxu0 0.0
    %2409 = vmatpush.msra.mxu0 0.0
    %2410 = vmatpush.msra.mxu0 0.0
    %2411 = vmatpush.msra.mxu0 0.0
    %2412 = vmatpush.msra.mxu0 0.0
    %2413 = vmatpush.msra.mxu0 0.0
    %2414 = vmatpush.msra.mxu0 0.0
    %2415 = vmatpush.msra.mxu0 0.0
    %2416 = vmatpush.msra.mxu0 0.0
    %2417 = vmatpush.msra.mxu0 %v1119
    %2418 = vmatmul.f32.gmra.mxu0 %v2355
    %v2419 = vpop.f32.mrf.mxu0
    %v2420 = vadd.f32 0.0, %v2419
    %2421 = vmatmul.f32.gmra.mxu0 %v2358
    %v2422 = vpop.f32.mrf.mxu0
    %v2423 = vadd.f32 0.0, %v2422
    %2424 = vmatmul.f32.gmra.mxu0 %v2361
    %v2425 = vpop.f32.mrf.mxu0
    %v2426 = vadd.f32 0.0, %v2425
    %2427 = vmatmul.f32.gmra.mxu0 %v2364
    %v2428 = vpop.f32.mrf.mxu0
    %v2429 = vadd.f32 0.0, %v2428
    %2430 = vmatmul.f32.gmra.mxu0 %v2367
    %v2431 = vpop.f32.mrf.mxu0
    %v2432 = vadd.f32 0.0, %v2431
    %2433 = vmatmul.f32.gmra.mxu0 %v2370
    %v2434 = vpop.f32.mrf.mxu0
    %v2435 = vadd.f32 0.0, %v2434
    %2436 = vmatmul.f32.gmra.mxu0 %v2373
    %v2437 = vpop.f32.mrf.mxu0
    %v2438 = vadd.f32 0.0, %v2437
    %2439 = vmatmul.f32.gmra.mxu0 %v2376
    %v2440 = vpop.f32.mrf.mxu0
    %v2441 = vadd.f32 0.0, %v2440
    %2442 = vmatmul.f32.gmra.mxu0 %v2379
    %v2443 = vpop.f32.mrf.mxu0
    %v2444 = vadd.f32 0.0, %v2443
    %2445 = vmatmul.f32.gmra.mxu0 %v2382
    %v2446 = vpop.f32.mrf.mxu0
    %v2447 = vadd.f32 0.0, %v2446
    %2448 = vmatmul.f32.gmra.mxu0 %v2385
    %v2449 = vpop.f32.mrf.mxu0
    %v2450 = vadd.f32 0.0, %v2449
    %2451 = vmatmul.f32.gmra.mxu0 %v2388
    %v2452 = vpop.f32.mrf.mxu0
    %v2453 = vadd.f32 0.0, %v2452
    %2454 = vmatmul.f32.gmra.mxu0 %v2391
    %v2455 = vpop.f32.mrf.mxu0
    %v2456 = vadd.f32 0.0, %v2455
    %2457 = vmatmul.f32.gmra.mxu0 %v2394
    %v2458 = vpop.f32.mrf.mxu0
    %v2459 = vadd.f32 0.0, %v2458
    %2460 = vmatmul.f32.gmra.mxu0 %v2397
    %v2461 = vpop.f32.mrf.mxu0
    %v2462 = vadd.f32 0.0, %v2461
    %2463 = vmatmul.f32.gmra.mxu0 %v2400
    %v2464 = vpop.f32.mrf.mxu0
    %v2465 = vadd.f32 0.0, %v2464
    %2466 = vdwg.mxu0
    %v2467 = vadd.f32 %v1742, %v2420
    %v2468 = vadd.f32 %v1743, %v2423
    %v2469 = vadd.f32 %v1744, %v2426
    %v2470 = vadd.f32 %v1745, %v2429
    %v2471 = vadd.f32 %v1746, %v2432
    %v2472 = vadd.f32 %v1747, %v2435
    %v2473 = vadd.f32 %v1748, %v2438
    %v2474 = vadd.f32 %v1749, %v2441
    %v2475 = vadd.f32 %v1750, %v2444
    %v2476 = vadd.f32 %v1751, %v2447
    %v2477 = vadd.f32 %v1752, %v2450
    %v2478 = vadd.f32 %v1753, %v2453
    %v2479 = vadd.f32 %v1754, %v2456
    %v2480 = vadd.f32 %v1755, %v2459
    %v2481 = vadd.f32 %v1756, %v2462
    %v2482 = vadd.f32 %v1757, %v2465
    %2483 = vrot.lane.b32.xlu0 %v507, 112
    %v2484 = vpop.permute.xlu0 %2483
    %2485 = vrot.lane.b32.xlu0 %v508, 112
    %v2486 = vpop.permute.xlu0 %2485
    %2487 = vrot.lane.b32.xlu0 %v509, 112
    %v2488 = vpop.permute.xlu0 %2487
    %2489 = vrot.lane.b32.xlu0 %v510, 112
    %v2490 = vpop.permute.xlu0 %2489
    %2491 = vrot.lane.b32.xlu0 %v511, 112
    %v2492 = vpop.permute.xlu0 %2491
    %2493 = vrot.lane.b32.xlu0 %v512, 112
    %v2494 = vpop.permute.xlu0 %2493
    %2495 = vrot.lane.b32.xlu0 %v513, 112
    %v2496 = vpop.permute.xlu0 %2495
    %2497 = vrot.lane.b32.xlu0 %v514, 112
    %v2498 = vpop.permute.xlu0 %2497
    %2499 = vrot.lane.b32.xlu0 %v910, 112
    %v2500 = vpop.permute.xlu0 %2499
    %2501 = vrot.lane.b32.xlu0 %v913, 112
    %v2502 = vpop.permute.xlu0 %2501
    %2503 = vrot.lane.b32.xlu0 %v916, 112
    %v2504 = vpop.permute.xlu0 %2503
    %2505 = vrot.lane.b32.xlu0 %v919, 112
    %v2506 = vpop.permute.xlu0 %2505
    %2507 = vrot.lane.b32.xlu0 %v922, 112
    %v2508 = vpop.permute.xlu0 %2507
    %2509 = vrot.lane.b32.xlu0 %v925, 112
    %v2510 = vpop.permute.xlu0 %2509
    %2511 = vrot.lane.b32.xlu0 %v928, 112
    %v2512 = vpop.permute.xlu0 %2511
    %2513 = vrot.lane.b32.xlu0 %v931, 112
    %v2514 = vpop.permute.xlu0 %2513
    %v2515 = vsel %vm1127, %v2484, 0
    %v2517 = vsel %vm1127, %v2486, 0
    %v2519 = vsel %vm1127, %v2488, 0
    %v2521 = vsel %vm1127, %v2490, 0
    %v2523 = vsel %vm1127, %v2492, 0
    %v2525 = vsel %vm1127, %v2494, 0
    %v2527 = vsel %vm1127, %v2496, 0
    %v2529 = vsel %vm1127, %v2498, 0
    %v2531 = vsel %vm1127, %v2500, 0
    %v2533 = vsel %vm1127, %v2502, 0
    %v2535 = vsel %vm1127, %v2504, 0
    %v2537 = vsel %vm1127, %v2506, 0
    %v2539 = vsel %vm1127, %v2508, 0
    %v2541 = vsel %vm1127, %v2510, 0
    %v2543 = vsel %vm1127, %v2512, 0
    %v2545 = vsel %vm1127, %v2514, 0
    %2547 = vmatpush.xpose.msra.mxu0 0.0
    %2548 = vmatpush.xpose.msra.mxu0 0.0
    %2549 = vmatpush.xpose.msra.mxu0 0.0
    %2550 = vmatpush.xpose.msra.mxu0 0.0
    %2551 = vmatpush.xpose.msra.mxu0 0.0
    %2552 = vmatpush.xpose.msra.mxu0 0.0
    %2553 = vmatpush.xpose.msra.mxu0 0.0
    %2554 = vmatpush.xpose.msra.mxu0 0.0
    %2555 = vmatpush.xpose.msra.mxu0 %v2545
    %2556 = vmatpush.xpose.msra.mxu0 %v2543
    %2557 = vmatpush.xpose.msra.mxu0 %v2541
    %2558 = vmatpush.xpose.msra.mxu0 %v2539
    %2559 = vmatpush.xpose.msra.mxu0 %v2537
    %2560 = vmatpush.xpose.msra.mxu0 %v2535
    %2561 = vmatpush.xpose.msra.mxu0 %v2533
    %2562 = vmatpush.xpose.msra.mxu0 %v2531
    %2563 = vmatmul.f32.gmra.mxu0 %v2515
    %v2564 = vpop.f32.mrf.mxu0
    %v2565 = vadd.f32 0.0, %v2564
    %2566 = vmatmul.f32.gmra.mxu0 %v2517
    %v2567 = vpop.f32.mrf.mxu0
    %v2568 = vadd.f32 0.0, %v2567
    %2569 = vmatmul.f32.gmra.mxu0 %v2519
    %v2570 = vpop.f32.mrf.mxu0
    %v2571 = vadd.f32 0.0, %v2570
    %2572 = vmatmul.f32.gmra.mxu0 %v2521
    %v2573 = vpop.f32.mrf.mxu0
    %v2574 = vadd.f32 0.0, %v2573
    %2575 = vmatmul.f32.gmra.mxu0 %v2523
    %v2576 = vpop.f32.mrf.mxu0
    %v2577 = vadd.f32 0.0, %v2576
    %2578 = vmatmul.f32.gmra.mxu0 %v2525
    %v2579 = vpop.f32.mrf.mxu0
    %v2580 = vadd.f32 0.0, %v2579
    %2581 = vmatmul.f32.gmra.mxu0 %v2527
    %v2582 = vpop.f32.mrf.mxu0
    %v2583 = vadd.f32 0.0, %v2582
    %2584 = vmatmul.f32.gmra.mxu0 %v2529
    %v2585 = vpop.f32.mrf.mxu0
    %v2586 = vadd.f32 0.0, %v2585
    %2587 = vdwg.mxu0
    %2588 = vrot.lane.b32.xlu0 %v515, 112
    %v2589 = vpop.permute.xlu0 %2588
    %2590 = vrot.lane.b32.xlu0 %v516, 112
    %v2591 = vpop.permute.xlu0 %2590
    %2592 = vrot.lane.b32.xlu0 %v517, 112
    %v2593 = vpop.permute.xlu0 %2592
    %2594 = vrot.lane.b32.xlu0 %v518, 112
    %v2595 = vpop.permute.xlu0 %2594
    %2596 = vrot.lane.b32.xlu0 %v519, 112
    %v2597 = vpop.permute.xlu0 %2596
    %2598 = vrot.lane.b32.xlu0 %v520, 112
    %v2599 = vpop.permute.xlu0 %2598
    %2600 = vrot.lane.b32.xlu0 %v521, 112
    %v2601 = vpop.permute.xlu0 %2600
    %2602 = vrot.lane.b32.xlu0 %v522, 112
    %v2603 = vpop.permute.xlu0 %2602
    %2604 = vrot.lane.b32.xlu0 %v934, 112
    %v2605 = vpop.permute.xlu0 %2604
    %2606 = vrot.lane.b32.xlu0 %v937, 112
    %v2607 = vpop.permute.xlu0 %2606
    %2608 = vrot.lane.b32.xlu0 %v940, 112
    %v2609 = vpop.permute.xlu0 %2608
    %2610 = vrot.lane.b32.xlu0 %v943, 112
    %v2611 = vpop.permute.xlu0 %2610
    %2612 = vrot.lane.b32.xlu0 %v946, 112
    %v2613 = vpop.permute.xlu0 %2612
    %2614 = vrot.lane.b32.xlu0 %v949, 112
    %v2615 = vpop.permute.xlu0 %2614
    %2616 = vrot.lane.b32.xlu0 %v952, 112
    %v2617 = vpop.permute.xlu0 %2616
    %2618 = vrot.lane.b32.xlu0 %v955, 112
    %v2619 = vpop.permute.xlu0 %2618
    %v2620 = vsel %vm1127, %v2589, 0
    %v2622 = vsel %vm1127, %v2591, 0
    %v2624 = vsel %vm1127, %v2593, 0
    %v2626 = vsel %vm1127, %v2595, 0
    %v2628 = vsel %vm1127, %v2597, 0
    %v2630 = vsel %vm1127, %v2599, 0
    %v2632 = vsel %vm1127, %v2601, 0
    %v2634 = vsel %vm1127, %v2603, 0
    %v2636 = vsel %vm1127, %v2605, 0
    %v2638 = vsel %vm1127, %v2607, 0
    %v2640 = vsel %vm1127, %v2609, 0
    %v2642 = vsel %vm1127, %v2611, 0
    %v2644 = vsel %vm1127, %v2613, 0
    %v2646 = vsel %vm1127, %v2615, 0
    %v2648 = vsel %vm1127, %v2617, 0
    %v2650 = vsel %vm1127, %v2619, 0
    %2652 = vmatpush.xpose.msra.mxu0 0.0
    %2653 = vmatpush.xpose.msra.mxu0 0.0
    %2654 = vmatpush.xpose.msra.mxu0 0.0
    %2655 = vmatpush.xpose.msra.mxu0 0.0
    %2656 = vmatpush.xpose.msra.mxu0 0.0
    %2657 = vmatpush.xpose.msra.mxu0 0.0
    %2658 = vmatpush.xpose.msra.mxu0 0.0
    %2659 = vmatpush.xpose.msra.mxu0 0.0
    %2660 = vmatpush.xpose.msra.mxu0 %v2650
    %2661 = vmatpush.xpose.msra.mxu0 %v2648
    %2662 = vmatpush.xpose.msra.mxu0 %v2646
    %2663 = vmatpush.xpose.msra.mxu0 %v2644
    %2664 = vmatpush.xpose.msra.mxu0 %v2642
    %2665 = vmatpush.xpose.msra.mxu0 %v2640
    %2666 = vmatpush.xpose.msra.mxu0 %v2638
    %2667 = vmatpush.xpose.msra.mxu0 %v2636
    %2668 = vmatmul.f32.gmra.mxu0 %v2620
    %v2669 = vpop.f32.mrf.mxu0
    %v2670 = vadd.f32 0.0, %v2669
    %2671 = vmatmul.f32.gmra.mxu0 %v2622
    %v2672 = vpop.f32.mrf.mxu0
    %v2673 = vadd.f32 0.0, %v2672
    %2674 = vmatmul.f32.gmra.mxu0 %v2624
    %v2675 = vpop.f32.mrf.mxu0
    %v2676 = vadd.f32 0.0, %v2675
    %2677 = vmatmul.f32.gmra.mxu0 %v2626
    %v2678 = vpop.f32.mrf.mxu0
    %v2679 = vadd.f32 0.0, %v2678
    %2680 = vmatmul.f32.gmra.mxu0 %v2628
    %v2681 = vpop.f32.mrf.mxu0
    %v2682 = vadd.f32 0.0, %v2681
    %2683 = vmatmul.f32.gmra.mxu0 %v2630
    %v2684 = vpop.f32.mrf.mxu0
    %v2685 = vadd.f32 0.0, %v2684
    %2686 = vmatmul.f32.gmra.mxu0 %v2632
    %v2687 = vpop.f32.mrf.mxu0
    %v2688 = vadd.f32 0.0, %v2687
    %2689 = vmatmul.f32.gmra.mxu0 %v2634
    %v2690 = vpop.f32.mrf.mxu0
    %v2691 = vadd.f32 0.0, %v2690
    %2692 = vdwg.mxu0
    %v2693 = vsel %vm1306, %v2565, -inf
    %2694 = vmax.xlane.f32.xlu0 %v2693
    %v2695 = vpop.xlane.xlu0 %2694
    %v2696 = vsel %vm1306, %v2568, -inf
    %2697 = vmax.xlane.f32.xlu0 %v2696
    %v2698 = vpop.xlane.xlu0 %2697
    %v2699 = vsel %vm1306, %v2571, -inf
    %2700 = vmax.xlane.f32.xlu0 %v2699
    %v2701 = vpop.xlane.xlu0 %2700
    %v2702 = vsel %vm1306, %v2574, -inf
    %2703 = vmax.xlane.f32.xlu0 %v2702
    %v2704 = vpop.xlane.xlu0 %2703
    %v2705 = vsel %vm1306, %v2577, -inf
    %2706 = vmax.xlane.f32.xlu0 %v2705
    %v2707 = vpop.xlane.xlu0 %2706
    %v2708 = vsel %vm1306, %v2580, -inf
    %2709 = vmax.xlane.f32.xlu0 %v2708
    %v2710 = vpop.xlane.xlu0 %2709
    %v2711 = vsel %vm1306, %v2583, -inf
    %2712 = vmax.xlane.f32.xlu0 %v2711
    %v2713 = vpop.xlane.xlu0 %2712
    %v2714 = vsel %vm1306, %v2586, -inf
    %2715 = vmax.xlane.f32.xlu0 %v2714
    %v2716 = vpop.xlane.xlu0 %2715
    %v2717 = vsel %vm1306, %v2670, -inf
    %2718 = vmax.xlane.f32.xlu0 %v2717
    %v2719 = vpop.xlane.xlu0 %2718
    %v2720 = vsel %vm1306, %v2673, -inf
    %2721 = vmax.xlane.f32.xlu0 %v2720
    %v2722 = vpop.xlane.xlu0 %2721
    %v2723 = vsel %vm1306, %v2676, -inf
    %2724 = vmax.xlane.f32.xlu0 %v2723
    %v2725 = vpop.xlane.xlu0 %2724
    %v2726 = vsel %vm1306, %v2679, -inf
    %2727 = vmax.xlane.f32.xlu0 %v2726
    %v2728 = vpop.xlane.xlu0 %2727
    %v2729 = vsel %vm1306, %v2682, -inf
    %2730 = vmax.xlane.f32.xlu0 %v2729
    %v2731 = vpop.xlane.xlu0 %2730
    %v2732 = vsel %vm1306, %v2685, -inf
    %2733 = vmax.xlane.f32.xlu0 %v2732
    %v2734 = vpop.xlane.xlu0 %2733
    %v2735 = vsel %vm1306, %v2688, -inf
    %2736 = vmax.xlane.f32.xlu0 %v2735
    %v2737 = vpop.xlane.xlu0 %2736
    %v2738 = vsel %vm1306, %v2691, -inf
    %2739 = vmax.xlane.f32.xlu0 %v2738
    %v2740 = vpop.xlane.xlu0 %2739
    %v2741 = vsub.f32 %v2565, %v2695
    %v2742 = vsub.f32 %v2568, %v2698
    %v2743 = vsub.f32 %v2571, %v2701
    %v2744 = vsub.f32 %v2574, %v2704
    %v2745 = vsub.f32 %v2577, %v2707
    %v2746 = vsub.f32 %v2580, %v2710
    %v2747 = vsub.f32 %v2583, %v2713
    %v2748 = vsub.f32 %v2586, %v2716
    %v2749 = vsub.f32 %v2670, %v2719
    %v2750 = vsub.f32 %v2673, %v2722
    %v2751 = vsub.f32 %v2676, %v2725
    %v2752 = vsub.f32 %v2679, %v2728
    %v2753 = vsub.f32 %v2682, %v2731
    %v2754 = vsub.f32 %v2685, %v2734
    %v2755 = vsub.f32 %v2688, %v2737
    %v2756 = vsub.f32 %v2691, %v2740
    %v2757 = vmul.f32 %v2741, 1.442695
    %v2758 = vpow.pop %v2757
    %v2759 = vmul.f32 %v2742, 1.442695
    %v2760 = vpow.pop %v2759
    %v2761 = vmul.f32 %v2743, 1.442695
    %v2762 = vpow.pop %v2761
    %v2763 = vmul.f32 %v2744, 1.442695
    %v2764 = vpow.pop %v2763
    %v2765 = vmul.f32 %v2745, 1.442695
    %v2766 = vpow.pop %v2765
    %v2767 = vmul.f32 %v2746, 1.442695
    %v2768 = vpow.pop %v2767
    %v2769 = vmul.f32 %v2747, 1.442695
    %v2770 = vpow.pop %v2769
    %v2771 = vmul.f32 %v2748, 1.442695
    %v2772 = vpow.pop %v2771
    %v2773 = vmul.f32 %v2749, 1.442695
    %v2774 = vpow.pop %v2773
    %v2775 = vmul.f32 %v2750, 1.442695
    %v2776 = vpow.pop %v2775
    %v2777 = vmul.f32 %v2751, 1.442695
    %v2778 = vpow.pop %v2777
    %v2779 = vmul.f32 %v2752, 1.442695
    %v2780 = vpow.pop %v2779
    %v2781 = vmul.f32 %v2753, 1.442695
    %v2782 = vpow.pop %v2781
    %v2783 = vmul.f32 %v2754, 1.442695
    %v2784 = vpow.pop %v2783
    %v2785 = vmul.f32 %v2755, 1.442695
    %v2786 = vpow.pop %v2785
    %v2787 = vmul.f32 %v2756, 1.442695
    %v2788 = vpow.pop %v2787
    %v2789 = vsel %vm1306, %v2758, 0.0
    %2790 = vadd.xlane.f32.xlu0 %v2789
    %v2791 = vpop.xlane.xlu0 %2790
    %v2792 = vsel %vm1306, %v2760, 0.0
    %2793 = vadd.xlane.f32.xlu0 %v2792
    %v2794 = vpop.xlane.xlu0 %2793
    %v2795 = vsel %vm1306, %v2762, 0.0
    %2796 = vadd.xlane.f32.xlu0 %v2795
    %v2797 = vpop.xlane.xlu0 %2796
    %v2798 = vsel %vm1306, %v2764, 0.0
    %2799 = vadd.xlane.f32.xlu0 %v2798
    %v2800 = vpop.xlane.xlu0 %2799
    %v2801 = vsel %vm1306, %v2766, 0.0
    %2802 = vadd.xlane.f32.xlu0 %v2801
    %v2803 = vpop.xlane.xlu0 %2802
    %v2804 = vsel %vm1306, %v2768, 0.0
    %2805 = vadd.xlane.f32.xlu0 %v2804
    %v2806 = vpop.xlane.xlu0 %2805
    %v2807 = vsel %vm1306, %v2770, 0.0
    %2808 = vadd.xlane.f32.xlu0 %v2807
    %v2809 = vpop.xlane.xlu0 %2808
    %v2810 = vsel %vm1306, %v2772, 0.0
    %2811 = vadd.xlane.f32.xlu0 %v2810
    %v2812 = vpop.xlane.xlu0 %2811
    %v2813 = vsel %vm1306, %v2774, 0.0
    %2814 = vadd.xlane.f32.xlu0 %v2813
    %v2815 = vpop.xlane.xlu0 %2814
    %v2816 = vsel %vm1306, %v2776, 0.0
    %2817 = vadd.xlane.f32.xlu0 %v2816
    %v2818 = vpop.xlane.xlu0 %2817
    %v2819 = vsel %vm1306, %v2778, 0.0
    %2820 = vadd.xlane.f32.xlu0 %v2819
    %v2821 = vpop.xlane.xlu0 %2820
    %v2822 = vsel %vm1306, %v2780, 0.0
    %2823 = vadd.xlane.f32.xlu0 %v2822
    %v2824 = vpop.xlane.xlu0 %2823
    %v2825 = vsel %vm1306, %v2782, 0.0
    %2826 = vadd.xlane.f32.xlu0 %v2825
    %v2827 = vpop.xlane.xlu0 %2826
    %v2828 = vsel %vm1306, %v2784, 0.0
    %2829 = vadd.xlane.f32.xlu0 %v2828
    %v2830 = vpop.xlane.xlu0 %2829
    %v2831 = vsel %vm1306, %v2786, 0.0
    %2832 = vadd.xlane.f32.xlu0 %v2831
    %v2833 = vpop.xlane.xlu0 %2832
    %v2834 = vsel %vm1306, %v2788, 0.0
    %2835 = vadd.xlane.f32.xlu0 %v2834
    %v2836 = vpop.xlane.xlu0 %2835
    %v2837 = vrcp.pop %v2791
    %v2838 = vrcp.pop %v2794
    %v2839 = vrcp.pop %v2797
    %v2840 = vrcp.pop %v2800
    %v2841 = vrcp.pop %v2803
    %v2842 = vrcp.pop %v2806
    %v2843 = vrcp.pop %v2809
    %v2844 = vrcp.pop %v2812
    %v2845 = vrcp.pop %v2815
    %v2846 = vrcp.pop %v2818
    %v2847 = vrcp.pop %v2821
    %v2848 = vrcp.pop %v2824
    %v2849 = vrcp.pop %v2827
    %v2850 = vrcp.pop %v2830
    %v2851 = vrcp.pop %v2833
    %v2852 = vrcp.pop %v2836
    %v2853 = vmul.f32 %v2758, %v2837
    %v2854 = vmul.f32 %v2760, %v2838
    %v2855 = vmul.f32 %v2762, %v2839
    %v2856 = vmul.f32 %v2764, %v2840
    %v2857 = vmul.f32 %v2766, %v2841
    %v2858 = vmul.f32 %v2768, %v2842
    %v2859 = vmul.f32 %v2770, %v2843
    %v2860 = vmul.f32 %v2772, %v2844
    %v2861 = vmul.f32 %v2774, %v2845
    %v2862 = vmul.f32 %v2776, %v2846
    %v2863 = vmul.f32 %v2778, %v2847
    %v2864 = vmul.f32 %v2780, %v2848
    %v2865 = vmul.f32 %v2782, %v2849
    %v2866 = vmul.f32 %v2784, %v2850
    %v2867 = vmul.f32 %v2786, %v2851
    %v2868 = vmul.f32 %v2788, %v2852
    %v2869 = vadd.f32 %v2144, %v2853
    %v2870 = vadd.f32 %v2145, %v2854
    %v2871 = vadd.f32 %v2146, %v2855
    %v2872 = vadd.f32 %v2147, %v2856
    %v2873 = vadd.f32 %v2148, %v2857
    %v2874 = vadd.f32 %v2149, %v2858
    %v2875 = vadd.f32 %v2150, %v2859
    %v2876 = vadd.f32 %v2151, %v2860
    %v2877 = vadd.f32 %v2152, %v2861
    %v2878 = vadd.f32 %v2153, %v2862
    %v2879 = vadd.f32 %v2154, %v2863
    %v2880 = vadd.f32 %v2155, %v2864
    %v2881 = vadd.f32 %v2156, %v2865
    %v2882 = vadd.f32 %v2157, %v2866
    %v2883 = vadd.f32 %v2158, %v2867
    %v2884 = vadd.f32 %v2159, %v2868
    %2885 = vrot.lane.b32.xlu0 %v1071, 112
    %v2886 = vpop.permute.xlu0 %2885
    %2887 = vrot.lane.b32.xlu0 %v1074, 112
    %v2888 = vpop.permute.xlu0 %2887
    %2889 = vrot.lane.b32.xlu0 %v1077, 112
    %v2890 = vpop.permute.xlu0 %2889
    %2891 = vrot.lane.b32.xlu0 %v1080, 112
    %v2892 = vpop.permute.xlu0 %2891
    %2893 = vrot.lane.b32.xlu0 %v1083, 112
    %v2894 = vpop.permute.xlu0 %2893
    %2895 = vrot.lane.b32.xlu0 %v1086, 112
    %v2896 = vpop.permute.xlu0 %2895
    %2897 = vrot.lane.b32.xlu0 %v1089, 112
    %v2898 = vpop.permute.xlu0 %2897
    %2899 = vrot.lane.b32.xlu0 %v1092, 112
    %v2900 = vpop.permute.xlu0 %2899
    %v2910 = vsel %vm1306, %v2853, 0
    %v2913 = vsel %vm1306, %v2854, 0
    %v2916 = vsel %vm1306, %v2855, 0
    %v2919 = vsel %vm1306, %v2856, 0
    %v2922 = vsel %vm1306, %v2857, 0
    %v2925 = vsel %vm1306, %v2858, 0
    %v2928 = vsel %vm1306, %v2859, 0
    %v2931 = vsel %vm1306, %v2860, 0
    %2933 = vmatpush.msra.mxu0 0.0
    %2934 = vmatpush.msra.mxu0 0.0
    %2935 = vmatpush.msra.mxu0 0.0
    %2936 = vmatpush.msra.mxu0 0.0
    %2937 = vmatpush.msra.mxu0 0.0
    %2938 = vmatpush.msra.mxu0 0.0
    %2939 = vmatpush.msra.mxu0 0.0
    %2940 = vmatpush.msra.mxu0 0.0
    %2941 = vmatpush.msra.mxu0 %v2900
    %2942 = vmatpush.msra.mxu0 %v2898
    %2943 = vmatpush.msra.mxu0 %v2896
    %2944 = vmatpush.msra.mxu0 %v2894
    %2945 = vmatpush.msra.mxu0 %v2892
    %2946 = vmatpush.msra.mxu0 %v2890
    %2947 = vmatpush.msra.mxu0 %v2888
    %2948 = vmatpush.msra.mxu0 %v2886
    %2949 = vmatmul.f32.gmra.mxu0 %v2910
    %v2950 = vpop.f32.mrf.mxu0
    %v2951 = vadd.f32 0.0, %v2950
    %2952 = vmatmul.f32.gmra.mxu0 %v2913
    %v2953 = vpop.f32.mrf.mxu0
    %v2954 = vadd.f32 0.0, %v2953
    %2955 = vmatmul.f32.gmra.mxu0 %v2916
    %v2956 = vpop.f32.mrf.mxu0
    %v2957 = vadd.f32 0.0, %v2956
    %2958 = vmatmul.f32.gmra.mxu0 %v2919
    %v2959 = vpop.f32.mrf.mxu0
    %v2960 = vadd.f32 0.0, %v2959
    %2961 = vmatmul.f32.gmra.mxu0 %v2922
    %v2962 = vpop.f32.mrf.mxu0
    %v2963 = vadd.f32 0.0, %v2962
    %2964 = vmatmul.f32.gmra.mxu0 %v2925
    %v2965 = vpop.f32.mrf.mxu0
    %v2966 = vadd.f32 0.0, %v2965
    %2967 = vmatmul.f32.gmra.mxu0 %v2928
    %v2968 = vpop.f32.mrf.mxu0
    %v2969 = vadd.f32 0.0, %v2968
    %2970 = vmatmul.f32.gmra.mxu0 %v2931
    %v2971 = vpop.f32.mrf.mxu0
    %v2972 = vadd.f32 0.0, %v2971
    %2973 = vdwg.mxu0
    %2974 = vrot.lane.b32.xlu0 %v1095, 112
    %v2975 = vpop.permute.xlu0 %2974
    %2976 = vrot.lane.b32.xlu0 %v1098, 112
    %v2977 = vpop.permute.xlu0 %2976
    %2978 = vrot.lane.b32.xlu0 %v1101, 112
    %v2979 = vpop.permute.xlu0 %2978
    %2980 = vrot.lane.b32.xlu0 %v1104, 112
    %v2981 = vpop.permute.xlu0 %2980
    %2982 = vrot.lane.b32.xlu0 %v1107, 112
    %v2983 = vpop.permute.xlu0 %2982
    %2984 = vrot.lane.b32.xlu0 %v1110, 112
    %v2985 = vpop.permute.xlu0 %2984
    %2986 = vrot.lane.b32.xlu0 %v1113, 112
    %v2987 = vpop.permute.xlu0 %2986
    %2988 = vrot.lane.b32.xlu0 %v1116, 112
    %v2989 = vpop.permute.xlu0 %2988
    %v2999 = vsel %vm1306, %v2861, 0
    %v3002 = vsel %vm1306, %v2862, 0
    %v3005 = vsel %vm1306, %v2863, 0
    %v3008 = vsel %vm1306, %v2864, 0
    %v3011 = vsel %vm1306, %v2865, 0
    %v3014 = vsel %vm1306, %v2866, 0
    %v3017 = vsel %vm1306, %v2867, 0
    %v3020 = vsel %vm1306, %v2868, 0
    %3022 = vmatpush.msra.mxu0 0.0
    %3023 = vmatpush.msra.mxu0 0.0
    %3024 = vmatpush.msra.mxu0 0.0
    %3025 = vmatpush.msra.mxu0 0.0
    %3026 = vmatpush.msra.mxu0 0.0
    %3027 = vmatpush.msra.mxu0 0.0
    %3028 = vmatpush.msra.mxu0 0.0
    %3029 = vmatpush.msra.mxu0 0.0
    %3030 = vmatpush.msra.mxu0 %v2989
    %3031 = vmatpush.msra.mxu0 %v2987
    %3032 = vmatpush.msra.mxu0 %v2985
    %3033 = vmatpush.msra.mxu0 %v2983
    %3034 = vmatpush.msra.mxu0 %v2981
    %3035 = vmatpush.msra.mxu0 %v2979
    %3036 = vmatpush.msra.mxu0 %v2977
    %3037 = vmatpush.msra.mxu0 %v2975
    %3038 = vmatmul.f32.gmra.mxu0 %v2999
    %v3039 = vpop.f32.mrf.mxu0
    %v3040 = vadd.f32 0.0, %v3039
    %3041 = vmatmul.f32.gmra.mxu0 %v3002
    %v3042 = vpop.f32.mrf.mxu0
    %v3043 = vadd.f32 0.0, %v3042
    %3044 = vmatmul.f32.gmra.mxu0 %v3005
    %v3045 = vpop.f32.mrf.mxu0
    %v3046 = vadd.f32 0.0, %v3045
    %3047 = vmatmul.f32.gmra.mxu0 %v3008
    %v3048 = vpop.f32.mrf.mxu0
    %v3049 = vadd.f32 0.0, %v3048
    %3050 = vmatmul.f32.gmra.mxu0 %v3011
    %v3051 = vpop.f32.mrf.mxu0
    %v3052 = vadd.f32 0.0, %v3051
    %3053 = vmatmul.f32.gmra.mxu0 %v3014
    %v3054 = vpop.f32.mrf.mxu0
    %v3055 = vadd.f32 0.0, %v3054
    %3056 = vmatmul.f32.gmra.mxu0 %v3017
    %v3057 = vpop.f32.mrf.mxu0
    %v3058 = vadd.f32 0.0, %v3057
    %3059 = vmatmul.f32.gmra.mxu0 %v3020
    %v3060 = vpop.f32.mrf.mxu0
    %v3061 = vadd.f32 0.0, %v3060
    %3062 = vdwg.mxu0
    %v3064 = vsel %vm1127, %v2951, 0
    %v3067 = vsel %vm1127, %v2954, 0
    %v3070 = vsel %vm1127, %v2957, 0
    %v3073 = vsel %vm1127, %v2960, 0
    %v3076 = vsel %vm1127, %v2963, 0
    %v3079 = vsel %vm1127, %v2966, 0
    %v3082 = vsel %vm1127, %v2969, 0
    %v3085 = vsel %vm1127, %v2972, 0
    %v3088 = vsel %vm1127, %v3040, 0
    %v3091 = vsel %vm1127, %v3043, 0
    %v3094 = vsel %vm1127, %v3046, 0
    %v3097 = vsel %vm1127, %v3049, 0
    %v3100 = vsel %vm1127, %v3052, 0
    %v3103 = vsel %vm1127, %v3055, 0
    %v3106 = vsel %vm1127, %v3058, 0
    %v3109 = vsel %vm1127, %v3061, 0
    %3111 = vmatpush.msra.mxu0 0.0
    %3112 = vmatpush.msra.mxu0 0.0
    %3113 = vmatpush.msra.mxu0 0.0
    %3114 = vmatpush.msra.mxu0 0.0
    %3115 = vmatpush.msra.mxu0 0.0
    %3116 = vmatpush.msra.mxu0 0.0
    %3117 = vmatpush.msra.mxu0 0.0
    %3118 = vmatpush.msra.mxu0 0.0
    %3119 = vmatpush.msra.mxu0 0.0
    %3120 = vmatpush.msra.mxu0 0.0
    %3121 = vmatpush.msra.mxu0 0.0
    %3122 = vmatpush.msra.mxu0 0.0
    %3123 = vmatpush.msra.mxu0 0.0
    %3124 = vmatpush.msra.mxu0 0.0
    %3125 = vmatpush.msra.mxu0 0.0
    %3126 = vmatpush.msra.mxu0 %v1120
    %3127 = vmatmul.f32.gmra.mxu0 %v3064
    %v3128 = vpop.f32.mrf.mxu0
    %v3129 = vadd.f32 0.0, %v3128
    %3130 = vmatmul.f32.gmra.mxu0 %v3067
    %v3131 = vpop.f32.mrf.mxu0
    %v3132 = vadd.f32 0.0, %v3131
    %3133 = vmatmul.f32.gmra.mxu0 %v3070
    %v3134 = vpop.f32.mrf.mxu0
    %v3135 = vadd.f32 0.0, %v3134
    %3136 = vmatmul.f32.gmra.mxu0 %v3073
    %v3137 = vpop.f32.mrf.mxu0
    %v3138 = vadd.f32 0.0, %v3137
    %3139 = vmatmul.f32.gmra.mxu0 %v3076
    %v3140 = vpop.f32.mrf.mxu0
    %v3141 = vadd.f32 0.0, %v3140
    %3142 = vmatmul.f32.gmra.mxu0 %v3079
    %v3143 = vpop.f32.mrf.mxu0
    %v3144 = vadd.f32 0.0, %v3143
    %3145 = vmatmul.f32.gmra.mxu0 %v3082
    %v3146 = vpop.f32.mrf.mxu0
    %v3147 = vadd.f32 0.0, %v3146
    %3148 = vmatmul.f32.gmra.mxu0 %v3085
    %v3149 = vpop.f32.mrf.mxu0
    %v3150 = vadd.f32 0.0, %v3149
    %3151 = vmatmul.f32.gmra.mxu0 %v3088
    %v3152 = vpop.f32.mrf.mxu0
    %v3153 = vadd.f32 0.0, %v3152
    %3154 = vmatmul.f32.gmra.mxu0 %v3091
    %v3155 = vpop.f32.mrf.mxu0
    %v3156 = vadd.f32 0.0, %v3155
    %3157 = vmatmul.f32.gmra.mxu0 %v3094
    %v3158 = vpop.f32.mrf.mxu0
    %v3159 = vadd.f32 0.0, %v3158
    %3160 = vmatmul.f32.gmra.mxu0 %v3097
    %v3161 = vpop.f32.mrf.mxu0
    %v3162 = vadd.f32 0.0, %v3161
    %3163 = vmatmul.f32.gmra.mxu0 %v3100
    %v3164 = vpop.f32.mrf.mxu0
    %v3165 = vadd.f32 0.0, %v3164
    %3166 = vmatmul.f32.gmra.mxu0 %v3103
    %v3167 = vpop.f32.mrf.mxu0
    %v3168 = vadd.f32 0.0, %v3167
    %3169 = vmatmul.f32.gmra.mxu0 %v3106
    %v3170 = vpop.f32.mrf.mxu0
    %v3171 = vadd.f32 0.0, %v3170
    %3172 = vmatmul.f32.gmra.mxu0 %v3109
    %v3173 = vpop.f32.mrf.mxu0
    %v3174 = vadd.f32 0.0, %v3173
    %3175 = vdwg.mxu0
    %v3176 = vadd.f32 %v2467, %v3129
    %v3177 = vadd.f32 %v2468, %v3132
    %v3178 = vadd.f32 %v2469, %v3135
    %v3179 = vadd.f32 %v2470, %v3138
    %v3180 = vadd.f32 %v2471, %v3141
    %v3181 = vadd.f32 %v2472, %v3144
    %v3182 = vadd.f32 %v2473, %v3147
    %v3183 = vadd.f32 %v2474, %v3150
    %v3184 = vadd.f32 %v2475, %v3153
    %v3185 = vadd.f32 %v2476, %v3156
    %v3186 = vadd.f32 %v2477, %v3159
    %v3187 = vadd.f32 %v2478, %v3162
    %v3188 = vadd.f32 %v2479, %v3165
    %v3189 = vadd.f32 %v2480, %v3168
    %v3190 = vadd.f32 %v2481, %v3171
    %v3191 = vadd.f32 %v2482, %v3174
    %3192 = vrot.lane.b32.xlu0 %v507, 104
    %v3193 = vpop.permute.xlu0 %3192
    %3194 = vrot.lane.b32.xlu0 %v508, 104
    %v3195 = vpop.permute.xlu0 %3194
    %3196 = vrot.lane.b32.xlu0 %v509, 104
    %v3197 = vpop.permute.xlu0 %3196
    %3198 = vrot.lane.b32.xlu0 %v510, 104
    %v3199 = vpop.permute.xlu0 %3198
    %3200 = vrot.lane.b32.xlu0 %v511, 104
    %v3201 = vpop.permute.xlu0 %3200
    %3202 = vrot.lane.b32.xlu0 %v512, 104
    %v3203 = vpop.permute.xlu0 %3202
    %3204 = vrot.lane.b32.xlu0 %v513, 104
    %v3205 = vpop.permute.xlu0 %3204
    %3206 = vrot.lane.b32.xlu0 %v514, 104
    %v3207 = vpop.permute.xlu0 %3206
    %3208 = vrot.lane.b32.xlu0 %v910, 104
    %v3209 = vpop.permute.xlu0 %3208
    %3210 = vrot.lane.b32.xlu0 %v913, 104
    %v3211 = vpop.permute.xlu0 %3210
    %3212 = vrot.lane.b32.xlu0 %v916, 104
    %v3213 = vpop.permute.xlu0 %3212
    %3214 = vrot.lane.b32.xlu0 %v919, 104
    %v3215 = vpop.permute.xlu0 %3214
    %3216 = vrot.lane.b32.xlu0 %v922, 104
    %v3217 = vpop.permute.xlu0 %3216
    %3218 = vrot.lane.b32.xlu0 %v925, 104
    %v3219 = vpop.permute.xlu0 %3218
    %3220 = vrot.lane.b32.xlu0 %v928, 104
    %v3221 = vpop.permute.xlu0 %3220
    %3222 = vrot.lane.b32.xlu0 %v931, 104
    %v3223 = vpop.permute.xlu0 %3222
    %v3224 = vsel %vm1127, %v3193, 0
    %v3226 = vsel %vm1127, %v3195, 0
    %v3228 = vsel %vm1127, %v3197, 0
    %v3230 = vsel %vm1127, %v3199, 0
    %v3232 = vsel %vm1127, %v3201, 0
    %v3234 = vsel %vm1127, %v3203, 0
    %v3236 = vsel %vm1127, %v3205, 0
    %v3238 = vsel %vm1127, %v3207, 0
    %v3240 = vsel %vm1127, %v3209, 0
    %v3242 = vsel %vm1127, %v3211, 0
    %v3244 = vsel %vm1127, %v3213, 0
    %v3246 = vsel %vm1127, %v3215, 0
    %v3248 = vsel %vm1127, %v3217, 0
    %v3250 = vsel %vm1127, %v3219, 0
    %v3252 = vsel %vm1127, %v3221, 0
    %v3254 = vsel %vm1127, %v3223, 0
    %3256 = vmatpush.xpose.msra.mxu0 0.0
    %3257 = vmatpush.xpose.msra.mxu0 0.0
    %3258 = vmatpush.xpose.msra.mxu0 0.0
    %3259 = vmatpush.xpose.msra.mxu0 0.0
    %3260 = vmatpush.xpose.msra.mxu0 0.0
    %3261 = vmatpush.xpose.msra.mxu0 0.0
    %3262 = vmatpush.xpose.msra.mxu0 0.0
    %3263 = vmatpush.xpose.msra.mxu0 0.0
    %3264 = vmatpush.xpose.msra.mxu0 %v3254
    %3265 = vmatpush.xpose.msra.mxu0 %v3252
    %3266 = vmatpush.xpose.msra.mxu0 %v3250
    %3267 = vmatpush.xpose.msra.mxu0 %v3248
    %3268 = vmatpush.xpose.msra.mxu0 %v3246
    %3269 = vmatpush.xpose.msra.mxu0 %v3244
    %3270 = vmatpush.xpose.msra.mxu0 %v3242
    %3271 = vmatpush.xpose.msra.mxu0 %v3240
    %3272 = vmatmul.f32.gmra.mxu0 %v3224
    %v3273 = vpop.f32.mrf.mxu0
    %v3274 = vadd.f32 0.0, %v3273
    %3275 = vmatmul.f32.gmra.mxu0 %v3226
    %v3276 = vpop.f32.mrf.mxu0
    %v3277 = vadd.f32 0.0, %v3276
    %3278 = vmatmul.f32.gmra.mxu0 %v3228
    %v3279 = vpop.f32.mrf.mxu0
    %v3280 = vadd.f32 0.0, %v3279
    %3281 = vmatmul.f32.gmra.mxu0 %v3230
    %v3282 = vpop.f32.mrf.mxu0
    %v3283 = vadd.f32 0.0, %v3282
    %3284 = vmatmul.f32.gmra.mxu0 %v3232
    %v3285 = vpop.f32.mrf.mxu0
    %v3286 = vadd.f32 0.0, %v3285
    %3287 = vmatmul.f32.gmra.mxu0 %v3234
    %v3288 = vpop.f32.mrf.mxu0
    %v3289 = vadd.f32 0.0, %v3288
    %3290 = vmatmul.f32.gmra.mxu0 %v3236
    %v3291 = vpop.f32.mrf.mxu0
    %v3292 = vadd.f32 0.0, %v3291
    %3293 = vmatmul.f32.gmra.mxu0 %v3238
    %v3294 = vpop.f32.mrf.mxu0
    %v3295 = vadd.f32 0.0, %v3294
    %3296 = vdwg.mxu0
    %3297 = vrot.lane.b32.xlu0 %v515, 104
    %v3298 = vpop.permute.xlu0 %3297
    %3299 = vrot.lane.b32.xlu0 %v516, 104
    %v3300 = vpop.permute.xlu0 %3299
    %3301 = vrot.lane.b32.xlu0 %v517, 104
    %v3302 = vpop.permute.xlu0 %3301
    %3303 = vrot.lane.b32.xlu0 %v518, 104
    %v3304 = vpop.permute.xlu0 %3303
    %3305 = vrot.lane.b32.xlu0 %v519, 104
    %v3306 = vpop.permute.xlu0 %3305
    %3307 = vrot.lane.b32.xlu0 %v520, 104
    %v3308 = vpop.permute.xlu0 %3307
    %3309 = vrot.lane.b32.xlu0 %v521, 104
    %v3310 = vpop.permute.xlu0 %3309
    %3311 = vrot.lane.b32.xlu0 %v522, 104
    %v3312 = vpop.permute.xlu0 %3311
    %3313 = vrot.lane.b32.xlu0 %v934, 104
    %v3314 = vpop.permute.xlu0 %3313
    %3315 = vrot.lane.b32.xlu0 %v937, 104
    %v3316 = vpop.permute.xlu0 %3315
    %3317 = vrot.lane.b32.xlu0 %v940, 104
    %v3318 = vpop.permute.xlu0 %3317
    %3319 = vrot.lane.b32.xlu0 %v943, 104
    %v3320 = vpop.permute.xlu0 %3319
    %3321 = vrot.lane.b32.xlu0 %v946, 104
    %v3322 = vpop.permute.xlu0 %3321
    %3323 = vrot.lane.b32.xlu0 %v949, 104
    %v3324 = vpop.permute.xlu0 %3323
    %3325 = vrot.lane.b32.xlu0 %v952, 104
    %v3326 = vpop.permute.xlu0 %3325
    %3327 = vrot.lane.b32.xlu0 %v955, 104
    %v3328 = vpop.permute.xlu0 %3327
    %v3329 = vsel %vm1127, %v3298, 0
    %v3331 = vsel %vm1127, %v3300, 0
    %v3333 = vsel %vm1127, %v3302, 0
    %v3335 = vsel %vm1127, %v3304, 0
    %v3337 = vsel %vm1127, %v3306, 0
    %v3339 = vsel %vm1127, %v3308, 0
    %v3341 = vsel %vm1127, %v3310, 0
    %v3343 = vsel %vm1127, %v3312, 0
    %v3345 = vsel %vm1127, %v3314, 0
    %v3347 = vsel %vm1127, %v3316, 0
    %v3349 = vsel %vm1127, %v3318, 0
    %v3351 = vsel %vm1127, %v3320, 0
    %v3353 = vsel %vm1127, %v3322, 0
    %v3355 = vsel %vm1127, %v3324, 0
    %v3357 = vsel %vm1127, %v3326, 0
    %v3359 = vsel %vm1127, %v3328, 0
    %3361 = vmatpush.xpose.msra.mxu0 0.0
    %3362 = vmatpush.xpose.msra.mxu0 0.0
    %3363 = vmatpush.xpose.msra.mxu0 0.0
    %3364 = vmatpush.xpose.msra.mxu0 0.0
    %3365 = vmatpush.xpose.msra.mxu0 0.0
    %3366 = vmatpush.xpose.msra.mxu0 0.0
    %3367 = vmatpush.xpose.msra.mxu0 0.0
    %3368 = vmatpush.xpose.msra.mxu0 0.0
    %3369 = vmatpush.xpose.msra.mxu0 %v3359
    %3370 = vmatpush.xpose.msra.mxu0 %v3357
    %3371 = vmatpush.xpose.msra.mxu0 %v3355
    %3372 = vmatpush.xpose.msra.mxu0 %v3353
    %3373 = vmatpush.xpose.msra.mxu0 %v3351
    %3374 = vmatpush.xpose.msra.mxu0 %v3349
    %3375 = vmatpush.xpose.msra.mxu0 %v3347
    %3376 = vmatpush.xpose.msra.mxu0 %v3345
    %3377 = vmatmul.f32.gmra.mxu0 %v3329
    %v3378 = vpop.f32.mrf.mxu0
    %v3379 = vadd.f32 0.0, %v3378
    %3380 = vmatmul.f32.gmra.mxu0 %v3331
    %v3381 = vpop.f32.mrf.mxu0
    %v3382 = vadd.f32 0.0, %v3381
    %3383 = vmatmul.f32.gmra.mxu0 %v3333
    %v3384 = vpop.f32.mrf.mxu0
    %v3385 = vadd.f32 0.0, %v3384
    %3386 = vmatmul.f32.gmra.mxu0 %v3335
    %v3387 = vpop.f32.mrf.mxu0
    %v3388 = vadd.f32 0.0, %v3387
    %3389 = vmatmul.f32.gmra.mxu0 %v3337
    %v3390 = vpop.f32.mrf.mxu0
    %v3391 = vadd.f32 0.0, %v3390
    %3392 = vmatmul.f32.gmra.mxu0 %v3339
    %v3393 = vpop.f32.mrf.mxu0
    %v3394 = vadd.f32 0.0, %v3393
    %3395 = vmatmul.f32.gmra.mxu0 %v3341
    %v3396 = vpop.f32.mrf.mxu0
    %v3397 = vadd.f32 0.0, %v3396
    %3398 = vmatmul.f32.gmra.mxu0 %v3343
    %v3399 = vpop.f32.mrf.mxu0
    %v3400 = vadd.f32 0.0, %v3399
    %3401 = vdwg.mxu0
    %v3402 = vsel %vm1306, %v3274, -inf
    %3403 = vmax.xlane.f32.xlu0 %v3402
    %v3404 = vpop.xlane.xlu0 %3403
    %v3405 = vsel %vm1306, %v3277, -inf
    %3406 = vmax.xlane.f32.xlu0 %v3405
    %v3407 = vpop.xlane.xlu0 %3406
    %v3408 = vsel %vm1306, %v3280, -inf
    %3409 = vmax.xlane.f32.xlu0 %v3408
    %v3410 = vpop.xlane.xlu0 %3409
    %v3411 = vsel %vm1306, %v3283, -inf
    %3412 = vmax.xlane.f32.xlu0 %v3411
    %v3413 = vpop.xlane.xlu0 %3412
    %v3414 = vsel %vm1306, %v3286, -inf
    %3415 = vmax.xlane.f32.xlu0 %v3414
    %v3416 = vpop.xlane.xlu0 %3415
    %v3417 = vsel %vm1306, %v3289, -inf
    %3418 = vmax.xlane.f32.xlu0 %v3417
    %v3419 = vpop.xlane.xlu0 %3418
    %v3420 = vsel %vm1306, %v3292, -inf
    %3421 = vmax.xlane.f32.xlu0 %v3420
    %v3422 = vpop.xlane.xlu0 %3421
    %v3423 = vsel %vm1306, %v3295, -inf
    %3424 = vmax.xlane.f32.xlu0 %v3423
    %v3425 = vpop.xlane.xlu0 %3424
    %v3426 = vsel %vm1306, %v3379, -inf
    %3427 = vmax.xlane.f32.xlu0 %v3426
    %v3428 = vpop.xlane.xlu0 %3427
    %v3429 = vsel %vm1306, %v3382, -inf
    %3430 = vmax.xlane.f32.xlu0 %v3429
    %v3431 = vpop.xlane.xlu0 %3430
    %v3432 = vsel %vm1306, %v3385, -inf
    %3433 = vmax.xlane.f32.xlu0 %v3432
    %v3434 = vpop.xlane.xlu0 %3433
    %v3435 = vsel %vm1306, %v3388, -inf
    %3436 = vmax.xlane.f32.xlu0 %v3435
    %v3437 = vpop.xlane.xlu0 %3436
    %v3438 = vsel %vm1306, %v3391, -inf
    %3439 = vmax.xlane.f32.xlu0 %v3438
    %v3440 = vpop.xlane.xlu0 %3439
    %v3441 = vsel %vm1306, %v3394, -inf
    %3442 = vmax.xlane.f32.xlu0 %v3441
    %v3443 = vpop.xlane.xlu0 %3442
    %v3444 = vsel %vm1306, %v3397, -inf
    %3445 = vmax.xlane.f32.xlu0 %v3444
    %v3446 = vpop.xlane.xlu0 %3445
    %v3447 = vsel %vm1306, %v3400, -inf
    %3448 = vmax.xlane.f32.xlu0 %v3447
    %v3449 = vpop.xlane.xlu0 %3448
    %v3450 = vsub.f32 %v3274, %v3404
    %v3451 = vsub.f32 %v3277, %v3407
    %v3452 = vsub.f32 %v3280, %v3410
    %v3453 = vsub.f32 %v3283, %v3413
    %v3454 = vsub.f32 %v3286, %v3416
    %v3455 = vsub.f32 %v3289, %v3419
    %v3456 = vsub.f32 %v3292, %v3422
    %v3457 = vsub.f32 %v3295, %v3425
    %v3458 = vsub.f32 %v3379, %v3428
    %v3459 = vsub.f32 %v3382, %v3431
    %v3460 = vsub.f32 %v3385, %v3434
    %v3461 = vsub.f32 %v3388, %v3437
    %v3462 = vsub.f32 %v3391, %v3440
    %v3463 = vsub.f32 %v3394, %v3443
    %v3464 = vsub.f32 %v3397, %v3446
    %v3465 = vsub.f32 %v3400, %v3449
    %v3466 = vmul.f32 %v3450, 1.442695
    %v3467 = vpow.pop %v3466
    %v3468 = vmul.f32 %v3451, 1.442695
    %v3469 = vpow.pop %v3468
    %v3470 = vmul.f32 %v3452, 1.442695
    %v3471 = vpow.pop %v3470
    %v3472 = vmul.f32 %v3453, 1.442695
    %v3473 = vpow.pop %v3472
    %v3474 = vmul.f32 %v3454, 1.442695
    %v3475 = vpow.pop %v3474
    %v3476 = vmul.f32 %v3455, 1.442695
    %v3477 = vpow.pop %v3476
    %v3478 = vmul.f32 %v3456, 1.442695
    %v3479 = vpow.pop %v3478
    %v3480 = vmul.f32 %v3457, 1.442695
    %v3481 = vpow.pop %v3480
    %v3482 = vmul.f32 %v3458, 1.442695
    %v3483 = vpow.pop %v3482
    %v3484 = vmul.f32 %v3459, 1.442695
    %v3485 = vpow.pop %v3484
    %v3486 = vmul.f32 %v3460, 1.442695
    %v3487 = vpow.pop %v3486
    %v3488 = vmul.f32 %v3461, 1.442695
    %v3489 = vpow.pop %v3488
    %v3490 = vmul.f32 %v3462, 1.442695
    %v3491 = vpow.pop %v3490
    %v3492 = vmul.f32 %v3463, 1.442695
    %v3493 = vpow.pop %v3492
    %v3494 = vmul.f32 %v3464, 1.442695
    %v3495 = vpow.pop %v3494
    %v3496 = vmul.f32 %v3465, 1.442695
    %v3497 = vpow.pop %v3496
    %v3498 = vsel %vm1306, %v3467, 0.0
    %3499 = vadd.xlane.f32.xlu0 %v3498
    %v3500 = vpop.xlane.xlu0 %3499
    %v3501 = vsel %vm1306, %v3469, 0.0
    %3502 = vadd.xlane.f32.xlu0 %v3501
    %v3503 = vpop.xlane.xlu0 %3502
    %v3504 = vsel %vm1306, %v3471, 0.0
    %3505 = vadd.xlane.f32.xlu0 %v3504
    %v3506 = vpop.xlane.xlu0 %3505
    %v3507 = vsel %vm1306, %v3473, 0.0
    %3508 = vadd.xlane.f32.xlu0 %v3507
    %v3509 = vpop.xlane.xlu0 %3508
    %v3510 = vsel %vm1306, %v3475, 0.0
    %3511 = vadd.xlane.f32.xlu0 %v3510
    %v3512 = vpop.xlane.xlu0 %3511
    %v3513 = vsel %vm1306, %v3477, 0.0
    %3514 = vadd.xlane.f32.xlu0 %v3513
    %v3515 = vpop.xlane.xlu0 %3514
    %v3516 = vsel %vm1306, %v3479, 0.0
    %3517 = vadd.xlane.f32.xlu0 %v3516
    %v3518 = vpop.xlane.xlu0 %3517
    %v3519 = vsel %vm1306, %v3481, 0.0
    %3520 = vadd.xlane.f32.xlu0 %v3519
    %v3521 = vpop.xlane.xlu0 %3520
    %v3522 = vsel %vm1306, %v3483, 0.0
    %3523 = vadd.xlane.f32.xlu0 %v3522
    %v3524 = vpop.xlane.xlu0 %3523
    %v3525 = vsel %vm1306, %v3485, 0.0
    %3526 = vadd.xlane.f32.xlu0 %v3525
    %v3527 = vpop.xlane.xlu0 %3526
    %v3528 = vsel %vm1306, %v3487, 0.0
    %3529 = vadd.xlane.f32.xlu0 %v3528
    %v3530 = vpop.xlane.xlu0 %3529
    %v3531 = vsel %vm1306, %v3489, 0.0
    %3532 = vadd.xlane.f32.xlu0 %v3531
    %v3533 = vpop.xlane.xlu0 %3532
    %v3534 = vsel %vm1306, %v3491, 0.0
    %3535 = vadd.xlane.f32.xlu0 %v3534
    %v3536 = vpop.xlane.xlu0 %3535
    %v3537 = vsel %vm1306, %v3493, 0.0
    %3538 = vadd.xlane.f32.xlu0 %v3537
    %v3539 = vpop.xlane.xlu0 %3538
    %v3540 = vsel %vm1306, %v3495, 0.0
    %3541 = vadd.xlane.f32.xlu0 %v3540
    %v3542 = vpop.xlane.xlu0 %3541
    %v3543 = vsel %vm1306, %v3497, 0.0
    %3544 = vadd.xlane.f32.xlu0 %v3543
    %v3545 = vpop.xlane.xlu0 %3544
    %v3546 = vrcp.pop %v3500
    %v3547 = vrcp.pop %v3503
    %v3548 = vrcp.pop %v3506
    %v3549 = vrcp.pop %v3509
    %v3550 = vrcp.pop %v3512
    %v3551 = vrcp.pop %v3515
    %v3552 = vrcp.pop %v3518
    %v3553 = vrcp.pop %v3521
    %v3554 = vrcp.pop %v3524
    %v3555 = vrcp.pop %v3527
    %v3556 = vrcp.pop %v3530
    %v3557 = vrcp.pop %v3533
    %v3558 = vrcp.pop %v3536
    %v3559 = vrcp.pop %v3539
    %v3560 = vrcp.pop %v3542
    %v3561 = vrcp.pop %v3545
    %v3562 = vmul.f32 %v3467, %v3546
    %v3563 = vmul.f32 %v3469, %v3547
    %v3564 = vmul.f32 %v3471, %v3548
    %v3565 = vmul.f32 %v3473, %v3549
    %v3566 = vmul.f32 %v3475, %v3550
    %v3567 = vmul.f32 %v3477, %v3551
    %v3568 = vmul.f32 %v3479, %v3552
    %v3569 = vmul.f32 %v3481, %v3553
    %v3570 = vmul.f32 %v3483, %v3554
    %v3571 = vmul.f32 %v3485, %v3555
    %v3572 = vmul.f32 %v3487, %v3556
    %v3573 = vmul.f32 %v3489, %v3557
    %v3574 = vmul.f32 %v3491, %v3558
    %v3575 = vmul.f32 %v3493, %v3559
    %v3576 = vmul.f32 %v3495, %v3560
    %v3577 = vmul.f32 %v3497, %v3561
    %v3578 = vadd.f32 %v2869, %v3562
    %v3579 = vadd.f32 %v2870, %v3563
    %v3580 = vadd.f32 %v2871, %v3564
    %v3581 = vadd.f32 %v2872, %v3565
    %v3582 = vadd.f32 %v2873, %v3566
    %v3583 = vadd.f32 %v2874, %v3567
    %v3584 = vadd.f32 %v2875, %v3568
    %v3585 = vadd.f32 %v2876, %v3569
    %v3586 = vadd.f32 %v2877, %v3570
    %v3587 = vadd.f32 %v2878, %v3571
    %v3588 = vadd.f32 %v2879, %v3572
    %v3589 = vadd.f32 %v2880, %v3573
    %v3590 = vadd.f32 %v2881, %v3574
    %v3591 = vadd.f32 %v2882, %v3575
    %v3592 = vadd.f32 %v2883, %v3576
    %v3593 = vadd.f32 %v2884, %v3577
    %3594 = vrot.lane.b32.xlu0 %v1071, 104
    %v3595 = vpop.permute.xlu0 %3594
    %3596 = vrot.lane.b32.xlu0 %v1074, 104
    %v3597 = vpop.permute.xlu0 %3596
    %3598 = vrot.lane.b32.xlu0 %v1077, 104
    %v3599 = vpop.permute.xlu0 %3598
    %3600 = vrot.lane.b32.xlu0 %v1080, 104
    %v3601 = vpop.permute.xlu0 %3600
    %3602 = vrot.lane.b32.xlu0 %v1083, 104
    %v3603 = vpop.permute.xlu0 %3602
    %3604 = vrot.lane.b32.xlu0 %v1086, 104
    %v3605 = vpop.permute.xlu0 %3604
    %3606 = vrot.lane.b32.xlu0 %v1089, 104
    %v3607 = vpop.permute.xlu0 %3606
    %3608 = vrot.lane.b32.xlu0 %v1092, 104
    %v3609 = vpop.permute.xlu0 %3608
    %v3619 = vsel %vm1306, %v3562, 0
    %v3622 = vsel %vm1306, %v3563, 0
    %v3625 = vsel %vm1306, %v3564, 0
    %v3628 = vsel %vm1306, %v3565, 0
    %v3631 = vsel %vm1306, %v3566, 0
    %v3634 = vsel %vm1306, %v3567, 0
    %v3637 = vsel %vm1306, %v3568, 0
    %v3640 = vsel %vm1306, %v3569, 0
    %3642 = vmatpush.msra.mxu0 0.0
    %3643 = vmatpush.msra.mxu0 0.0
    %3644 = vmatpush.msra.mxu0 0.0
    %3645 = vmatpush.msra.mxu0 0.0
    %3646 = vmatpush.msra.mxu0 0.0
    %3647 = vmatpush.msra.mxu0 0.0
    %3648 = vmatpush.msra.mxu0 0.0
    %3649 = vmatpush.msra.mxu0 0.0
    %3650 = vmatpush.msra.mxu0 %v3609
    %3651 = vmatpush.msra.mxu0 %v3607
    %3652 = vmatpush.msra.mxu0 %v3605
    %3653 = vmatpush.msra.mxu0 %v3603
    %3654 = vmatpush.msra.mxu0 %v3601
    %3655 = vmatpush.msra.mxu0 %v3599
    %3656 = vmatpush.msra.mxu0 %v3597
    %3657 = vmatpush.msra.mxu0 %v3595
    %3658 = vmatmul.f32.gmra.mxu0 %v3619
    %v3659 = vpop.f32.mrf.mxu0
    %v3660 = vadd.f32 0.0, %v3659
    %3661 = vmatmul.f32.gmra.mxu0 %v3622
    %v3662 = vpop.f32.mrf.mxu0
    %v3663 = vadd.f32 0.0, %v3662
    %3664 = vmatmul.f32.gmra.mxu0 %v3625
    %v3665 = vpop.f32.mrf.mxu0
    %v3666 = vadd.f32 0.0, %v3665
    %3667 = vmatmul.f32.gmra.mxu0 %v3628
    %v3668 = vpop.f32.mrf.mxu0
    %v3669 = vadd.f32 0.0, %v3668
    %3670 = vmatmul.f32.gmra.mxu0 %v3631
    %v3671 = vpop.f32.mrf.mxu0
    %v3672 = vadd.f32 0.0, %v3671
    %3673 = vmatmul.f32.gmra.mxu0 %v3634
    %v3674 = vpop.f32.mrf.mxu0
    %v3675 = vadd.f32 0.0, %v3674
    %3676 = vmatmul.f32.gmra.mxu0 %v3637
    %v3677 = vpop.f32.mrf.mxu0
    %v3678 = vadd.f32 0.0, %v3677
    %3679 = vmatmul.f32.gmra.mxu0 %v3640
    %v3680 = vpop.f32.mrf.mxu0
    %v3681 = vadd.f32 0.0, %v3680
    %3682 = vdwg.mxu0
    %3683 = vrot.lane.b32.xlu0 %v1095, 104
    %v3684 = vpop.permute.xlu0 %3683
    %3685 = vrot.lane.b32.xlu0 %v1098, 104
    %v3686 = vpop.permute.xlu0 %3685
    %3687 = vrot.lane.b32.xlu0 %v1101, 104
    %v3688 = vpop.permute.xlu0 %3687
    %3689 = vrot.lane.b32.xlu0 %v1104, 104
    %v3690 = vpop.permute.xlu0 %3689
    %3691 = vrot.lane.b32.xlu0 %v1107, 104
    %v3692 = vpop.permute.xlu0 %3691
    %3693 = vrot.lane.b32.xlu0 %v1110, 104
    %v3694 = vpop.permute.xlu0 %3693
    %3695 = vrot.lane.b32.xlu0 %v1113, 104
    %v3696 = vpop.permute.xlu0 %3695
    %3697 = vrot.lane.b32.xlu0 %v1116, 104
    %v3698 = vpop.permute.xlu0 %3697
    %v3708 = vsel %vm1306, %v3570, 0
    %v3711 = vsel %vm1306, %v3571, 0
    %v3714 = vsel %vm1306, %v3572, 0
    %v3717 = vsel %vm1306, %v3573, 0
    %v3720 = vsel %vm1306, %v3574, 0
    %v3723 = vsel %vm1306, %v3575, 0
    %v3726 = vsel %vm1306, %v3576, 0
    %v3729 = vsel %vm1306, %v3577, 0
    %3731 = vmatpush.msra.mxu0 0.0
    %3732 = vmatpush.msra.mxu0 0.0
    %3733 = vmatpush.msra.mxu0 0.0
    %3734 = vmatpush.msra.mxu0 0.0
    %3735 = vmatpush.msra.mxu0 0.0
    %3736 = vmatpush.msra.mxu0 0.0
    %3737 = vmatpush.msra.mxu0 0.0
    %3738 = vmatpush.msra.mxu0 0.0
    %3739 = vmatpush.msra.mxu0 %v3698
    %3740 = vmatpush.msra.mxu0 %v3696
    %3741 = vmatpush.msra.mxu0 %v3694
    %3742 = vmatpush.msra.mxu0 %v3692
    %3743 = vmatpush.msra.mxu0 %v3690
    %3744 = vmatpush.msra.mxu0 %v3688
    %3745 = vmatpush.msra.mxu0 %v3686
    %3746 = vmatpush.msra.mxu0 %v3684
    %3747 = vmatmul.f32.gmra.mxu0 %v3708
    %v3748 = vpop.f32.mrf.mxu0
    %v3749 = vadd.f32 0.0, %v3748
    %3750 = vmatmul.f32.gmra.mxu0 %v3711
    %v3751 = vpop.f32.mrf.mxu0
    %v3752 = vadd.f32 0.0, %v3751
    %3753 = vmatmul.f32.gmra.mxu0 %v3714
    %v3754 = vpop.f32.mrf.mxu0
    %v3755 = vadd.f32 0.0, %v3754
    %3756 = vmatmul.f32.gmra.mxu0 %v3717
    %v3757 = vpop.f32.mrf.mxu0
    %v3758 = vadd.f32 0.0, %v3757
    %3759 = vmatmul.f32.gmra.mxu0 %v3720
    %v3760 = vpop.f32.mrf.mxu0
    %v3761 = vadd.f32 0.0, %v3760
    %3762 = vmatmul.f32.gmra.mxu0 %v3723
    %v3763 = vpop.f32.mrf.mxu0
    %v3764 = vadd.f32 0.0, %v3763
    %3765 = vmatmul.f32.gmra.mxu0 %v3726
    %v3766 = vpop.f32.mrf.mxu0
    %v3767 = vadd.f32 0.0, %v3766
    %3768 = vmatmul.f32.gmra.mxu0 %v3729
    %v3769 = vpop.f32.mrf.mxu0
    %v3770 = vadd.f32 0.0, %v3769
    %3771 = vdwg.mxu0
    %v3773 = vsel %vm1127, %v3660, 0
    %v3776 = vsel %vm1127, %v3663, 0
    %v3779 = vsel %vm1127, %v3666, 0
    %v3782 = vsel %vm1127, %v3669, 0
    %v3785 = vsel %vm1127, %v3672, 0
    %v3788 = vsel %vm1127, %v3675, 0
    %v3791 = vsel %vm1127, %v3678, 0
    %v3794 = vsel %vm1127, %v3681, 0
    %v3797 = vsel %vm1127, %v3749, 0
    %v3800 = vsel %vm1127, %v3752, 0
    %v3803 = vsel %vm1127, %v3755, 0
    %v3806 = vsel %vm1127, %v3758, 0
    %v3809 = vsel %vm1127, %v3761, 0
    %v3812 = vsel %vm1127, %v3764, 0
    %v3815 = vsel %vm1127, %v3767, 0
    %v3818 = vsel %vm1127, %v3770, 0
    %3820 = vmatpush.msra.mxu0 0.0
    %3821 = vmatpush.msra.mxu0 0.0
    %3822 = vmatpush.msra.mxu0 0.0
    %3823 = vmatpush.msra.mxu0 0.0
    %3824 = vmatpush.msra.mxu0 0.0
    %3825 = vmatpush.msra.mxu0 0.0
    %3826 = vmatpush.msra.mxu0 0.0
    %3827 = vmatpush.msra.mxu0 0.0
    %3828 = vmatpush.msra.mxu0 0.0
    %3829 = vmatpush.msra.mxu0 0.0
    %3830 = vmatpush.msra.mxu0 0.0
    %3831 = vmatpush.msra.mxu0 0.0
    %3832 = vmatpush.msra.mxu0 0.0
    %3833 = vmatpush.msra.mxu0 0.0
    %3834 = vmatpush.msra.mxu0 0.0
    %3835 = vmatpush.msra.mxu0 %v1121
    %3836 = vmatmul.f32.gmra.mxu0 %v3773
    %v3837 = vpop.f32.mrf.mxu0
    %v3838 = vadd.f32 0.0, %v3837
    %3839 = vmatmul.f32.gmra.mxu0 %v3776
    %v3840 = vpop.f32.mrf.mxu0
    %v3841 = vadd.f32 0.0, %v3840
    %3842 = vmatmul.f32.gmra.mxu0 %v3779
    %v3843 = vpop.f32.mrf.mxu0
    %v3844 = vadd.f32 0.0, %v3843
    %3845 = vmatmul.f32.gmra.mxu0 %v3782
    %v3846 = vpop.f32.mrf.mxu0
    %v3847 = vadd.f32 0.0, %v3846
    %3848 = vmatmul.f32.gmra.mxu0 %v3785
    %v3849 = vpop.f32.mrf.mxu0
    %v3850 = vadd.f32 0.0, %v3849
    %3851 = vmatmul.f32.gmra.mxu0 %v3788
    %v3852 = vpop.f32.mrf.mxu0
    %v3853 = vadd.f32 0.0, %v3852
    %3854 = vmatmul.f32.gmra.mxu0 %v3791
    %v3855 = vpop.f32.mrf.mxu0
    %v3856 = vadd.f32 0.0, %v3855
    %3857 = vmatmul.f32.gmra.mxu0 %v3794
    %v3858 = vpop.f32.mrf.mxu0
    %v3859 = vadd.f32 0.0, %v3858
    %3860 = vmatmul.f32.gmra.mxu0 %v3797
    %v3861 = vpop.f32.mrf.mxu0
    %v3862 = vadd.f32 0.0, %v3861
    %3863 = vmatmul.f32.gmra.mxu0 %v3800
    %v3864 = vpop.f32.mrf.mxu0
    %v3865 = vadd.f32 0.0, %v3864
    %3866 = vmatmul.f32.gmra.mxu0 %v3803
    %v3867 = vpop.f32.mrf.mxu0
    %v3868 = vadd.f32 0.0, %v3867
    %3869 = vmatmul.f32.gmra.mxu0 %v3806
    %v3870 = vpop.f32.mrf.mxu0
    %v3871 = vadd.f32 0.0, %v3870
    %3872 = vmatmul.f32.gmra.mxu0 %v3809
    %v3873 = vpop.f32.mrf.mxu0
    %v3874 = vadd.f32 0.0, %v3873
    %3875 = vmatmul.f32.gmra.mxu0 %v3812
    %v3876 = vpop.f32.mrf.mxu0
    %v3877 = vadd.f32 0.0, %v3876
    %3878 = vmatmul.f32.gmra.mxu0 %v3815
    %v3879 = vpop.f32.mrf.mxu0
    %v3880 = vadd.f32 0.0, %v3879
    %3881 = vmatmul.f32.gmra.mxu0 %v3818
    %v3882 = vpop.f32.mrf.mxu0
    %v3883 = vadd.f32 0.0, %v3882
    %3884 = vdwg.mxu0
    %v3885 = vadd.f32 %v3176, %v3838
    %v3886 = vadd.f32 %v3177, %v3841
    %v3887 = vadd.f32 %v3178, %v3844
    %v3888 = vadd.f32 %v3179, %v3847
    %v3889 = vadd.f32 %v3180, %v3850
    %v3890 = vadd.f32 %v3181, %v3853
    %v3891 = vadd.f32 %v3182, %v3856
    %v3892 = vadd.f32 %v3183, %v3859
    %v3893 = vadd.f32 %v3184, %v3862
    %v3894 = vadd.f32 %v3185, %v3865
    %v3895 = vadd.f32 %v3186, %v3868
    %v3896 = vadd.f32 %v3187, %v3871
    %v3897 = vadd.f32 %v3188, %v3874
    %v3898 = vadd.f32 %v3189, %v3877
    %v3899 = vadd.f32 %v3190, %v3880
    %v3900 = vadd.f32 %v3191, %v3883
    %v3901 = vmul.f32 %v3578, 0.25
    %v3902 = vmul.f32 %v3579, 0.25
    %v3903 = vmul.f32 %v3580, 0.25
    %v3904 = vmul.f32 %v3581, 0.25
    %v3905 = vmul.f32 %v3582, 0.25
    %v3906 = vmul.f32 %v3583, 0.25
    %v3907 = vmul.f32 %v3584, 0.25
    %v3908 = vmul.f32 %v3585, 0.25
    %v3909 = vmul.f32 %v3586, 0.25
    %v3910 = vmul.f32 %v3587, 0.25
    %v3911 = vmul.f32 %v3588, 0.25
    %v3912 = vmul.f32 %v3589, 0.25
    %v3913 = vmul.f32 %v3590, 0.25
    %v3914 = vmul.f32 %v3591, 0.25
    %v3915 = vmul.f32 %v3592, 0.25
    %v3916 = vmul.f32 %v3593, 0.25
    %3917 = vst.msk [vmem:[#allocation2] sm:$0xff] %vm393, %v3885
    %3918 = vst.msk [vmem:[#allocation2 + $0x8] sm:$0xff] %vm393, %v3886
    %3919 = vst.msk [vmem:[#allocation2 + $0x10] sm:$0xff] %vm393, %v3887
    %3920 = vst.msk [vmem:[#allocation2 + $0x18] sm:$0xff] %vm393, %v3888
    %3921 = vst.msk [vmem:[#allocation2 + $0x20] sm:$0xff] %vm393, %v3889
    %3922 = vst.msk [vmem:[#allocation2 + $0x28] sm:$0xff] %vm393, %v3890
    %3923 = vst.msk [vmem:[#allocation2 + $0x30] sm:$0xff] %vm393, %v3891
    %3924 = vst.msk [vmem:[#allocation2 + $0x38] sm:$0xff] %vm393, %v3892
    %3925 = vst.msk [vmem:[#allocation2 + $0x40] sm:$0xff] %vm393, %v3893
    %3926 = vst.msk [vmem:[#allocation2 + $0x48] sm:$0xff] %vm393, %v3894
    %3927 = vst.msk [vmem:[#allocation2 + $0x50] sm:$0xff] %vm393, %v3895
    %3928 = vst.msk [vmem:[#allocation2 + $0x58] sm:$0xff] %vm393, %v3896
    %3929 = vst.msk [vmem:[#allocation2 + $0x60] sm:$0xff] %vm393, %v3897
    %3930 = vst.msk [vmem:[#allocation2 + $0x68] sm:$0xff] %vm393, %v3898
    %3931 = vst.msk [vmem:[#allocation2 + $0x70] sm:$0xff] %vm393, %v3899
    %3932 = vst.msk [vmem:[#allocation2 + $0x78] sm:$0xff] %vm393, %v3900
    %v3933 = vsel %vm1306, %v3901, -inf
    %v3934 = vrot.slane %v3933, 4
    %v3935 = vmax.f32 %v3933, %v3934
    %v3936 = vrot.slane %v3935, 2
    %v3937 = vmax.f32 %v3935, %v3936
    %v3938 = vrot.slane %v3937, 1
    %v3939 = vmax.f32 %v3937, %v3938
    %v3940 = vsel %vm1306, %v3902, -inf
    %v3941 = vrot.slane %v3940, 4
    %v3942 = vmax.f32 %v3940, %v3941
    %v3943 = vrot.slane %v3942, 2
    %v3944 = vmax.f32 %v3942, %v3943
    %v3945 = vrot.slane %v3944, 1
    %v3946 = vmax.f32 %v3944, %v3945
    %v3947 = vsel %vm1306, %v3903, -inf
    %v3948 = vrot.slane %v3947, 4
    %v3949 = vmax.f32 %v3947, %v3948
    %v3950 = vrot.slane %v3949, 2
    %v3951 = vmax.f32 %v3949, %v3950
    %v3952 = vrot.slane %v3951, 1
    %v3953 = vmax.f32 %v3951, %v3952
    %v3954 = vsel %vm1306, %v3904, -inf
    %v3955 = vrot.slane %v3954, 4
    %v3956 = vmax.f32 %v3954, %v3955
    %v3957 = vrot.slane %v3956, 2
    %v3958 = vmax.f32 %v3956, %v3957
    %v3959 = vrot.slane %v3958, 1
    %v3960 = vmax.f32 %v3958, %v3959
    %v3961 = vsel %vm1306, %v3905, -inf
    %v3962 = vrot.slane %v3961, 4
    %v3963 = vmax.f32 %v3961, %v3962
    %v3964 = vrot.slane %v3963, 2
    %v3965 = vmax.f32 %v3963, %v3964
    %v3966 = vrot.slane %v3965, 1
    %v3967 = vmax.f32 %v3965, %v3966
    %v3968 = vsel %vm1306, %v3906, -inf
    %v3969 = vrot.slane %v3968, 4
    %v3970 = vmax.f32 %v3968, %v3969
    %v3971 = vrot.slane %v3970, 2
    %v3972 = vmax.f32 %v3970, %v3971
    %v3973 = vrot.slane %v3972, 1
    %v3974 = vmax.f32 %v3972, %v3973
    %v3975 = vsel %vm1306, %v3907, -inf
    %v3976 = vrot.slane %v3975, 4
    %v3977 = vmax.f32 %v3975, %v3976
    %v3978 = vrot.slane %v3977, 2
    %v3979 = vmax.f32 %v3977, %v3978
    %v3980 = vrot.slane %v3979, 1
    %v3981 = vmax.f32 %v3979, %v3980
    %v3982 = vsel %vm1306, %v3908, -inf
    %v3983 = vrot.slane %v3982, 4
    %v3984 = vmax.f32 %v3982, %v3983
    %v3985 = vrot.slane %v3984, 2
    %v3986 = vmax.f32 %v3984, %v3985
    %v3987 = vrot.slane %v3986, 1
    %v3988 = vmax.f32 %v3986, %v3987
    %v3989 = vsel %vm1306, %v3909, -inf
    %v3990 = vrot.slane %v3989, 4
    %v3991 = vmax.f32 %v3989, %v3990
    %v3992 = vrot.slane %v3991, 2
    %v3993 = vmax.f32 %v3991, %v3992
    %v3994 = vrot.slane %v3993, 1
    %v3995 = vmax.f32 %v3993, %v3994
    %v3996 = vsel %vm1306, %v3910, -inf
    %v3997 = vrot.slane %v3996, 4
    %v3998 = vmax.f32 %v3996, %v3997
    %v3999 = vrot.slane %v3998, 2
    %v4000 = vmax.f32 %v3998, %v3999
    %v4001 = vrot.slane %v4000, 1
    %v4002 = vmax.f32 %v4000, %v4001
    %v4003 = vsel %vm1306, %v3911, -inf
    %v4004 = vrot.slane %v4003, 4
    %v4005 = vmax.f32 %v4003, %v4004
    %v4006 = vrot.slane %v4005, 2
    %v4007 = vmax.f32 %v4005, %v4006
    %v4008 = vrot.slane %v4007, 1
    %v4009 = vmax.f32 %v4007, %v4008
    %v4010 = vsel %vm1306, %v3912, -inf
    %v4011 = vrot.slane %v4010, 4
    %v4012 = vmax.f32 %v4010, %v4011
    %v4013 = vrot.slane %v4012, 2
    %v4014 = vmax.f32 %v4012, %v4013
    %v4015 = vrot.slane %v4014, 1
    %v4016 = vmax.f32 %v4014, %v4015
    %v4017 = vsel %vm1306, %v3913, -inf
    %v4018 = vrot.slane %v4017, 4
    %v4019 = vmax.f32 %v4017, %v4018
    %v4020 = vrot.slane %v4019, 2
    %v4021 = vmax.f32 %v4019, %v4020
    %v4022 = vrot.slane %v4021, 1
    %v4023 = vmax.f32 %v4021, %v4022
    %v4024 = vsel %vm1306, %v3914, -inf
    %v4025 = vrot.slane %v4024, 4
    %v4026 = vmax.f32 %v4024, %v4025
    %v4027 = vrot.slane %v4026, 2
    %v4028 = vmax.f32 %v4026, %v4027
    %v4029 = vrot.slane %v4028, 1
    %v4030 = vmax.f32 %v4028, %v4029
    %v4031 = vsel %vm1306, %v3915, -inf
    %v4032 = vrot.slane %v4031, 4
    %v4033 = vmax.f32 %v4031, %v4032
    %v4034 = vrot.slane %v4033, 2
    %v4035 = vmax.f32 %v4033, %v4034
    %v4036 = vrot.slane %v4035, 1
    %v4037 = vmax.f32 %v4035, %v4036
    %v4038 = vsel %vm1306, %v3916, -inf
    %v4039 = vrot.slane %v4038, 4
    %v4040 = vmax.f32 %v4038, %v4039
    %v4041 = vrot.slane %v4040, 2
    %v4042 = vmax.f32 %v4040, %v4041
    %v4043 = vrot.slane %v4042, 1
    %v4044 = vmax.f32 %v4042, %v4043
    %v4045 = vsub.f32 %v3901, %v3939
    %v4046 = vsub.f32 %v3902, %v3946
    %v4047 = vsub.f32 %v3903, %v3953
    %v4048 = vsub.f32 %v3904, %v3960
    %v4049 = vsub.f32 %v3905, %v3967
    %v4050 = vsub.f32 %v3906, %v3974
    %v4051 = vsub.f32 %v3907, %v3981
    %v4052 = vsub.f32 %v3908, %v3988
    %v4053 = vsub.f32 %v3909, %v3995
    %v4054 = vsub.f32 %v3910, %v4002
    %v4055 = vsub.f32 %v3911, %v4009
    %v4056 = vsub.f32 %v3912, %v4016
    %v4057 = vsub.f32 %v3913, %v4023
    %v4058 = vsub.f32 %v3914, %v4030
    %v4059 = vsub.f32 %v3915, %v4037
    %v4060 = vsub.f32 %v3916, %v4044
    %v4061 = vmul.f32 %v4045, 1.442695
    %v4062 = vpow.pop %v4061
    %v4063 = vmul.f32 %v4046, 1.442695
    %v4064 = vpow.pop %v4063
    %v4065 = vmul.f32 %v4047, 1.442695
    %v4066 = vpow.pop %v4065
    %v4067 = vmul.f32 %v4048, 1.442695
    %v4068 = vpow.pop %v4067
    %v4069 = vmul.f32 %v4049, 1.442695
    %v4070 = vpow.pop %v4069
    %v4071 = vmul.f32 %v4050, 1.442695
    %v4072 = vpow.pop %v4071
    %v4073 = vmul.f32 %v4051, 1.442695
    %v4074 = vpow.pop %v4073
    %v4075 = vmul.f32 %v4052, 1.442695
    %v4076 = vpow.pop %v4075
    %v4077 = vmul.f32 %v4053, 1.442695
    %v4078 = vpow.pop %v4077
    %v4079 = vmul.f32 %v4054, 1.442695
    %v4080 = vpow.pop %v4079
    %v4081 = vmul.f32 %v4055, 1.442695
    %v4082 = vpow.pop %v4081
    %v4083 = vmul.f32 %v4056, 1.442695
    %v4084 = vpow.pop %v4083
    %v4085 = vmul.f32 %v4057, 1.442695
    %v4086 = vpow.pop %v4085
    %v4087 = vmul.f32 %v4058, 1.442695
    %v4088 = vpow.pop %v4087
    %v4089 = vmul.f32 %v4059, 1.442695
    %v4090 = vpow.pop %v4089
    %v4091 = vmul.f32 %v4060, 1.442695
    %v4092 = vpow.pop %v4091
    %v4093 = vsel %vm1306, %v4062, 0.0
    %v4094 = vrot.slane %v4093, 4
    %v4095 = vadd.f32 %v4093, %v4094
    %v4096 = vrot.slane %v4095, 2
    %v4097 = vadd.f32 %v4095, %v4096
    %v4098 = vrot.slane %v4097, 1
    %v4099 = vadd.f32 %v4097, %v4098
    %v4100 = vsel %vm1306, %v4064, 0.0
    %v4101 = vrot.slane %v4100, 4
    %v4102 = vadd.f32 %v4100, %v4101
    %v4103 = vrot.slane %v4102, 2
    %v4104 = vadd.f32 %v4102, %v4103
    %v4105 = vrot.slane %v4104, 1
    %v4106 = vadd.f32 %v4104, %v4105
    %v4107 = vsel %vm1306, %v4066, 0.0
    %v4108 = vrot.slane %v4107, 4
    %v4109 = vadd.f32 %v4107, %v4108
    %v4110 = vrot.slane %v4109, 2
    %v4111 = vadd.f32 %v4109, %v4110
    %v4112 = vrot.slane %v4111, 1
    %v4113 = vadd.f32 %v4111, %v4112
    %v4114 = vsel %vm1306, %v4068, 0.0
    %v4115 = vrot.slane %v4114, 4
    %v4116 = vadd.f32 %v4114, %v4115
    %v4117 = vrot.slane %v4116, 2
    %v4118 = vadd.f32 %v4116, %v4117
    %v4119 = vrot.slane %v4118, 1
    %v4120 = vadd.f32 %v4118, %v4119
    %v4121 = vsel %vm1306, %v4070, 0.0
    %v4122 = vrot.slane %v4121, 4
    %v4123 = vadd.f32 %v4121, %v4122
    %v4124 = vrot.slane %v4123, 2
    %v4125 = vadd.f32 %v4123, %v4124
    %v4126 = vrot.slane %v4125, 1
    %v4127 = vadd.f32 %v4125, %v4126
    %v4128 = vsel %vm1306, %v4072, 0.0
    %v4129 = vrot.slane %v4128, 4
    %v4130 = vadd.f32 %v4128, %v4129
    %v4131 = vrot.slane %v4130, 2
    %v4132 = vadd.f32 %v4130, %v4131
    %v4133 = vrot.slane %v4132, 1
    %v4134 = vadd.f32 %v4132, %v4133
    %v4135 = vsel %vm1306, %v4074, 0.0
    %v4136 = vrot.slane %v4135, 4
    %v4137 = vadd.f32 %v4135, %v4136
    %v4138 = vrot.slane %v4137, 2
    %v4139 = vadd.f32 %v4137, %v4138
    %v4140 = vrot.slane %v4139, 1
    %v4141 = vadd.f32 %v4139, %v4140
    %v4142 = vsel %vm1306, %v4076, 0.0
    %v4143 = vrot.slane %v4142, 4
    %v4144 = vadd.f32 %v4142, %v4143
    %v4145 = vrot.slane %v4144, 2
    %v4146 = vadd.f32 %v4144, %v4145
    %v4147 = vrot.slane %v4146, 1
    %v4148 = vadd.f32 %v4146, %v4147
    %v4149 = vsel %vm1306, %v4078, 0.0
    %v4150 = vrot.slane %v4149, 4
    %v4151 = vadd.f32 %v4149, %v4150
    %v4152 = vrot.slane %v4151, 2
    %v4153 = vadd.f32 %v4151, %v4152
    %v4154 = vrot.slane %v4153, 1
    %v4155 = vadd.f32 %v4153, %v4154
    %v4156 = vsel %vm1306, %v4080, 0.0
    %v4157 = vrot.slane %v4156, 4
    %v4158 = vadd.f32 %v4156, %v4157
    %v4159 = vrot.slane %v4158, 2
    %v4160 = vadd.f32 %v4158, %v4159
    %v4161 = vrot.slane %v4160, 1
    %v4162 = vadd.f32 %v4160, %v4161
    %v4163 = vsel %vm1306, %v4082, 0.0
    %v4164 = vrot.slane %v4163, 4
    %v4165 = vadd.f32 %v4163, %v4164
    %v4166 = vrot.slane %v4165, 2
    %v4167 = vadd.f32 %v4165, %v4166
    %v4168 = vrot.slane %v4167, 1
    %v4169 = vadd.f32 %v4167, %v4168
    %v4170 = vsel %vm1306, %v4084, 0.0
    %v4171 = vrot.slane %v4170, 4
    %v4172 = vadd.f32 %v4170, %v4171
    %v4173 = vrot.slane %v4172, 2
    %v4174 = vadd.f32 %v4172, %v4173
    %v4175 = vrot.slane %v4174, 1
    %v4176 = vadd.f32 %v4174, %v4175
    %v4177 = vsel %vm1306, %v4086, 0.0
    %v4178 = vrot.slane %v4177, 4
    %v4179 = vadd.f32 %v4177, %v4178
    %v4180 = vrot.slane %v4179, 2
    %v4181 = vadd.f32 %v4179, %v4180
    %v4182 = vrot.slane %v4181, 1
    %v4183 = vadd.f32 %v4181, %v4182
    %v4184 = vsel %vm1306, %v4088, 0.0
    %v4185 = vrot.slane %v4184, 4
    %v4186 = vadd.f32 %v4184, %v4185
    %v4187 = vrot.slane %v4186, 2
    %v4188 = vadd.f32 %v4186, %v4187
    %v4189 = vrot.slane %v4188, 1
    %v4190 = vadd.f32 %v4188, %v4189
    %v4191 = vsel %vm1306, %v4090, 0.0
    %v4192 = vrot.slane %v4191, 4
    %v4193 = vadd.f32 %v4191, %v4192
    %v4194 = vrot.slane %v4193, 2
    %v4195 = vadd.f32 %v4193, %v4194
    %v4196 = vrot.slane %v4195, 1
    %v4197 = vadd.f32 %v4195, %v4196
    %v4198 = vsel %vm1306, %v4092, 0.0
    %v4199 = vrot.slane %v4198, 4
    %v4200 = vadd.f32 %v4198, %v4199
    %v4201 = vrot.slane %v4200, 2
    %v4202 = vadd.f32 %v4200, %v4201
    %v4203 = vrot.slane %v4202, 1
    %v4204 = vadd.f32 %v4202, %v4203
    %v4205 = vrcp.pop %v4099
    %v4206 = vrcp.pop %v4106
    %v4207 = vrcp.pop %v4113
    %v4208 = vrcp.pop %v4120
    %v4209 = vrcp.pop %v4127
    %v4210 = vrcp.pop %v4134
    %v4211 = vrcp.pop %v4141
    %v4212 = vrcp.pop %v4148
    %v4213 = vrcp.pop %v4155
    %v4214 = vrcp.pop %v4162
    %v4215 = vrcp.pop %v4169
    %v4216 = vrcp.pop %v4176
    %v4217 = vrcp.pop %v4183
    %v4218 = vrcp.pop %v4190
    %v4219 = vrcp.pop %v4197
    %v4220 = vrcp.pop %v4204
    %v4221 = vmul.f32 %v4062, %v4205
    %v4222 = vmul.f32 %v4064, %v4206
    %v4223 = vmul.f32 %v4066, %v4207
    %v4224 = vmul.f32 %v4068, %v4208
    %v4225 = vmul.f32 %v4070, %v4209
    %v4226 = vmul.f32 %v4072, %v4210
    %v4227 = vmul.f32 %v4074, %v4211
    %v4228 = vmul.f32 %v4076, %v4212
    %v4229 = vmul.f32 %v4078, %v4213
    %v4230 = vmul.f32 %v4080, %v4214
    %v4231 = vmul.f32 %v4082, %v4215
    %v4232 = vmul.f32 %v4084, %v4216
    %v4233 = vmul.f32 %v4086, %v4217
    %v4234 = vmul.f32 %v4088, %v4218
    %v4235 = vmul.f32 %v4090, %v4219
    %v4236 = vmul.f32 %v4092, %v4220
    %v4237 = vmax.f32 %v3933, %v3947
    %v4238 = vmax.f32 %v3940, %v3954
    %v4239 = vmax.f32 %v4237, %v3961
    %v4240 = vmax.f32 %v4238, %v3968
    %v4241 = vmax.f32 %v4239, %v3975
    %v4242 = vmax.f32 %v4240, %v3982
    %v4243 = vmax.f32 %v4241, %v4242
    %v4244 = vmax.f32 %v3989, %v4003
    %v4245 = vmax.f32 %v3996, %v4010
    %v4246 = vmax.f32 %v4244, %v4017
    %v4247 = vmax.f32 %v4245, %v4024
    %v4248 = vmax.f32 %v4246, %v4031
    %v4249 = vmax.f32 %v4247, %v4038
    %v4250 = vmax.f32 %v4248, %v4249
    %v4251 = vsub.f32 %v3901, %v4243
    %v4252 = vsub.f32 %v3902, %v4243
    %v4253 = vsub.f32 %v3903, %v4243
    %v4254 = vsub.f32 %v3904, %v4243
    %v4255 = vsub.f32 %v3905, %v4243
    %v4256 = vsub.f32 %v3906, %v4243
    %v4257 = vsub.f32 %v3907, %v4243
    %v4258 = vsub.f32 %v3908, %v4243
    %v4259 = vsub.f32 %v3909, %v4250
    %v4260 = vsub.f32 %v3910, %v4250
    %v4261 = vsub.f32 %v3911, %v4250
    %v4262 = vsub.f32 %v3912, %v4250
    %v4263 = vsub.f32 %v3913, %v4250
    %v4264 = vsub.f32 %v3914, %v4250
    %v4265 = vsub.f32 %v3915, %v4250
    %v4266 = vsub.f32 %v3916, %v4250
    %v4267 = vmul.f32 %v4251, 1.442695
    %v4268 = vpow.pop %v4267
    %v4269 = vmul.f32 %v4252, 1.442695
    %v4270 = vpow.pop %v4269
    %v4271 = vmul.f32 %v4253, 1.442695
    %v4272 = vpow.pop %v4271
    %v4273 = vmul.f32 %v4254, 1.442695
    %v4274 = vpow.pop %v4273
    %v4275 = vmul.f32 %v4255, 1.442695
    %v4276 = vpow.pop %v4275
    %v4277 = vmul.f32 %v4256, 1.442695
    %v4278 = vpow.pop %v4277
    %v4279 = vmul.f32 %v4257, 1.442695
    %v4280 = vpow.pop %v4279
    %v4281 = vmul.f32 %v4258, 1.442695
    %v4282 = vpow.pop %v4281
    %v4283 = vmul.f32 %v4259, 1.442695
    %v4284 = vpow.pop %v4283
    %v4285 = vmul.f32 %v4260, 1.442695
    %v4286 = vpow.pop %v4285
    %v4287 = vmul.f32 %v4261, 1.442695
    %v4288 = vpow.pop %v4287
    %v4289 = vmul.f32 %v4262, 1.442695
    %v4290 = vpow.pop %v4289
    %v4291 = vmul.f32 %v4263, 1.442695
    %v4292 = vpow.pop %v4291
    %v4293 = vmul.f32 %v4264, 1.442695
    %v4294 = vpow.pop %v4293
    %v4295 = vmul.f32 %v4265, 1.442695
    %v4296 = vpow.pop %v4295
    %v4297 = vmul.f32 %v4266, 1.442695
    %v4298 = vpow.pop %v4297
    %v4299 = vsel %vm1306, %v4268, 0.0
    %v4300 = vsel %vm1306, %v4270, 0.0
    %v4301 = vadd.f32 %v4299, %v4300
    %v4302 = vsel %vm1306, %v4272, 0.0
    %v4303 = vadd.f32 %v4301, %v4302
    %v4304 = vsel %vm1306, %v4274, 0.0
    %v4305 = vadd.f32 %v4303, %v4304
    %v4306 = vsel %vm1306, %v4276, 0.0
    %v4307 = vadd.f32 %v4305, %v4306
    %v4308 = vsel %vm1306, %v4278, 0.0
    %v4309 = vadd.f32 %v4307, %v4308
    %v4310 = vsel %vm1306, %v4280, 0.0
    %v4311 = vadd.f32 %v4309, %v4310
    %v4312 = vsel %vm1306, %v4282, 0.0
    %v4313 = vadd.f32 %v4311, %v4312
    %v4314 = vsel %vm1306, %v4284, 0.0
    %v4315 = vsel %vm1306, %v4286, 0.0
    %v4316 = vadd.f32 %v4314, %v4315
    %v4317 = vsel %vm1306, %v4288, 0.0
    %v4318 = vadd.f32 %v4316, %v4317
    %v4319 = vsel %vm1306, %v4290, 0.0
    %v4320 = vadd.f32 %v4318, %v4319
    %v4321 = vsel %vm1306, %v4292, 0.0
    %v4322 = vadd.f32 %v4320, %v4321
    %v4323 = vsel %vm1306, %v4294, 0.0
    %v4324 = vadd.f32 %v4322, %v4323
    %v4325 = vsel %vm1306, %v4296, 0.0
    %v4326 = vadd.f32 %v4324, %v4325
    %v4327 = vsel %vm1306, %v4298, 0.0
    %v4328 = vadd.f32 %v4326, %v4327
    %v4329 = vrcp.pop %v4313
    %v4330 = vrcp.pop %v4328
    %v4331 = vmul.f32 %v4268, %v4329
    %v4332 = vmul.f32 %v4270, %v4329
    %v4333 = vmul.f32 %v4272, %v4329
    %v4334 = vmul.f32 %v4274, %v4329
    %v4335 = vmul.f32 %v4276, %v4329
    %v4336 = vmul.f32 %v4278, %v4329
    %v4337 = vmul.f32 %v4280, %v4329
    %v4338 = vmul.f32 %v4282, %v4329
    %v4339 = vmul.f32 %v4284, %v4330
    %v4340 = vmul.f32 %v4286, %v4330
    %v4341 = vmul.f32 %v4288, %v4330
    %v4342 = vmul.f32 %v4290, %v4330
    %v4343 = vmul.f32 %v4292, %v4330
    %v4344 = vmul.f32 %v4294, %v4330
    %v4345 = vmul.f32 %v4296, %v4330
    %v4346 = vmul.f32 %v4298, %v4330
    %v4347 = vmul.f32 %v4221, %v4331
    %v4348 = vmul.f32 %v4222, %v4332
    %v4349 = vmul.f32 %v4223, %v4333
    %v4350 = vmul.f32 %v4224, %v4334
    %v4351 = vmul.f32 %v4225, %v4335
    %v4352 = vmul.f32 %v4226, %v4336
    %v4353 = vmul.f32 %v4227, %v4337
    %v4354 = vmul.f32 %v4228, %v4338
    %v4355 = vmul.f32 %v4229, %v4339
    %v4356 = vmul.f32 %v4230, %v4340
    %v4357 = vmul.f32 %v4231, %v4341
    %v4358 = vmul.f32 %v4232, %v4342
    %v4359 = vmul.f32 %v4233, %v4343
    %v4360 = vmul.f32 %v4234, %v4344
    %v4361 = vmul.f32 %v4235, %v4345
    %v4362 = vmul.f32 %v4236, %v4346
    %4379 = vrot.lane.b32.xlu0 %v4347, 64
    %v4380 = vpop.permute.xlu0 %4379
    %4381 = vrot.lane.b32.xlu0 %v4348, 64
    %v4382 = vpop.permute.xlu0 %4381
    %4383 = vrot.lane.b32.xlu0 %v4349, 64
    %v4384 = vpop.permute.xlu0 %4383
    %4385 = vrot.lane.b32.xlu0 %v4350, 64
    %v4386 = vpop.permute.xlu0 %4385
    %4387 = vrot.lane.b32.xlu0 %v4351, 64
    %v4388 = vpop.permute.xlu0 %4387
    %4389 = vrot.lane.b32.xlu0 %v4352, 64
    %v4390 = vpop.permute.xlu0 %4389
    %4391 = vrot.lane.b32.xlu0 %v4353, 64
    %v4392 = vpop.permute.xlu0 %4391
    %4393 = vrot.lane.b32.xlu0 %v4354, 64
    %v4394 = vpop.permute.xlu0 %4393
    %4395 = vrot.lane.b32.xlu0 %v4355, 64
    %v4396 = vpop.permute.xlu0 %4395
    %4397 = vrot.lane.b32.xlu0 %v4356, 64
    %v4398 = vpop.permute.xlu0 %4397
    %4399 = vrot.lane.b32.xlu0 %v4357, 64
    %v4400 = vpop.permute.xlu0 %4399
    %4401 = vrot.lane.b32.xlu0 %v4358, 64
    %v4402 = vpop.permute.xlu0 %4401
    %4403 = vrot.lane.b32.xlu0 %v4359, 64
    %v4404 = vpop.permute.xlu0 %4403
    %4405 = vrot.lane.b32.xlu0 %v4360, 64
    %v4406 = vpop.permute.xlu0 %4405
    %4407 = vrot.lane.b32.xlu0 %v4361, 64
    %v4408 = vpop.permute.xlu0 %4407
    %4409 = vrot.lane.b32.xlu0 %v4362, 64
    %v4410 = vpop.permute.xlu0 %4409
    %v4427 = vsel %vm1306, %v3901, %v4380
    %v4428 = vsel %vm1306, %v3902, %v4382
    %v4429 = vsel %vm1306, %v3903, %v4384
    %v4430 = vsel %vm1306, %v3904, %v4386
    %v4431 = vsel %vm1306, %v3905, %v4388
    %v4432 = vsel %vm1306, %v3906, %v4390
    %v4433 = vsel %vm1306, %v3907, %v4392
    %v4434 = vsel %vm1306, %v3908, %v4394
    %v4435 = vsel %vm1306, %v3909, %v4396
    %v4436 = vsel %vm1306, %v3910, %v4398
    %v4437 = vsel %vm1306, %v3911, %v4400
    %v4438 = vsel %vm1306, %v3912, %v4402
    %v4439 = vsel %vm1306, %v3913, %v4404
    %v4440 = vsel %vm1306, %v3914, %v4406
    %v4441 = vsel %vm1306, %v3915, %v4408
    %v4442 = vsel %vm1306, %v3916, %v4410
    %4443 = vst [vmem:[%s23] sm:$0xff] %v4427
    %4444 = vst [vmem:[%s23 + $0x8] sm:$0xff] %v4428
    %4445 = vst [vmem:[%s23 + $0x10] sm:$0xff] %v4429
    %4446 = vst [vmem:[%s23 + $0x18] sm:$0xff] %v4430
    %4447 = vst [vmem:[%s23 + $0x20] sm:$0xff] %v4431
    %4448 = vst [vmem:[%s23 + $0x28] sm:$0xff] %v4432
    %4449 = vst [vmem:[%s23 + $0x30] sm:$0xff] %v4433
    %4450 = vst [vmem:[%s23 + $0x38] sm:$0xff] %v4434
    %4451 = vst [vmem:[%s23 + $0x40] sm:$0xff] %v4435
    %4452 = vst [vmem:[%s23 + $0x48] sm:$0xff] %v4436
    %4453 = vst [vmem:[%s23 + $0x50] sm:$0xff] %v4437
    %4454 = vst [vmem:[%s23 + $0x58] sm:$0xff] %v4438
    %4455 = vst [vmem:[%s23 + $0x60] sm:$0xff] %v4439
    %4456 = vst [vmem:[%s23 + $0x68] sm:$0xff] %v4440
    %4457 = vst [vmem:[%s23 + $0x70] sm:$0xff] %v4441
    %4458 = vst [vmem:[%s23 + $0x78] sm:$0xff] %v4442
    // Predicated region
    $region90: #{feature_forecaster_forward.1} parent=1 // pred_check
      _
    $region91: #{feature_forecaster_forward.1} parent=1 // pred_check_branch
      %4460 = sbr.rel (0) target = $region93
    $region92: #{feature_forecaster_forward.1} parent=1 // pred_region
      %4462 = vsyncadd [#allocation3], 0
      %s4463 = sshll.u32 [#allocation2], 4
      %s4464 = int_to_ptr.vmem [resolvable:$true] %s4463
      %s4465 = sshll.u32 %s22, 4
      %s4466 = int_to_ptr.hbm [resolvable:$true] %s4465
      %4471 = dma.vmem_to_hbm [thread:$0]  %s4464, 2048, %s4466, [#allocation3], 128, 128, 8
    $region93: #{feature_forecaster_forward.1} parent=1 // pred_fallthru
      _
    // Predicated region
    $region94: #{feature_forecaster_forward.1} parent=1 // pred_check
      _
    $region95: #{feature_forecaster_forward.1} parent=1 // pred_check_branch
      %4473 = sbr.rel (0) target = $region97
    $region96: #{feature_forecaster_forward.1} parent=1 // pred_region
      _
    $region97: #{feature_forecaster_forward.1} parent=1 // pred_fallthru
      _
    // Predicated region
    $region98: #{feature_forecaster_forward.1} parent=1 // pred_check
      _
    $region99: #{feature_forecaster_forward.1} parent=1 // pred_check_branch
      %4475 = sbr.rel (0) target = $region101
    $region100: #{feature_forecaster_forward.1} parent=1 // pred_region
      %4477 = dma.done [#allocation3], 2048
    $region101: #{feature_forecaster_forward.1} parent=1 // pred_fallthru
      _
    // Predicated region
    $region102: #{feature_forecaster_forward.1} parent=1 // pred_check
      _
    $region103: #{feature_forecaster_forward.1} parent=1 // pred_check_branch
      %4479 = sbr.rel (0) target = $region105
    $region104: #{feature_forecaster_forward.1} parent=1 // pred_region
      _
    $region105: #{feature_forecaster_forward.1} parent=1 // pred_fallthru
      _
    %4480 = vsyncpa [#allocation3], 1

</llo_original>
